<compile_context>
chip_gen: v7x
topology: tpu7x:2x2x1
jax: 0.10.0
libtpu: 0.0.40
codegen_flags: <defaults>
</compile_context>

<pallas_src>
import math
import functools

import jax
import jax.numpy as jnp
from jax.experimental import pallas as pl
from jax.experimental.pallas import tpu as pltpu

EPS = 1e-6


# ----------------------------------------------------------------------------
# Pallas kernels
# ----------------------------------------------------------------------------
def _decoder_layer_kernel(
    x_ref, mem_ref, smask_ref, tmask_ref,
    ln1_g_ref, ln1_b_ref, wqkv_ref, bqkv_ref, wo_s_ref, bo_s_ref,
    ln2_g_ref, ln2_b_ref, wq_c_ref, bq_c_ref, wkv_c_ref, bkv_c_ref,
    wo_c_ref, bo_c_ref, ln3_g_ref, ln3_b_ref, w1_ref, b1_ref, w2_ref, b2_ref,
    o_ref, *, n_heads):
    x = x_ref[0].astype(jnp.float32)        # (S, D)
    mem = mem_ref[0].astype(jnp.float32)    # (Sm, D)
    S, D = x.shape
    H = n_heads
    dk = D // H
    scale = 1.0 / math.sqrt(dk)

    def layer_norm(v, g_ref, b_ref):
        mean = jnp.mean(v, axis=-1, keepdims=True)
        diff = v - mean
        # torch.std default is unbiased (N-1 divisor); eps is added to std.
        var = jnp.sum(diff * diff, axis=-1, keepdims=True) * (1.0 / (D - 1))
        inv = pl.reciprocal(jnp.sqrt(var) + EPS, approx=True)
        return g_ref[...] * diff * inv + b_ref[...]

    def softmax_lastdim(scores):
        m = jnp.max(scores, axis=-1, keepdims=True)
        e = jnp.exp(scores - m)
        return e * pl.reciprocal(jnp.sum(e, axis=-1, keepdims=True), approx=True)

    def split_heads(t):  # (L, D) -> (H, L, dk)
        return t.reshape(t.shape[0], H, dk).transpose(1, 0, 2)

    def merge_heads(t):  # (H, L, dk) -> (L, D)
        return t.transpose(1, 0, 2).reshape(t.shape[1], D)

    # ---- sublayer 0: masked self-attention -----------------------------------
    n1 = layer_norm(x, ln1_g_ref, ln1_b_ref)
    qkv = jnp.dot(n1, wqkv_ref[...], preferred_element_type=jnp.float32) + bqkv_ref[...]
    q = split_heads(qkv[:, :D]) * scale          # scale folded into q
    k = split_heads(qkv[:, D:2 * D])
    v = split_heads(qkv[:, 2 * D:])
    scores = jnp.einsum("hqd,hkd->hqk", q, k, preferred_element_type=jnp.float32)
    tmask = tmask_ref[0]                         # (S, S)
    scores = jnp.where(tmask[None, :, :] > 0, scores, -1e9)
    p = softmax_lastdim(scores)
    ctx = merge_heads(jnp.einsum("hqk,hkd->hqd", p, v,
                                 preferred_element_type=jnp.float32))
    x = x + jnp.dot(ctx, wo_s_ref[...], preferred_element_type=jnp.float32) + bo_s_ref[...]

    # ---- sublayer 1: cross-attention over memory ------------------------------
    n2 = layer_norm(x, ln2_g_ref, ln2_b_ref)
    qc = split_heads(jnp.dot(n2, wq_c_ref[...], preferred_element_type=jnp.float32)
                     + bq_c_ref[...]) * scale
    kvc = jnp.dot(mem, wkv_c_ref[...], preferred_element_type=jnp.float32) + bkv_c_ref[...]
    kc = split_heads(kvc[:, :D])
    vc = split_heads(kvc[:, D:])
    scores = jnp.einsum("hqd,hkd->hqk", qc, kc, preferred_element_type=jnp.float32)
    smask = smask_ref[0]                         # (1, Sm)
    scores = jnp.where(smask[None, :, :] > 0, scores, -1e9)
    p = softmax_lastdim(scores)
    ctx = merge_heads(jnp.einsum("hqk,hkd->hqd", p, vc,
                                 preferred_element_type=jnp.float32))
    x = x + jnp.dot(ctx, wo_c_ref[...], preferred_element_type=jnp.float32) + bo_c_ref[...]

    # ---- sublayer 2: position-wise feed-forward --------------------------------
    n3 = layer_norm(x, ln3_g_ref, ln3_b_ref)
    h = jnp.maximum(
        jnp.dot(n3, w1_ref[...], preferred_element_type=jnp.float32) + b1_ref[...], 0.0)
    x = x + jnp.dot(h, w2_ref[...], preferred_element_type=jnp.float32) + b2_ref[...]

    o_ref[0] = x.astype(o_ref.dtype)


def _layernorm_kernel(x_ref, g_ref, b_ref, o_ref):
    x = x_ref[...].astype(jnp.float32)
    d = x.shape[-1]
    mean = jnp.mean(x, axis=-1, keepdims=True)
    diff = x - mean
    var = jnp.sum(diff * diff, axis=-1, keepdims=True) * (1.0 / (d - 1))
    inv = pl.reciprocal(jnp.sqrt(var) + EPS, approx=True)
    o_ref[...] = (g_ref[...] * diff * inv + b_ref[...]).astype(o_ref.dtype)


# ----------------------------------------------------------------------------
# Pallas-call wrappers
# ----------------------------------------------------------------------------
def decoder_layer(x, memory, src_mask, tgt_mask, p, n_heads):
    B, S, D = x.shape
    Sm = memory.shape[1]
    DFF = p["w1"].shape[1]

    def full_spec(shape):
        nd = len(shape)
        return pl.BlockSpec(shape, lambda b, _nd=nd: (0,) * _nd)

    def per_batch_spec(shape):
        nz = len(shape)
        return pl.BlockSpec((1,) + shape, lambda b, _nz=nz: (b,) + (0,) * _nz)

    in_specs = [
        per_batch_spec((S, D)),                   # x
        per_batch_spec((Sm, D)),                  # memory
        per_batch_spec((1, Sm)),                  # src_mask
        per_batch_spec((S, S)),                   # tgt_mask
        full_spec((1, D)), full_spec((1, D)),     # ln1 gamma/beta
        full_spec((D, 3 * D)), full_spec((1, 3 * D)),   # fused qkv
        full_spec((D, D)), full_spec((1, D)),     # self-attn out proj
        full_spec((1, D)), full_spec((1, D)),     # ln2 gamma/beta
        full_spec((D, D)), full_spec((1, D)),     # cross q
        full_spec((D, 2 * D)), full_spec((1, 2 * D)),   # fused cross k/v
        full_spec((D, D)), full_spec((1, D)),     # cross out proj
        full_spec((1, D)), full_spec((1, D)),     # ln3 gamma/beta
        full_spec((D, DFF)), full_spec((1, DFF)),  # ffn w1
        full_spec((DFF, D)), full_spec((1, D)),    # ffn w2
    ]

    return pl.pallas_call(
        functools.partial(_decoder_layer_kernel, n_heads=n_heads),
        out_shape=jax.ShapeDtypeStruct((B, S, D), x.dtype),
        grid=(B,),
        in_specs=in_specs,
        out_specs=pl.BlockSpec((1, S, D), lambda b: (b, 0, 0)),
        compiler_params=pltpu.CompilerParams(dimension_semantics=("parallel",)),
    )(
        x, memory, src_mask.reshape(B, 1, Sm), tgt_mask,
        p["ln1_g"].reshape(1, D), p["ln1_b"].reshape(1, D),
        p["wqkv"], p["bqkv"].reshape(1, 3 * D),
        p["wo_s"], p["bo_s"].reshape(1, D),
        p["ln2_g"].reshape(1, D), p["ln2_b"].reshape(1, D),
        p["wq_c"], p["bq_c"].reshape(1, D),
        p["wkv_c"], p["bkv_c"].reshape(1, 2 * D),
        p["wo_c"], p["bo_c"].reshape(1, D),
        p["ln3_g"].reshape(1, D), p["ln3_b"].reshape(1, D),
        p["w1"], p["b1"].reshape(1, DFF),
        p["w2"], p["b2"].reshape(1, D),
    )


def final_layernorm(x2d, gamma, beta, *, block_rows=256):
    M, D = x2d.shape
    block_rows = min(block_rows, M)
    if M % block_rows != 0:
        block_rows = M
    return pl.pallas_call(
        _layernorm_kernel,
        out_shape=jax.ShapeDtypeStruct((M, D), x2d.dtype),
        grid=(M // block_rows,),
        in_specs=[
            pl.BlockSpec((block_rows, D), lambda i: (i, 0)),
            pl.BlockSpec((1, D), lambda i: (0, 0)),
            pl.BlockSpec((1, D), lambda i: (0, 0)),
        ],
        out_specs=pl.BlockSpec((block_rows, D), lambda i: (i, 0)),
        compiler_params=pltpu.CompilerParams(dimension_semantics=("parallel",)),
    )(x2d, gamma.reshape(1, D), beta.reshape(1, D))


# ----------------------------------------------------------------------------
# Decoder forward
# ----------------------------------------------------------------------------
def decoder_forward(x, memory, src_mask, tgt_mask, layer_params, final_g, final_b, n_heads):
    """Pass (x, memory, masks) through each layer in turn, then final LayerNorm."""
    B, S, D = x.shape
    for p in layer_params:
        x = decoder_layer(x, memory, src_mask, tgt_mask, p, n_heads)
    return final_layernorm(x.reshape(B * S, D), final_g, final_b).reshape(B, S, D)


# ----------------------------------------------------------------------------
# Deterministic parameter construction
# ----------------------------------------------------------------------------
def init_params(key, n_layers, D, DFF):
    def dense(k, fan_in, fan_out):
        return 0.02 * jax.random.normal(k, (fan_in, fan_out), jnp.float32)

    layers = []
    for _ in range(n_layers):
        keys = jax.random.split(key, 8)
        key = keys[-1]
        p = {
            # self-attention (fused qkv) + out proj
            "wqkv": dense(keys[0], D, 3 * D), "bqkv": jnp.zeros((3 * D,), jnp.float32),
            "wo_s": dense(keys[1], D, D), "bo_s": jnp.zeros((D,), jnp.float32),
            # cross-attention: q from x, fused k/v from memory, out proj
            "wq_c": dense(keys[2], D, D), "bq_c": jnp.zeros((D,), jnp.float32),
            "wkv_c": dense(keys[3], D, 2 * D), "bkv_c": jnp.zeros((2 * D,), jnp.float32),
            "wo_c": dense(keys[4], D, D), "bo_c": jnp.zeros((D,), jnp.float32),
            # feed-forward
            "w1": dense(keys[5], D, DFF), "b1": jnp.zeros((DFF,), jnp.float32),
            "w2": dense(keys[6], DFF, D), "b2": jnp.zeros((D,), jnp.float32),
            # layer norms (pre-norm sublayers)
            "ln1_g": jnp.ones((D,), jnp.float32), "ln1_b": jnp.zeros((D,), jnp.float32),
            "ln2_g": jnp.ones((D,), jnp.float32), "ln2_b": jnp.zeros((D,), jnp.float32),
            "ln3_g": jnp.ones((D,), jnp.float32), "ln3_b": jnp.zeros((D,), jnp.float32),
        }
        layers.append(p)
    final_g = jnp.ones((D,), jnp.float32)
    final_b = jnp.zeros((D,), jnp.float32)
    return layers, final_g, final_b, key


if __name__ == "__main__":
    # Small shapes consistent with the module: batch=2, seq=8, d_model=32.
    B, S, SM, D, H, DFF, N_LAYERS = 2, 8, 8, 32, 4, 64, 2

    key = jax.random.PRNGKey(0)
    kx, km, kp = jax.random.split(key, 3)
    x = jax.random.normal(kx, (B, S, D), jnp.float32)
    memory = jax.random.normal(km, (B, SM, D), jnp.float32)

    # Standard decoder masks: causal tgt_mask, all-valid src_mask.
    src_mask = jnp.ones((B, 1, SM), jnp.float32)
    tgt_mask = jnp.tile(jnp.tril(jnp.ones((S, S), jnp.float32))[None], (B, 1, 1))

    layer_params, final_g, final_b, _ = init_params(kp, N_LAYERS, D, DFF)

    # TODO(synk): the PyTorch Decoder takes an abstract `layer`; we fix it to the
    # standard Annotated-Transformer DecoderLayer (eval mode, dropout = identity).
    out = decoder_forward(x, memory, src_mask, tgt_mask,
                          layer_params, final_g, final_b, H)
    out = jax.block_until_ready(out)

    assert out.shape == (B, S, D) and out.dtype == jnp.float32
    assert bool(jnp.all(jnp.isfinite(out)))
    print("KERNEL_OK")
</pallas_src>

<mosaic_0001>
module attributes {stable_mosaic.version = 11 : i64} {
  func.func @_decoder_layer_kernel(%arg0: i32, %arg1: memref<1x8x32xf32, #tpu.memory_space<vmem>>, %arg2: memref<1x8x32xf32, #tpu.memory_space<vmem>>, %arg3: memref<1x1x8xf32, #tpu.memory_space<vmem>>, %arg4: memref<1x8x8xf32, #tpu.memory_space<vmem>>, %arg5: memref<1x32xf32, #tpu.memory_space<vmem>>, %arg6: memref<1x32xf32, #tpu.memory_space<vmem>>, %arg7: memref<32x96xf32, #tpu.memory_space<vmem>>, %arg8: memref<1x96xf32, #tpu.memory_space<vmem>>, %arg9: memref<32x32xf32, #tpu.memory_space<vmem>>, %arg10: memref<1x32xf32, #tpu.memory_space<vmem>>, %arg11: memref<1x32xf32, #tpu.memory_space<vmem>>, %arg12: memref<1x32xf32, #tpu.memory_space<vmem>>, %arg13: memref<32x32xf32, #tpu.memory_space<vmem>>, %arg14: memref<1x32xf32, #tpu.memory_space<vmem>>, %arg15: memref<32x64xf32, #tpu.memory_space<vmem>>, %arg16: memref<1x64xf32, #tpu.memory_space<vmem>>, %arg17: memref<32x32xf32, #tpu.memory_space<vmem>>, %arg18: memref<1x32xf32, #tpu.memory_space<vmem>>, %arg19: memref<1x32xf32, #tpu.memory_space<vmem>>, %arg20: memref<1x32xf32, #tpu.memory_space<vmem>>, %arg21: memref<32x64xf32, #tpu.memory_space<vmem>>, %arg22: memref<1x64xf32, #tpu.memory_space<vmem>>, %arg23: memref<64x32xf32, #tpu.memory_space<vmem>>, %arg24: memref<1x32xf32, #tpu.memory_space<vmem>>, %arg25: memref<1x8x32xf32, #tpu.memory_space<vmem>>) attributes {dimension_semantics = [#tpu.dimension_semantics<parallel>], iteration_bounds = array<i64: 2>, scalar_prefetch = 0 : i64, scratch_operands = 0 : i64, tpu.core_type = #tpu.core_type<tc>, window_params = [{transform_indices = @transform_0, window_bounds = array<i64: 1, 8, 32>}, {transform_indices = @transform_1, window_bounds = array<i64: 1, 8, 32>}, {transform_indices = @transform_2, window_bounds = array<i64: 1, 1, 8>}, {transform_indices = @transform_3, window_bounds = array<i64: 1, 8, 8>}, {pipeline_mode = #tpu.pipeline_mode<synchronous>, transform_indices = @transform_4, window_bounds = array<i64: 1, 32>}, {pipeline_mode = #tpu.pipeline_mode<synchronous>, transform_indices = @transform_5, window_bounds = array<i64: 1, 32>}, {pipeline_mode = #tpu.pipeline_mode<synchronous>, transform_indices = @transform_6, window_bounds = array<i64: 32, 96>}, {pipeline_mode = #tpu.pipeline_mode<synchronous>, transform_indices = @transform_7, window_bounds = array<i64: 1, 96>}, {pipeline_mode = #tpu.pipeline_mode<synchronous>, transform_indices = @transform_8, window_bounds = array<i64: 32, 32>}, {pipeline_mode = #tpu.pipeline_mode<synchronous>, transform_indices = @transform_9, window_bounds = array<i64: 1, 32>}, {pipeline_mode = #tpu.pipeline_mode<synchronous>, transform_indices = @transform_10, window_bounds = array<i64: 1, 32>}, {pipeline_mode = #tpu.pipeline_mode<synchronous>, transform_indices = @transform_11, window_bounds = array<i64: 1, 32>}, {pipeline_mode = #tpu.pipeline_mode<synchronous>, transform_indices = @transform_12, window_bounds = array<i64: 32, 32>}, {pipeline_mode = #tpu.pipeline_mode<synchronous>, transform_indices = @transform_13, window_bounds = array<i64: 1, 32>}, {pipeline_mode = #tpu.pipeline_mode<synchronous>, transform_indices = @transform_14, window_bounds = array<i64: 32, 64>}, {pipeline_mode = #tpu.pipeline_mode<synchronous>, transform_indices = @transform_15, window_bounds = array<i64: 1, 64>}, {pipeline_mode = #tpu.pipeline_mode<synchronous>, transform_indices = @transform_16, window_bounds = array<i64: 32, 32>}, {pipeline_mode = #tpu.pipeline_mode<synchronous>, transform_indices = @transform_17, window_bounds = array<i64: 1, 32>}, {pipeline_mode = #tpu.pipeline_mode<synchronous>, transform_indices = @transform_18, window_bounds = array<i64: 1, 32>}, {pipeline_mode = #tpu.pipeline_mode<synchronous>, transform_indices = @transform_19, window_bounds = array<i64: 1, 32>}, {pipeline_mode = #tpu.pipeline_mode<synchronous>, transform_indices = @transform_20, window_bounds = array<i64: 32, 64>}, {pipeline_mode = #tpu.pipeline_mode<synchronous>, transform_indices = @transform_21, window_bounds = array<i64: 1, 64>}, {pipeline_mode = #tpu.pipeline_mode<synchronous>, transform_indices = @transform_22, window_bounds = array<i64: 64, 32>}, {pipeline_mode = #tpu.pipeline_mode<synchronous>, transform_indices = @transform_23, window_bounds = array<i64: 1, 32>}, {transform_indices = @transform_24, window_bounds = array<i64: 1, 8, 32>}]} {
    %c0 = arith.constant 0 : index
    %c0_0 = arith.constant 0 : index
    %c0_1 = arith.constant 0 : index
    %0 = vector.load %arg1[%c0, %c0_0, %c0_1] : memref<1x8x32xf32, #tpu.memory_space<vmem>>, vector<1x8x32xf32>
    %1 = vector.shape_cast %0 : vector<1x8x32xf32> to vector<8x32xf32>
    %c0_2 = arith.constant 0 : index
    %c0_3 = arith.constant 0 : index
    %c0_4 = arith.constant 0 : index
    %2 = vector.load %arg2[%c0_2, %c0_3, %c0_4] : memref<1x8x32xf32, #tpu.memory_space<vmem>>, vector<1x8x32xf32>
    %3 = vector.shape_cast %2 : vector<1x8x32xf32> to vector<8x32xf32>
    %cst = arith.constant dense<0.000000e+00> : vector<8xf32>
    %4 = vector.multi_reduction <add>, %1, %cst [1] : vector<8x32xf32> to vector<8xf32>
    %5 = vector.shape_cast %4 : vector<8xf32> to vector<8x1xf32>
    %cst_5 = arith.constant 3.200000e+01 : f32
    %6 = vector.broadcast %cst_5 : f32 to vector<8x1xf32>
    %7 = arith.divf %5, %6 : vector<8x1xf32>
    %8 = vector.broadcast %7 : vector<8x1xf32> to vector<8x32xf32>
    %9 = arith.subf %1, %8 : vector<8x32xf32>
    %10 = arith.mulf %9, %9 : vector<8x32xf32>
    %cst_6 = arith.constant dense<0.000000e+00> : vector<8xf32>
    %11 = vector.multi_reduction <add>, %10, %cst_6 [1] : vector<8x32xf32> to vector<8xf32>
    %12 = vector.shape_cast %11 : vector<8xf32> to vector<8x1xf32>
    %cst_7 = arith.constant 0.0322580636 : f32
    %13 = vector.broadcast %cst_7 : f32 to vector<8x1xf32>
    %14 = arith.mulf %12, %13 : vector<8x1xf32>
    %15 = math.sqrt %14 : vector<8x1xf32>
    %cst_8 = arith.constant 9.99999997E-7 : f32
    %16 = vector.broadcast %cst_8 : f32 to vector<8x1xf32>
    %17 = arith.addf %15, %16 : vector<8x1xf32>
    %18 = tpu.reciprocal %17 {approx = true} : vector<8x1xf32> -> vector<8x1xf32>
    %c0_9 = arith.constant 0 : index
    %c0_10 = arith.constant 0 : index
    %19 = vector.load %arg5[%c0_9, %c0_10] : memref<1x32xf32, #tpu.memory_space<vmem>>, vector<1x32xf32>
    %20 = vector.broadcast %19 : vector<1x32xf32> to vector<8x32xf32>
    %21 = arith.mulf %20, %9 : vector<8x32xf32>
    %22 = vector.broadcast %18 : vector<8x1xf32> to vector<8x32xf32>
    %23 = arith.mulf %21, %22 : vector<8x32xf32>
    %c0_11 = arith.constant 0 : index
    %c0_12 = arith.constant 0 : index
    %24 = vector.load %arg6[%c0_11, %c0_12] : memref<1x32xf32, #tpu.memory_space<vmem>>, vector<1x32xf32>
    %25 = vector.broadcast %24 : vector<1x32xf32> to vector<8x32xf32>
    %26 = arith.addf %23, %25 : vector<8x32xf32>
    %c0_13 = arith.constant 0 : index
    %c0_14 = arith.constant 0 : index
    %27 = vector.load %arg7[%c0_13, %c0_14] : memref<32x96xf32, #tpu.memory_space<vmem>>, vector<32x96xf32>
    %cst_15 = arith.constant dense<0.000000e+00> : vector<8x96xf32>
    %28 = tpu.matmul %26, %27, %cst_15 {dimension_numbers = #tpu.dot_dimension_numbers<[1], [0], [0], [1], [0, 0, 1, 1], [], []>} : vector<8x32xf32>, vector<32x96xf32>, vector<8x96xf32> -> vector<8x96xf32>
    %c0_16 = arith.constant 0 : index
    %c0_17 = arith.constant 0 : index
    %29 = vector.load %arg8[%c0_16, %c0_17] : memref<1x96xf32, #tpu.memory_space<vmem>>, vector<1x96xf32>
    %30 = vector.broadcast %29 : vector<1x96xf32> to vector<8x96xf32>
    %31 = arith.addf %28, %30 : vector<8x96xf32>
    %32 = vector.extract_strided_slice %31 {offsets = [0, 0], sizes = [8, 32], strides = [1, 1]} : vector<8x96xf32> to vector<8x32xf32>
    %33 = vector.shape_cast %32 : vector<8x32xf32> to vector<8x4x8xf32>
    %34 = tpu.transpose %33, [1, 0, 2] : vector<8x4x8xf32> -> vector<4x8x8xf32>
    %cst_18 = arith.constant 0.353553385 : f32
    %35 = vector.broadcast %cst_18 : f32 to vector<4x8x8xf32>
    %36 = arith.mulf %34, %35 : vector<4x8x8xf32>
    %37 = vector.extract_strided_slice %31 {offsets = [0, 32], sizes = [8, 32], strides = [1, 1]} : vector<8x96xf32> to vector<8x32xf32>
    %38 = vector.shape_cast %37 : vector<8x32xf32> to vector<8x4x8xf32>
    %39 = tpu.transpose %38, [1, 0, 2] : vector<8x4x8xf32> -> vector<4x8x8xf32>
    %40 = vector.extract_strided_slice %31 {offsets = [0, 64], sizes = [8, 32], strides = [1, 1]} : vector<8x96xf32> to vector<8x32xf32>
    %41 = vector.shape_cast %40 : vector<8x32xf32> to vector<8x4x8xf32>
    %42 = tpu.transpose %41, [1, 0, 2] : vector<8x4x8xf32> -> vector<4x8x8xf32>
    "tpu.trace_start"() <{level = 10 : i32, message = "hqd,hkd->hqk"}> : () -> ()
    %cst_19 = arith.constant dense<0.000000e+00> : vector<4x8x8xf32>
    %43 = tpu.matmul %36, %39, %cst_19 {dimension_numbers = #tpu.dot_dimension_numbers<[2], [2], [1], [1], [0, 0, 0, 1, 1, 1], [0], [0]>} : vector<4x8x8xf32>, vector<4x8x8xf32>, vector<4x8x8xf32> -> vector<4x8x8xf32>
    "tpu.trace_stop"() : () -> ()
    %c0_20 = arith.constant 0 : index
    %c0_21 = arith.constant 0 : index
    %c0_22 = arith.constant 0 : index
    %44 = vector.load %arg4[%c0_20, %c0_21, %c0_22] : memref<1x8x8xf32, #tpu.memory_space<vmem>>, vector<1x8x8xf32>
    %45 = vector.shape_cast %44 : vector<1x8x8xf32> to vector<8x8xf32>
    %46 = vector.shape_cast %45 : vector<8x8xf32> to vector<1x8x8xf32>
    %cst_23 = arith.constant 0.000000e+00 : f32
    %47 = vector.broadcast %cst_23 : f32 to vector<1x8x8xf32>
    %48 = arith.cmpf ogt, %46, %47 : vector<1x8x8xf32>
    %cst_24 = arith.constant -1.000000e+09 : f32
    %49 = vector.shape_cast %48 : vector<1x8x8xi1> to vector<1x8x8xi1>
    %50 = vector.broadcast %49 : vector<1x8x8xi1> to vector<4x8x8xi1>
    %51 = vector.broadcast %cst_24 : f32 to vector<4x8x8xf32>
    %52 = arith.select %50, %43, %51 : vector<4x8x8xi1>, vector<4x8x8xf32>
    %cst_25 = arith.constant dense<0xFF800000> : vector<4x8xf32>
    %53 = vector.multi_reduction <maximumf>, %52, %cst_25 [2] : vector<4x8x8xf32> to vector<4x8xf32>
    %54 = vector.shape_cast %53 : vector<4x8xf32> to vector<4x8x1xf32>
    %55 = vector.broadcast %54 : vector<4x8x1xf32> to vector<4x8x8xf32>
    %56 = arith.subf %52, %55 : vector<4x8x8xf32>
    %57 = math.exp %56 : vector<4x8x8xf32>
    %cst_26 = arith.constant dense<0.000000e+00> : vector<4x8xf32>
    %58 = vector.multi_reduction <add>, %57, %cst_26 [2] : vector<4x8x8xf32> to vector<4x8xf32>
    %59 = vector.shape_cast %58 : vector<4x8xf32> to vector<4x8x1xf32>
    %60 = tpu.reciprocal %59 {approx = true} : vector<4x8x1xf32> -> vector<4x8x1xf32>
    %61 = vector.broadcast %60 : vector<4x8x1xf32> to vector<4x8x8xf32>
    %62 = arith.mulf %57, %61 : vector<4x8x8xf32>
    "tpu.trace_start"() <{level = 10 : i32, message = "hqk,hkd->hqd"}> : () -> ()
    %cst_27 = arith.constant dense<0.000000e+00> : vector<4x8x8xf32>
    %63 = tpu.matmul %62, %42, %cst_27 {dimension_numbers = #tpu.dot_dimension_numbers<[2], [1], [1], [2], [0, 0, 0, 1, 1, 2], [0], [0]>} : vector<4x8x8xf32>, vector<4x8x8xf32>, vector<4x8x8xf32> -> vector<4x8x8xf32>
    "tpu.trace_stop"() : () -> ()
    %64 = tpu.transpose %63, [1, 0, 2] : vector<4x8x8xf32> -> vector<8x4x8xf32>
    %65 = vector.shape_cast %64 : vector<8x4x8xf32> to vector<8x32xf32>
    %c0_28 = arith.constant 0 : index
    %c0_29 = arith.constant 0 : index
    %66 = vector.load %arg9[%c0_28, %c0_29] : memref<32x32xf32, #tpu.memory_space<vmem>>, vector<32x32xf32>
    %cst_30 = arith.constant dense<0.000000e+00> : vector<8x32xf32>
    %67 = tpu.matmul %65, %66, %cst_30 {dimension_numbers = #tpu.dot_dimension_numbers<[1], [0], [0], [1], [0, 0, 1, 1], [], []>} : vector<8x32xf32>, vector<32x32xf32>, vector<8x32xf32> -> vector<8x32xf32>
    %68 = arith.addf %1, %67 : vector<8x32xf32>
    %c0_31 = arith.constant 0 : index
    %c0_32 = arith.constant 0 : index
    %69 = vector.load %arg10[%c0_31, %c0_32] : memref<1x32xf32, #tpu.memory_space<vmem>>, vector<1x32xf32>
    %70 = vector.broadcast %69 : vector<1x32xf32> to vector<8x32xf32>
    %71 = arith.addf %68, %70 : vector<8x32xf32>
    %cst_33 = arith.constant dense<0.000000e+00> : vector<8xf32>
    %72 = vector.multi_reduction <add>, %71, %cst_33 [1] : vector<8x32xf32> to vector<8xf32>
    %73 = vector.shape_cast %72 : vector<8xf32> to vector<8x1xf32>
    %cst_34 = arith.constant 3.200000e+01 : f32
    %74 = vector.broadcast %cst_34 : f32 to vector<8x1xf32>
    %75 = arith.divf %73, %74 : vector<8x1xf32>
    %76 = vector.broadcast %75 : vector<8x1xf32> to vector<8x32xf32>
    %77 = arith.subf %71, %76 : vector<8x32xf32>
    %78 = arith.mulf %77, %77 : vector<8x32xf32>
    %cst_35 = arith.constant dense<0.000000e+00> : vector<8xf32>
    %79 = vector.multi_reduction <add>, %78, %cst_35 [1] : vector<8x32xf32> to vector<8xf32>
    %80 = vector.shape_cast %79 : vector<8xf32> to vector<8x1xf32>
    %cst_36 = arith.constant 0.0322580636 : f32
    %81 = vector.broadcast %cst_36 : f32 to vector<8x1xf32>
    %82 = arith.mulf %80, %81 : vector<8x1xf32>
    %83 = math.sqrt %82 : vector<8x1xf32>
    %cst_37 = arith.constant 9.99999997E-7 : f32
    %84 = vector.broadcast %cst_37 : f32 to vector<8x1xf32>
    %85 = arith.addf %83, %84 : vector<8x1xf32>
    %86 = tpu.reciprocal %85 {approx = true} : vector<8x1xf32> -> vector<8x1xf32>
    %c0_38 = arith.constant 0 : index
    %c0_39 = arith.constant 0 : index
    %87 = vector.load %arg11[%c0_38, %c0_39] : memref<1x32xf32, #tpu.memory_space<vmem>>, vector<1x32xf32>
    %88 = vector.broadcast %87 : vector<1x32xf32> to vector<8x32xf32>
    %89 = arith.mulf %88, %77 : vector<8x32xf32>
    %90 = vector.broadcast %86 : vector<8x1xf32> to vector<8x32xf32>
    %91 = arith.mulf %89, %90 : vector<8x32xf32>
    %c0_40 = arith.constant 0 : index
    %c0_41 = arith.constant 0 : index
    %92 = vector.load %arg12[%c0_40, %c0_41] : memref<1x32xf32, #tpu.memory_space<vmem>>, vector<1x32xf32>
    %93 = vector.broadcast %92 : vector<1x32xf32> to vector<8x32xf32>
    %94 = arith.addf %91, %93 : vector<8x32xf32>
    %c0_42 = arith.constant 0 : index
    %c0_43 = arith.constant 0 : index
    %95 = vector.load %arg13[%c0_42, %c0_43] : memref<32x32xf32, #tpu.memory_space<vmem>>, vector<32x32xf32>
    %cst_44 = arith.constant dense<0.000000e+00> : vector<8x32xf32>
    %96 = tpu.matmul %94, %95, %cst_44 {dimension_numbers = #tpu.dot_dimension_numbers<[1], [0], [0], [1], [0, 0, 1, 1], [], []>} : vector<8x32xf32>, vector<32x32xf32>, vector<8x32xf32> -> vector<8x32xf32>
    %c0_45 = arith.constant 0 : index
    %c0_46 = arith.constant 0 : index
    %97 = vector.load %arg14[%c0_45, %c0_46] : memref<1x32xf32, #tpu.memory_space<vmem>>, vector<1x32xf32>
    %98 = vector.broadcast %97 : vector<1x32xf32> to vector<8x32xf32>
    %99 = arith.addf %96, %98 : vector<8x32xf32>
    %100 = vector.shape_cast %99 : vector<8x32xf32> to vector<8x4x8xf32>
    %101 = tpu.transpose %100, [1, 0, 2] : vector<8x4x8xf32> -> vector<4x8x8xf32>
    %cst_47 = arith.constant 0.353553385 : f32
    %102 = vector.broadcast %cst_47 : f32 to vector<4x8x8xf32>
    %103 = arith.mulf %101, %102 : vector<4x8x8xf32>
    %c0_48 = arith.constant 0 : index
    %c0_49 = arith.constant 0 : index
    %104 = vector.load %arg15[%c0_48, %c0_49] : memref<32x64xf32, #tpu.memory_space<vmem>>, vector<32x64xf32>
    %cst_50 = arith.constant dense<0.000000e+00> : vector<8x64xf32>
    %105 = tpu.matmul %3, %104, %cst_50 {dimension_numbers = #tpu.dot_dimension_numbers<[1], [0], [0], [1], [0, 0, 1, 1], [], []>} : vector<8x32xf32>, vector<32x64xf32>, vector<8x64xf32> -> vector<8x64xf32>
    %c0_51 = arith.constant 0 : index
    %c0_52 = arith.constant 0 : index
    %106 = vector.load %arg16[%c0_51, %c0_52] : memref<1x64xf32, #tpu.memory_space<vmem>>, vector<1x64xf32>
    %107 = vector.broadcast %106 : vector<1x64xf32> to vector<8x64xf32>
    %108 = arith.addf %105, %107 : vector<8x64xf32>
    %109 = vector.extract_strided_slice %108 {offsets = [0, 0], sizes = [8, 32], strides = [1, 1]} : vector<8x64xf32> to vector<8x32xf32>
    %110 = vector.shape_cast %109 : vector<8x32xf32> to vector<8x4x8xf32>
    %111 = tpu.transpose %110, [1, 0, 2] : vector<8x4x8xf32> -> vector<4x8x8xf32>
    %112 = vector.extract_strided_slice %108 {offsets = [0, 32], sizes = [8, 32], strides = [1, 1]} : vector<8x64xf32> to vector<8x32xf32>
    %113 = vector.shape_cast %112 : vector<8x32xf32> to vector<8x4x8xf32>
    %114 = tpu.transpose %113, [1, 0, 2] : vector<8x4x8xf32> -> vector<4x8x8xf32>
    "tpu.trace_start"() <{level = 10 : i32, message = "hqd,hkd->hqk"}> : () -> ()
    %cst_53 = arith.constant dense<0.000000e+00> : vector<4x8x8xf32>
    %115 = tpu.matmul %103, %111, %cst_53 {dimension_numbers = #tpu.dot_dimension_numbers<[2], [2], [1], [1], [0, 0, 0, 1, 1, 1], [0], [0]>} : vector<4x8x8xf32>, vector<4x8x8xf32>, vector<4x8x8xf32> -> vector<4x8x8xf32>
    "tpu.trace_stop"() : () -> ()
    %c0_54 = arith.constant 0 : index
    %c0_55 = arith.constant 0 : index
    %c0_56 = arith.constant 0 : index
    %116 = vector.load %arg3[%c0_54, %c0_55, %c0_56] : memref<1x1x8xf32, #tpu.memory_space<vmem>>, vector<1x1x8xf32>
    %117 = vector.shape_cast %116 : vector<1x1x8xf32> to vector<1x8xf32>
    %118 = vector.shape_cast %117 : vector<1x8xf32> to vector<1x1x8xf32>
    %cst_57 = arith.constant 0.000000e+00 : f32
    %119 = vector.broadcast %cst_57 : f32 to vector<1x1x8xf32>
    %120 = arith.cmpf ogt, %118, %119 : vector<1x1x8xf32>
    %cst_58 = arith.constant -1.000000e+09 : f32
    %121 = vector.shape_cast %120 : vector<1x1x8xi1> to vector<1x1x8xi1>
    %122 = vector.broadcast %121 : vector<1x1x8xi1> to vector<4x8x8xi1>
    %123 = vector.broadcast %cst_58 : f32 to vector<4x8x8xf32>
    %124 = arith.select %122, %115, %123 : vector<4x8x8xi1>, vector<4x8x8xf32>
    %cst_59 = arith.constant dense<0xFF800000> : vector<4x8xf32>
    %125 = vector.multi_reduction <maximumf>, %124, %cst_59 [2] : vector<4x8x8xf32> to vector<4x8xf32>
    %126 = vector.shape_cast %125 : vector<4x8xf32> to vector<4x8x1xf32>
    %127 = vector.broadcast %126 : vector<4x8x1xf32> to vector<4x8x8xf32>
    %128 = arith.subf %124, %127 : vector<4x8x8xf32>
    %129 = math.exp %128 : vector<4x8x8xf32>
    %cst_60 = arith.constant dense<0.000000e+00> : vector<4x8xf32>
    %130 = vector.multi_reduction <add>, %129, %cst_60 [2] : vector<4x8x8xf32> to vector<4x8xf32>
    %131 = vector.shape_cast %130 : vector<4x8xf32> to vector<4x8x1xf32>
    %132 = tpu.reciprocal %131 {approx = true} : vector<4x8x1xf32> -> vector<4x8x1xf32>
    %133 = vector.broadcast %132 : vector<4x8x1xf32> to vector<4x8x8xf32>
    %134 = arith.mulf %129, %133 : vector<4x8x8xf32>
    "tpu.trace_start"() <{level = 10 : i32, message = "hqk,hkd->hqd"}> : () -> ()
    %cst_61 = arith.constant dense<0.000000e+00> : vector<4x8x8xf32>
    %135 = tpu.matmul %134, %114, %cst_61 {dimension_numbers = #tpu.dot_dimension_numbers<[2], [1], [1], [2], [0, 0, 0, 1, 1, 2], [0], [0]>} : vector<4x8x8xf32>, vector<4x8x8xf32>, vector<4x8x8xf32> -> vector<4x8x8xf32>
    "tpu.trace_stop"() : () -> ()
    %136 = tpu.transpose %135, [1, 0, 2] : vector<4x8x8xf32> -> vector<8x4x8xf32>
    %137 = vector.shape_cast %136 : vector<8x4x8xf32> to vector<8x32xf32>
    %c0_62 = arith.constant 0 : index
    %c0_63 = arith.constant 0 : index
    %138 = vector.load %arg17[%c0_62, %c0_63] : memref<32x32xf32, #tpu.memory_space<vmem>>, vector<32x32xf32>
    %cst_64 = arith.constant dense<0.000000e+00> : vector<8x32xf32>
    %139 = tpu.matmul %137, %138, %cst_64 {dimension_numbers = #tpu.dot_dimension_numbers<[1], [0], [0], [1], [0, 0, 1, 1], [], []>} : vector<8x32xf32>, vector<32x32xf32>, vector<8x32xf32> -> vector<8x32xf32>
    %140 = arith.addf %71, %139 : vector<8x32xf32>
    %c0_65 = arith.constant 0 : index
    %c0_66 = arith.constant 0 : index
    %141 = vector.load %arg18[%c0_65, %c0_66] : memref<1x32xf32, #tpu.memory_space<vmem>>, vector<1x32xf32>
    %142 = vector.broadcast %141 : vector<1x32xf32> to vector<8x32xf32>
    %143 = arith.addf %140, %142 : vector<8x32xf32>
    %cst_67 = arith.constant dense<0.000000e+00> : vector<8xf32>
    %144 = vector.multi_reduction <add>, %143, %cst_67 [1] : vector<8x32xf32> to vector<8xf32>
    %145 = vector.shape_cast %144 : vector<8xf32> to vector<8x1xf32>
    %cst_68 = arith.constant 3.200000e+01 : f32
    %146 = vector.broadcast %cst_68 : f32 to vector<8x1xf32>
    %147 = arith.divf %145, %146 : vector<8x1xf32>
    %148 = vector.broadcast %147 : vector<8x1xf32> to vector<8x32xf32>
    %149 = arith.subf %143, %148 : vector<8x32xf32>
    %150 = arith.mulf %149, %149 : vector<8x32xf32>
    %cst_69 = arith.constant dense<0.000000e+00> : vector<8xf32>
    %151 = vector.multi_reduction <add>, %150, %cst_69 [1] : vector<8x32xf32> to vector<8xf32>
    %152 = vector.shape_cast %151 : vector<8xf32> to vector<8x1xf32>
    %cst_70 = arith.constant 0.0322580636 : f32
    %153 = vector.broadcast %cst_70 : f32 to vector<8x1xf32>
    %154 = arith.mulf %152, %153 : vector<8x1xf32>
    %155 = math.sqrt %154 : vector<8x1xf32>
    %cst_71 = arith.constant 9.99999997E-7 : f32
    %156 = vector.broadcast %cst_71 : f32 to vector<8x1xf32>
    %157 = arith.addf %155, %156 : vector<8x1xf32>
    %158 = tpu.reciprocal %157 {approx = true} : vector<8x1xf32> -> vector<8x1xf32>
    %c0_72 = arith.constant 0 : index
    %c0_73 = arith.constant 0 : index
    %159 = vector.load %arg19[%c0_72, %c0_73] : memref<1x32xf32, #tpu.memory_space<vmem>>, vector<1x32xf32>
    %160 = vector.broadcast %159 : vector<1x32xf32> to vector<8x32xf32>
    %161 = arith.mulf %160, %149 : vector<8x32xf32>
    %162 = vector.broadcast %158 : vector<8x1xf32> to vector<8x32xf32>
    %163 = arith.mulf %161, %162 : vector<8x32xf32>
    %c0_74 = arith.constant 0 : index
    %c0_75 = arith.constant 0 : index
    %164 = vector.load %arg20[%c0_74, %c0_75] : memref<1x32xf32, #tpu.memory_space<vmem>>, vector<1x32xf32>
    %165 = vector.broadcast %164 : vector<1x32xf32> to vector<8x32xf32>
    %166 = arith.addf %163, %165 : vector<8x32xf32>
    %c0_76 = arith.constant 0 : index
    %c0_77 = arith.constant 0 : index
    %167 = vector.load %arg21[%c0_76, %c0_77] : memref<32x64xf32, #tpu.memory_space<vmem>>, vector<32x64xf32>
    %cst_78 = arith.constant dense<0.000000e+00> : vector<8x64xf32>
    %168 = tpu.matmul %166, %167, %cst_78 {dimension_numbers = #tpu.dot_dimension_numbers<[1], [0], [0], [1], [0, 0, 1, 1], [], []>} : vector<8x32xf32>, vector<32x64xf32>, vector<8x64xf32> -> vector<8x64xf32>
    %c0_79 = arith.constant 0 : index
    %c0_80 = arith.constant 0 : index
    %169 = vector.load %arg22[%c0_79, %c0_80] : memref<1x64xf32, #tpu.memory_space<vmem>>, vector<1x64xf32>
    %170 = vector.broadcast %169 : vector<1x64xf32> to vector<8x64xf32>
    %171 = arith.addf %168, %170 : vector<8x64xf32>
    %cst_81 = arith.constant 0.000000e+00 : f32
    %172 = vector.broadcast %cst_81 : f32 to vector<8x64xf32>
    %173 = arith.maximumf %171, %172 : vector<8x64xf32>
    %c0_82 = arith.constant 0 : index
    %c0_83 = arith.constant 0 : index
    %174 = vector.load %arg23[%c0_82, %c0_83] : memref<64x32xf32, #tpu.memory_space<vmem>>, vector<64x32xf32>
    %cst_84 = arith.constant dense<0.000000e+00> : vector<8x32xf32>
    %175 = tpu.matmul %173, %174, %cst_84 {dimension_numbers = #tpu.dot_dimension_numbers<[1], [0], [0], [1], [0, 0, 1, 1], [], []>} : vector<8x64xf32>, vector<64x32xf32>, vector<8x32xf32> -> vector<8x32xf32>
    %176 = arith.addf %143, %175 : vector<8x32xf32>
    %c0_85 = arith.constant 0 : index
    %c0_86 = arith.constant 0 : index
    %177 = vector.load %arg24[%c0_85, %c0_86] : memref<1x32xf32, #tpu.memory_space<vmem>>, vector<1x32xf32>
    %178 = vector.broadcast %177 : vector<1x32xf32> to vector<8x32xf32>
    %179 = arith.addf %176, %178 : vector<8x32xf32>
    %c0_87 = arith.constant 0 : index
    %c0_88 = arith.constant 0 : index
    %c0_89 = arith.constant 0 : index
    %180 = vector.load %arg25[%c0_87, %c0_88, %c0_89] : memref<1x8x32xf32, #tpu.memory_space<vmem>>, vector<1x8x32xf32>
    %181 = vector.shape_cast %180 : vector<1x8x32xf32> to vector<8x32xf32>
    %182 = vector.shape_cast %179 : vector<8x32xf32> to vector<1x8x32xf32>
    tpu.vector_store %arg25[%c0_87, %c0_88, %c0_89], %182 {strides = array<i32>} : memref<1x8x32xf32, #tpu.memory_space<vmem>>, vector<1x8x32xf32>,
    return
  }
  func.func @transform_0(%arg0: i32) -> (i32, i32, i32) {
    %c0_i32 = arith.constant 0 : i32
    %c0_i32_0 = arith.constant 0 : i32
    %c0_i32_1 = arith.constant 0 : i32
    return %arg0, %c0_i32, %c0_i32_0 : i32, i32, i32
  }
  func.func @transform_1(%arg0: i32) -> (i32, i32, i32) {
    %c0_i32 = arith.constant 0 : i32
    %c0_i32_0 = arith.constant 0 : i32
    %c0_i32_1 = arith.constant 0 : i32
    return %arg0, %c0_i32, %c0_i32_0 : i32, i32, i32
  }
  func.func @transform_2(%arg0: i32) -> (i32, i32, i32) {
    %c0_i32 = arith.constant 0 : i32
    %c0_i32_0 = arith.constant 0 : i32
    %c0_i32_1 = arith.constant 0 : i32
    return %arg0, %c0_i32, %c0_i32_0 : i32, i32, i32
  }
  func.func @transform_3(%arg0: i32) -> (i32, i32, i32) {
    %c0_i32 = arith.constant 0 : i32
    %c0_i32_0 = arith.constant 0 : i32
    %c0_i32_1 = arith.constant 0 : i32
    return %arg0, %c0_i32, %c0_i32_0 : i32, i32, i32
  }
  func.func @transform_4(%arg0: i32) -> (i32, i32) {
    %c0_i32 = arith.constant 0 : i32
    %c0_i32_0 = arith.constant 0 : i32
    %c0_i32_1 = arith.constant 0 : i32
    return %c0_i32, %c0_i32_0 : i32, i32
  }
  func.func @transform_5(%arg0: i32) -> (i32, i32) {
    %c0_i32 = arith.constant 0 : i32
    %c0_i32_0 = arith.constant 0 : i32
    %c0_i32_1 = arith.constant 0 : i32
    return %c0_i32, %c0_i32_0 : i32, i32
  }
  func.func @transform_6(%arg0: i32) -> (i32, i32) {
    %c0_i32 = arith.constant 0 : i32
    %c0_i32_0 = arith.constant 0 : i32
    %c0_i32_1 = arith.constant 0 : i32
    return %c0_i32, %c0_i32_0 : i32, i32
  }
  func.func @transform_7(%arg0: i32) -> (i32, i32) {
    %c0_i32 = arith.constant 0 : i32
    %c0_i32_0 = arith.constant 0 : i32
    %c0_i32_1 = arith.constant 0 : i32
    return %c0_i32, %c0_i32_0 : i32, i32
  }
  func.func @transform_8(%arg0: i32) -> (i32, i32) {
    %c0_i32 = arith.constant 0 : i32
    %c0_i32_0 = arith.constant 0 : i32
    %c0_i32_1 = arith.constant 0 : i32
    return %c0_i32, %c0_i32_0 : i32, i32
  }
  func.func @transform_9(%arg0: i32) -> (i32, i32) {
    %c0_i32 = arith.constant 0 : i32
    %c0_i32_0 = arith.constant 0 : i32
    %c0_i32_1 = arith.constant 0 : i32
    return %c0_i32, %c0_i32_0 : i32, i32
  }
  func.func @transform_10(%arg0: i32) -> (i32, i32) {
    %c0_i32 = arith.constant 0 : i32
    %c0_i32_0 = arith.constant 0 : i32
    %c0_i32_1 = arith.constant 0 : i32
    return %c0_i32, %c0_i32_0 : i32, i32
  }
  func.func @transform_11(%arg0: i32) -> (i32, i32) {
    %c0_i32 = arith.constant 0 : i32
    %c0_i32_0 = arith.constant 0 : i32
    %c0_i32_1 = arith.constant 0 : i32
    return %c0_i32, %c0_i32_0 : i32, i32
  }
  func.func @transform_12(%arg0: i32) -> (i32, i32) {
    %c0_i32 = arith.constant 0 : i32
    %c0_i32_0 = arith.constant 0 : i32
    %c0_i32_1 = arith.constant 0 : i32
    return %c0_i32, %c0_i32_0 : i32, i32
  }
  func.func @transform_13(%arg0: i32) -> (i32, i32) {
    %c0_i32 = arith.constant 0 : i32
    %c0_i32_0 = arith.constant 0 : i32
    %c0_i32_1 = arith.constant 0 : i32
    return %c0_i32, %c0_i32_0 : i32, i32
  }
  func.func @transform_14(%arg0: i32) -> (i32, i32) {
    %c0_i32 = arith.constant 0 : i32
    %c0_i32_0 = arith.constant 0 : i32
    %c0_i32_1 = arith.constant 0 : i32
    return %c0_i32, %c0_i32_0 : i32, i32
  }
  func.func @transform_15(%arg0: i32) -> (i32, i32) {
    %c0_i32 = arith.constant 0 : i32
    %c0_i32_0 = arith.constant 0 : i32
    %c0_i32_1 = arith.constant 0 : i32
    return %c0_i32, %c0_i32_0 : i32, i32
  }
  func.func @transform_16(%arg0: i32) -> (i32, i32) {
    %c0_i32 = arith.constant 0 : i32
    %c0_i32_0 = arith.constant 0 : i32
    %c0_i32_1 = arith.constant 0 : i32
    return %c0_i32, %c0_i32_0 : i32, i32
  }
  func.func @transform_17(%arg0: i32) -> (i32, i32) {
    %c0_i32 = arith.constant 0 : i32
    %c0_i32_0 = arith.constant 0 : i32
    %c0_i32_1 = arith.constant 0 : i32
    return %c0_i32, %c0_i32_0 : i32, i32
  }
  func.func @transform_18(%arg0: i32) -> (i32, i32) {
    %c0_i32 = arith.constant 0 : i32
    %c0_i32_0 = arith.constant 0 : i32
    %c0_i32_1 = arith.constant 0 : i32
    return %c0_i32, %c0_i32_0 : i32, i32
  }
  func.func @transform_19(%arg0: i32) -> (i32, i32) {
    %c0_i32 = arith.constant 0 : i32
    %c0_i32_0 = arith.constant 0 : i32
    %c0_i32_1 = arith.constant 0 : i32
    return %c0_i32, %c0_i32_0 : i32, i32
  }
  func.func @transform_20(%arg0: i32) -> (i32, i32) {
    %c0_i32 = arith.constant 0 : i32
    %c0_i32_0 = arith.constant 0 : i32
    %c0_i32_1 = arith.constant 0 : i32
    return %c0_i32, %c0_i32_0 : i32, i32
  }
  func.func @transform_21(%arg0: i32) -> (i32, i32) {
    %c0_i32 = arith.constant 0 : i32
    %c0_i32_0 = arith.constant 0 : i32
    %c0_i32_1 = arith.constant 0 : i32
    return %c0_i32, %c0_i32_0 : i32, i32
  }
  func.func @transform_22(%arg0: i32) -> (i32, i32) {
    %c0_i32 = arith.constant 0 : i32
    %c0_i32_0 = arith.constant 0 : i32
    %c0_i32_1 = arith.constant 0 : i32
    return %c0_i32, %c0_i32_0 : i32, i32
  }
  func.func @transform_23(%arg0: i32) -> (i32, i32) {
    %c0_i32 = arith.constant 0 : i32
    %c0_i32_0 = arith.constant 0 : i32
    %c0_i32_1 = arith.constant 0 : i32
    return %c0_i32, %c0_i32_0 : i32, i32
  }
  func.func @transform_24(%arg0: i32) -> (i32, i32, i32) {
    %c0_i32 = arith.constant 0 : i32
    %c0_i32_0 = arith.constant 0 : i32
    %c0_i32_1 = arith.constant 0 : i32
    return %arg0, %c0_i32, %c0_i32_0 : i32, i32, i32
  }
}

</mosaic_0001>

<llo_original>
// kernel: tpu_custom_call.1
$region0: #{tpu_custom_call.1}
  #allocation0 [shape = 'u32[]', space=smem, size = 0x4, offset = 0x4, fixed_abs, tag = 'smem constant byte address 0x4 - core index']
  #allocation1 [shape = 'u32[144,128]{1,0:T(1,128)}', space=vmem, size = 0x12000, scoped, tag = 'internal scratch']
  %s0 = inlined_call_operand.hbm [shape: f32[2,8,32], index: 0, kind: input, shape index: {}]
  %s1 = inlined_call_operand.hbm [shape: f32[2,8,32], index: 1, kind: input, shape index: {}]
  %s2 = inlined_call_operand.hbm [shape: f32[2,1,8], index: 2, kind: input, shape index: {}]
  %s3 = inlined_call_operand.hbm [shape: f32[2,8,8], index: 3, kind: input, shape index: {}]
  %s4 = inlined_call_operand.hbm [shape: f32[1,32], index: 4, kind: input, shape index: {}]
  %s5 = inlined_call_operand.hbm [shape: f32[1,32], index: 5, kind: input, shape index: {}]
  %s6 = inlined_call_operand.vmem [shape: f32[32,96], index: 6, kind: input, shape index: {}]
  %s7 = inlined_call_operand.hbm [shape: f32[1,96], index: 7, kind: input, shape index: {}]
  %s8 = inlined_call_operand.vmem [shape: f32[32,32], index: 8, kind: input, shape index: {}]
  %s9 = inlined_call_operand.hbm [shape: f32[1,32], index: 9, kind: input, shape index: {}]
  %s10 = inlined_call_operand.hbm [shape: f32[1,32], index: 10, kind: input, shape index: {}]
  %s11 = inlined_call_operand.hbm [shape: f32[1,32], index: 11, kind: input, shape index: {}]
  %s12 = inlined_call_operand.vmem [shape: f32[32,32], index: 12, kind: input, shape index: {}]
  %s13 = inlined_call_operand.hbm [shape: f32[1,32], index: 13, kind: input, shape index: {}]
  %s14 = inlined_call_operand.vmem [shape: f32[32,64], index: 14, kind: input, shape index: {}]
  %s15 = inlined_call_operand.hbm [shape: f32[1,64], index: 15, kind: input, shape index: {}]
  %s16 = inlined_call_operand.hbm [shape: f32[32,32], index: 16, kind: input, shape index: {}]
  %s17 = inlined_call_operand.hbm [shape: f32[1,32], index: 17, kind: input, shape index: {}]
  %s18 = inlined_call_operand.vmem [shape: f32[1,32], index: 18, kind: input, shape index: {}]
  %s19 = inlined_call_operand.vmem [shape: f32[1,32], index: 19, kind: input, shape index: {}]
  %s20 = inlined_call_operand.hbm [shape: f32[32,64], index: 20, kind: input, shape index: {}]
  %s21 = inlined_call_operand.vmem [shape: f32[1,64], index: 21, kind: input, shape index: {}]
  %s22 = inlined_call_operand.vmem [shape: f32[64,32], index: 22, kind: input, shape index: {}]
  %s23 = inlined_call_operand.vmem [shape: f32[1,32], index: 23, kind: input, shape index: {}]
  %s24 = inlined_call_operand.hbm [shape: f32[2,8,32], index: 24, kind: output, shape index: {}]
  %s25 = sld [smem:[#allocation0]]
  $region189: #{tpu_custom_call.1} parent=0
    _
  %s27 = ssub.s32 1, %s25
  %s28 = scalar_select 0, %s27, %s25
  $region1: #{tpu_custom_call.1} parent=0
    #allocation2 [shape = 'u8[8192]{0}', space=vmem, size = 0x2000, scoped, tag = 'input window, operand 0']
    #allocation3 [shape = 's32[2]{0}', space=sflag, size = 0x8, scoped, tag = 'scoped memory for tpu_custom_call.1']
    #allocation4 [shape = 's32[2]{0}', space=sflag, size = 0x8, scoped, tag = 'scoped memory for tpu_custom_call.1']
    #allocation5 [shape = 'u8[8192]{0}', space=vmem, size = 0x2000, scoped, tag = 'input window, operand 1']
    #allocation6 [shape = 's32[2]{0}', space=sflag, size = 0x8, scoped, tag = 'scoped memory for tpu_custom_call.1']
    #allocation7 [shape = 'u8[1024]{0}', space=vmem, size = 0x400, scoped, tag = 'input window, operand 2']
    #allocation8 [shape = 'u8[8192]{0}', space=vmem, size = 0x2000, scoped, tag = 'input window, operand 3']
    #allocation9 [shape = 's32[2]{0}', space=sflag, size = 0x8, scoped, tag = 'scoped memory for tpu_custom_call.1']
    #allocation10 [shape = 'u8[512]{0}', space=vmem, size = 0x400, scoped, tag = 'input window, operand 4, single buffered']
    #allocation11 [shape = 'u8[512]{0}', space=vmem, size = 0x400, scoped, tag = 'input window, operand 5, single buffered']
    #allocation12 [shape = 's32[1]{0}', space=sflag, size = 0x4, scoped, tag = 'scoped memory for tpu_custom_call.1']
    #allocation13 [shape = 'u8[512]{0}', space=vmem, size = 0x400, scoped, tag = 'input window, operand 7, single buffered']
    #allocation14 [shape = 'u8[512]{0}', space=vmem, size = 0x400, scoped, tag = 'input window, operand 9, single buffered']
    #allocation15 [shape = 's32[1]{0}', space=sflag, size = 0x4, scoped, tag = 'scoped memory for tpu_custom_call.1']
    #allocation16 [shape = 'u8[512]{0}', space=vmem, size = 0x400, scoped, tag = 'input window, operand 10, single buffered']
    #allocation17 [shape = 'u8[512]{0}', space=vmem, size = 0x400, scoped, tag = 'input window, operand 11, single buffered']
    #allocation18 [shape = 's32[1]{0}', space=sflag, size = 0x4, scoped, tag = 'scoped memory for tpu_custom_call.1']
    #allocation19 [shape = 'u8[512]{0}', space=vmem, size = 0x400, scoped, tag = 'input window, operand 13, single buffered']
    #allocation20 [shape = 'u8[512]{0}', space=vmem, size = 0x400, scoped, tag = 'input window, operand 15, single buffered']
    #allocation21 [shape = 's32[1]{0}', space=sflag, size = 0x4, scoped, tag = 'scoped memory for tpu_custom_call.1']
    #allocation22 [shape = 'u8[16384]{0}', space=vmem, size = 0x4000, scoped, tag = 'input window, operand 16, single buffered']
    #allocation23 [shape = 'u8[512]{0}', space=vmem, size = 0x400, scoped, tag = 'input window, operand 17, single buffered']
    #allocation24 [shape = 's32[1]{0}', space=sflag, size = 0x4, scoped, tag = 'scoped memory for tpu_custom_call.1']
    #allocation25 [shape = 'u8[16384]{0}', space=vmem, size = 0x4000, scoped, tag = 'input window, operand 20, single buffered']
    #allocation26 [shape = 'u8[8192]{0}', space=vmem, size = 0x2000, scoped, tag = 'output window, operand 0']
    %29 = vsyncpa [#allocation3], 0
    %s30 = scalar_lea.sflag [#allocation3], 1
    %31 = vsyncpa %s30, 0
    %32 = vsyncpa [#allocation6], 0
    %s33 = scalar_lea.sflag [#allocation6], 1
    %34 = vsyncpa %s33, 0
    %35 = vsyncpa [#allocation9], 0
    %s36 = scalar_lea.sflag [#allocation9], 1
    %37 = vsyncpa %s36, 0
    %38 = vsyncpa [#allocation12], 0
    %39 = vsyncpa [#allocation15], 0
    %40 = vsyncpa [#allocation18], 0
    %41 = vsyncpa [#allocation21], 0
    %42 = vsyncpa [#allocation24], 0
    %43 = vsyncpa [#allocation4], 0
    %s44 = scalar_lea.sflag [#allocation4], 1
    %45 = vsyncpa %s44, 0
    loop: start=0, step=1, limit=4
    $region2: #{tpu_custom_call.1} parent=1 // loop_pre_header
      _
    $region3: #{tpu_custom_call.1} parent=1 // loop_header
      %s47 = sphi 0, %s51
      %p48 = scmp.ge.s32.totalorder %s47, 4
      %s57 = sphi 0, %s59
      %s60 = sphi 0, %s57
      %s61 = sphi 0, %s60
      %s77 = sphi 0, %s61
      %s83 = sphi 0, %s85
      %s86 = sphi 0, %s83
      %s87 = sphi 0, %s86
      %s103 = sphi 0, %s87
      %s109 = sphi 0, %s111
      %s112 = sphi 0, %s109
      %s113 = sphi 0, %s112
      %s129 = sphi 0, %s113
      %s135 = sphi 0, %s137
      %s138 = sphi 0, %s135
      %s139 = sphi 0, %s138
      %s155 = sphi 0, %s139
      %s159 = sphi 0, %s159
      %s161 = sphi 0, %s159
      %s162 = sphi 0, %s161
      %s176 = sphi 0, %s162
      %s180 = sphi 0, %s180
      %s182 = sphi 0, %s180
      %s183 = sphi 0, %s182
      %s197 = sphi 0, %s183
      %s201 = sphi 0, %s201
      %s203 = sphi 0, %s201
      %s204 = sphi 0, %s203
      %s218 = sphi 0, %s204
      %s222 = sphi 0, %s222
      %s224 = sphi 0, %s222
      %s225 = sphi 0, %s224
      %s239 = sphi 0, %s225
      %s243 = sphi 0, %s243
      %s245 = sphi 0, %s243
      %s246 = sphi 0, %s245
      %s260 = sphi 0, %s246
      %s264 = sphi 0, %s264
      %s266 = sphi 0, %s264
      %s267 = sphi 0, %s266
      %s281 = sphi 0, %s267
      %s285 = sphi 0, %s285
      %s287 = sphi 0, %s285
      %s288 = sphi 0, %s287
      %s302 = sphi 0, %s288
      %s306 = sphi 0, %s306
      %s308 = sphi 0, %s306
      %s309 = sphi 0, %s308
      %s323 = sphi 0, %s309
      %s327 = sphi 0, %s327
      %s329 = sphi 0, %s327
      %s330 = sphi 0, %s329
      %s344 = sphi 0, %s330
      %s348 = sphi 0, %s348
      %s350 = sphi 0, %s348
      %s351 = sphi 0, %s350
      %s365 = sphi 0, %s351
      %s369 = sphi 0, %s369
      %s371 = sphi 0, %s369
      %s372 = sphi 0, %s371
      %s386 = sphi 0, %s372
      %s390 = sphi 0, %s390
      %s392 = sphi 0, %s390
      %s393 = sphi 0, %s392
      %s407 = sphi 0, %s393
      %s411 = sphi 0, %s411
      %s413 = sphi 0, %s411
      %s414 = sphi 0, %s413
      %s428 = sphi 0, %s414
      %s432 = sphi 0, %s432
      %s434 = sphi 0, %s432
      %s435 = sphi 0, %s434
      %s449 = sphi 0, %s435
      %s453 = sphi 0, %s453
      %s455 = sphi 0, %s453
      %s456 = sphi 0, %s455
      %s470 = sphi 0, %s456
      %s474 = sphi 0, %s474
      %s476 = sphi 0, %s474
      %s477 = sphi 0, %s476
      %s491 = sphi 0, %s477
      %s495 = sphi 0, %s495
      %s497 = sphi 0, %s495
      %s498 = sphi 0, %s497
      %s512 = sphi 0, %s498
      %s516 = sphi 0, %s516
      %s518 = sphi 0, %s516
      %s519 = sphi 0, %s518
      %s533 = sphi 0, %s519
      %s537 = sphi 0, %s537
      %s539 = sphi 0, %s537
      %s540 = sphi 0, %s539
      %s554 = sphi 0, %s540
      %s558 = sphi 0, %s558
      %s560 = sphi 0, %s558
      %s561 = sphi 0, %s560
      %s575 = sphi 0, %s561
      %s581 = sphi 0, %s583
      %s584 = sphi 0, %s581
      %s585 = sphi 0, %s584
      %s601 = sphi 0, %s585
    $region4: #{tpu_custom_call.1} parent=1 // loop_header_branch
      %50 = sbr.rel (%p48) target = $region8
    $region5: #{tpu_custom_call.1} parent=1 // loop_body
      %s52 = ssub.s32 %s47, 1
      %s53 = ssub.s32 %s47, 2
      %s54 = sadd.s32 %s47, 1
      %s55 = ssub.s32 %s47, %s54
      %p56 = scmp.eq.s32.totalorder %s55, 0
      %s58 = sadd.s32 %s57, 1
      %s59 = scalar_select %p56, %s57, %s58
      %p62 = pneg %p56
      %p63 = scmp.eq.s32.totalorder %s47, 1
      %p64 = por %p62, %p63
      %p65 = scmp.ne.s32.totalorder %s57, %s60
      %p66 = scmp.eq.s32.totalorder %s47, 0
      %p67 = por %p65, %p66
      %p68 = scmp.ne.s32.totalorder %s57, %s60
      %p69 = scmp.eq.s32.totalorder %s52, 1
      %p70 = por %p68, %p69
      %p71 = scmp.ne.s32.totalorder %s60, %s61
      %p72 = scmp.eq.s32.totalorder %s52, 0
      %p73 = por %p71, %p72
      %p74 = scmp.ne.s32.totalorder %s60, %s61
      %p75 = scmp.eq.s32.totalorder %s53, 1
      %p76 = por %p74, %p75
      %p78 = scmp.ne.s32.totalorder %s61, %s77
      %p79 = scmp.eq.s32.totalorder %s53, 0
      %p80 = por %p78, %p79
      %s81 = ssub.s32 %s47, %s54
      %p82 = scmp.eq.s32.totalorder %s81, 0
      %s84 = sadd.s32 %s83, 1
      %s85 = scalar_select %p82, %s83, %s84
      %p88 = pneg %p82
      %p89 = scmp.eq.s32.totalorder %s47, 1
      %p90 = por %p88, %p89
      %p91 = scmp.ne.s32.totalorder %s83, %s86
      %p92 = scmp.eq.s32.totalorder %s47, 0
      %p93 = por %p91, %p92
      %p94 = scmp.ne.s32.totalorder %s83, %s86
      %p95 = scmp.eq.s32.totalorder %s52, 1
      %p96 = por %p94, %p95
      %p97 = scmp.ne.s32.totalorder %s86, %s87
      %p98 = scmp.eq.s32.totalorder %s52, 0
      %p99 = por %p97, %p98
      %p100 = scmp.ne.s32.totalorder %s86, %s87
      %p101 = scmp.eq.s32.totalorder %s53, 1
      %p102 = por %p100, %p101
      %p104 = scmp.ne.s32.totalorder %s87, %s103
      %p105 = scmp.eq.s32.totalorder %s53, 0
      %p106 = por %p104, %p105
      %s107 = ssub.s32 %s47, %s54
      %p108 = scmp.eq.s32.totalorder %s107, 0
      %s110 = sadd.s32 %s109, 1
      %s111 = scalar_select %p108, %s109, %s110
      %p114 = pneg %p108
      %p115 = scmp.eq.s32.totalorder %s47, 1
      %p116 = por %p114, %p115
      %p117 = scmp.ne.s32.totalorder %s109, %s112
      %p118 = scmp.eq.s32.totalorder %s47, 0
      %p119 = por %p117, %p118
      %p120 = scmp.ne.s32.totalorder %s109, %s112
      %p121 = scmp.eq.s32.totalorder %s52, 1
      %p122 = por %p120, %p121
      %p123 = scmp.ne.s32.totalorder %s112, %s113
      %p124 = scmp.eq.s32.totalorder %s52, 0
      %p125 = por %p123, %p124
      %p126 = scmp.ne.s32.totalorder %s112, %s113
      %p127 = scmp.eq.s32.totalorder %s53, 1
      %p128 = por %p126, %p127
      %p130 = scmp.ne.s32.totalorder %s113, %s129
      %p131 = scmp.eq.s32.totalorder %s53, 0
      %p132 = por %p130, %p131
      %s133 = ssub.s32 %s47, %s54
      %p134 = scmp.eq.s32.totalorder %s133, 0
      %s136 = sadd.s32 %s135, 1
      %s137 = scalar_select %p134, %s135, %s136
      %p140 = pneg %p134
      %p141 = scmp.eq.s32.totalorder %s47, 1
      %p142 = por %p140, %p141
      %p143 = scmp.ne.s32.totalorder %s135, %s138
      %p144 = scmp.eq.s32.totalorder %s47, 0
      %p145 = por %p143, %p144
      %p146 = scmp.ne.s32.totalorder %s135, %s138
      %p147 = scmp.eq.s32.totalorder %s52, 1
      %p148 = por %p146, %p147
      %p149 = scmp.ne.s32.totalorder %s138, %s139
      %p150 = scmp.eq.s32.totalorder %s52, 0
      %p151 = por %p149, %p150
      %p152 = scmp.ne.s32.totalorder %s138, %s139
      %p153 = scmp.eq.s32.totalorder %s53, 1
      %p154 = por %p152, %p153
      %p156 = scmp.ne.s32.totalorder %s139, %s155
      %p157 = scmp.eq.s32.totalorder %s53, 0
      %p158 = por %p156, %p157
      %s160 = sadd.s32 %s159, 1
      %p163 = scmp.eq.s32.totalorder %s47, 1
      %p164 = scmp.ne.s32.totalorder %s159, %s161
      %p165 = scmp.eq.s32.totalorder %s47, 0
      %p166 = por %p164, %p165
      %p167 = scmp.ne.s32.totalorder %s159, %s161
      %p168 = scmp.eq.s32.totalorder %s52, 1
      %p169 = por %p167, %p168
      %p170 = scmp.ne.s32.totalorder %s161, %s162
      %p171 = scmp.eq.s32.totalorder %s52, 0
      %p172 = por %p170, %p171
      %p173 = scmp.ne.s32.totalorder %s161, %s162
      %p174 = scmp.eq.s32.totalorder %s53, 1
      %p175 = por %p173, %p174
      %p177 = scmp.ne.s32.totalorder %s162, %s176
      %p178 = scmp.eq.s32.totalorder %s53, 0
      %p179 = por %p177, %p178
      %s181 = sadd.s32 %s180, 1
      %p184 = scmp.eq.s32.totalorder %s47, 1
      %p185 = scmp.ne.s32.totalorder %s180, %s182
      %p186 = scmp.eq.s32.totalorder %s47, 0
      %p187 = por %p185, %p186
      %p188 = scmp.ne.s32.totalorder %s180, %s182
      %p189 = scmp.eq.s32.totalorder %s52, 1
      %p190 = por %p188, %p189
      %p191 = scmp.ne.s32.totalorder %s182, %s183
      %p192 = scmp.eq.s32.totalorder %s52, 0
      %p193 = por %p191, %p192
      %p194 = scmp.ne.s32.totalorder %s182, %s183
      %p195 = scmp.eq.s32.totalorder %s53, 1
      %p196 = por %p194, %p195
      %p198 = scmp.ne.s32.totalorder %s183, %s197
      %p199 = scmp.eq.s32.totalorder %s53, 0
      %p200 = por %p198, %p199
      %s202 = sadd.s32 %s201, 1
      %p205 = scmp.eq.s32.totalorder %s47, 1
      %p206 = scmp.ne.s32.totalorder %s201, %s203
      %p207 = scmp.eq.s32.totalorder %s47, 0
      %p208 = por %p206, %p207
      %p209 = scmp.ne.s32.totalorder %s201, %s203
      %p210 = scmp.eq.s32.totalorder %s52, 1
      %p211 = por %p209, %p210
      %p212 = scmp.ne.s32.totalorder %s203, %s204
      %p213 = scmp.eq.s32.totalorder %s52, 0
      %p214 = por %p212, %p213
      %p215 = scmp.ne.s32.totalorder %s203, %s204
      %p216 = scmp.eq.s32.totalorder %s53, 1
      %p217 = por %p215, %p216
      %p219 = scmp.ne.s32.totalorder %s204, %s218
      %p220 = scmp.eq.s32.totalorder %s53, 0
      %p221 = por %p219, %p220
      %s223 = sadd.s32 %s222, 1
      %p226 = scmp.eq.s32.totalorder %s47, 1
      %p227 = scmp.ne.s32.totalorder %s222, %s224
      %p228 = scmp.eq.s32.totalorder %s47, 0
      %p229 = por %p227, %p228
      %p230 = scmp.ne.s32.totalorder %s222, %s224
      %p231 = scmp.eq.s32.totalorder %s52, 1
      %p232 = por %p230, %p231
      %p233 = scmp.ne.s32.totalorder %s224, %s225
      %p234 = scmp.eq.s32.totalorder %s52, 0
      %p235 = por %p233, %p234
      %p236 = scmp.ne.s32.totalorder %s224, %s225
      %p237 = scmp.eq.s32.totalorder %s53, 1
      %p238 = por %p236, %p237
      %p240 = scmp.ne.s32.totalorder %s225, %s239
      %p241 = scmp.eq.s32.totalorder %s53, 0
      %p242 = por %p240, %p241
      %s244 = sadd.s32 %s243, 1
      %p247 = scmp.eq.s32.totalorder %s47, 1
      %p248 = scmp.ne.s32.totalorder %s243, %s245
      %p249 = scmp.eq.s32.totalorder %s47, 0
      %p250 = por %p248, %p249
      %p251 = scmp.ne.s32.totalorder %s243, %s245
      %p252 = scmp.eq.s32.totalorder %s52, 1
      %p253 = por %p251, %p252
      %p254 = scmp.ne.s32.totalorder %s245, %s246
      %p255 = scmp.eq.s32.totalorder %s52, 0
      %p256 = por %p254, %p255
      %p257 = scmp.ne.s32.totalorder %s245, %s246
      %p258 = scmp.eq.s32.totalorder %s53, 1
      %p259 = por %p257, %p258
      %p261 = scmp.ne.s32.totalorder %s246, %s260
      %p262 = scmp.eq.s32.totalorder %s53, 0
      %p263 = por %p261, %p262
      %s265 = sadd.s32 %s264, 1
      %p268 = scmp.eq.s32.totalorder %s47, 1
      %p269 = scmp.ne.s32.totalorder %s264, %s266
      %p270 = scmp.eq.s32.totalorder %s47, 0
      %p271 = por %p269, %p270
      %p272 = scmp.ne.s32.totalorder %s264, %s266
      %p273 = scmp.eq.s32.totalorder %s52, 1
      %p274 = por %p272, %p273
      %p275 = scmp.ne.s32.totalorder %s266, %s267
      %p276 = scmp.eq.s32.totalorder %s52, 0
      %p277 = por %p275, %p276
      %p278 = scmp.ne.s32.totalorder %s266, %s267
      %p279 = scmp.eq.s32.totalorder %s53, 1
      %p280 = por %p278, %p279
      %p282 = scmp.ne.s32.totalorder %s267, %s281
      %p283 = scmp.eq.s32.totalorder %s53, 0
      %p284 = por %p282, %p283
      %s286 = sadd.s32 %s285, 1
      %p289 = scmp.eq.s32.totalorder %s47, 1
      %p290 = scmp.ne.s32.totalorder %s285, %s287
      %p291 = scmp.eq.s32.totalorder %s47, 0
      %p292 = por %p290, %p291
      %p293 = scmp.ne.s32.totalorder %s285, %s287
      %p294 = scmp.eq.s32.totalorder %s52, 1
      %p295 = por %p293, %p294
      %p296 = scmp.ne.s32.totalorder %s287, %s288
      %p297 = scmp.eq.s32.totalorder %s52, 0
      %p298 = por %p296, %p297
      %p299 = scmp.ne.s32.totalorder %s287, %s288
      %p300 = scmp.eq.s32.totalorder %s53, 1
      %p301 = por %p299, %p300
      %p303 = scmp.ne.s32.totalorder %s288, %s302
      %p304 = scmp.eq.s32.totalorder %s53, 0
      %p305 = por %p303, %p304
      %s307 = sadd.s32 %s306, 1
      %p310 = scmp.eq.s32.totalorder %s47, 1
      %p311 = scmp.ne.s32.totalorder %s306, %s308
      %p312 = scmp.eq.s32.totalorder %s47, 0
      %p313 = por %p311, %p312
      %p314 = scmp.ne.s32.totalorder %s306, %s308
      %p315 = scmp.eq.s32.totalorder %s52, 1
      %p316 = por %p314, %p315
      %p317 = scmp.ne.s32.totalorder %s308, %s309
      %p318 = scmp.eq.s32.totalorder %s52, 0
      %p319 = por %p317, %p318
      %p320 = scmp.ne.s32.totalorder %s308, %s309
      %p321 = scmp.eq.s32.totalorder %s53, 1
      %p322 = por %p320, %p321
      %p324 = scmp.ne.s32.totalorder %s309, %s323
      %p325 = scmp.eq.s32.totalorder %s53, 0
      %p326 = por %p324, %p325
      %s328 = sadd.s32 %s327, 1
      %p331 = scmp.eq.s32.totalorder %s47, 1
      %p332 = scmp.ne.s32.totalorder %s327, %s329
      %p333 = scmp.eq.s32.totalorder %s47, 0
      %p334 = por %p332, %p333
      %p335 = scmp.ne.s32.totalorder %s327, %s329
      %p336 = scmp.eq.s32.totalorder %s52, 1
      %p337 = por %p335, %p336
      %p338 = scmp.ne.s32.totalorder %s329, %s330
      %p339 = scmp.eq.s32.totalorder %s52, 0
      %p340 = por %p338, %p339
      %p341 = scmp.ne.s32.totalorder %s329, %s330
      %p342 = scmp.eq.s32.totalorder %s53, 1
      %p343 = por %p341, %p342
      %p345 = scmp.ne.s32.totalorder %s330, %s344
      %p346 = scmp.eq.s32.totalorder %s53, 0
      %p347 = por %p345, %p346
      %s349 = sadd.s32 %s348, 1
      %p352 = scmp.eq.s32.totalorder %s47, 1
      %p353 = scmp.ne.s32.totalorder %s348, %s350
      %p354 = scmp.eq.s32.totalorder %s47, 0
      %p355 = por %p353, %p354
      %p356 = scmp.ne.s32.totalorder %s348, %s350
      %p357 = scmp.eq.s32.totalorder %s52, 1
      %p358 = por %p356, %p357
      %p359 = scmp.ne.s32.totalorder %s350, %s351
      %p360 = scmp.eq.s32.totalorder %s52, 0
      %p361 = por %p359, %p360
      %p362 = scmp.ne.s32.totalorder %s350, %s351
      %p363 = scmp.eq.s32.totalorder %s53, 1
      %p364 = por %p362, %p363
      %p366 = scmp.ne.s32.totalorder %s351, %s365
      %p367 = scmp.eq.s32.totalorder %s53, 0
      %p368 = por %p366, %p367
      %s370 = sadd.s32 %s369, 1
      %p373 = scmp.eq.s32.totalorder %s47, 1
      %p374 = scmp.ne.s32.totalorder %s369, %s371
      %p375 = scmp.eq.s32.totalorder %s47, 0
      %p376 = por %p374, %p375
      %p377 = scmp.ne.s32.totalorder %s369, %s371
      %p378 = scmp.eq.s32.totalorder %s52, 1
      %p379 = por %p377, %p378
      %p380 = scmp.ne.s32.totalorder %s371, %s372
      %p381 = scmp.eq.s32.totalorder %s52, 0
      %p382 = por %p380, %p381
      %p383 = scmp.ne.s32.totalorder %s371, %s372
      %p384 = scmp.eq.s32.totalorder %s53, 1
      %p385 = por %p383, %p384
      %p387 = scmp.ne.s32.totalorder %s372, %s386
      %p388 = scmp.eq.s32.totalorder %s53, 0
      %p389 = por %p387, %p388
      %s391 = sadd.s32 %s390, 1
      %p394 = scmp.eq.s32.totalorder %s47, 1
      %p395 = scmp.ne.s32.totalorder %s390, %s392
      %p396 = scmp.eq.s32.totalorder %s47, 0
      %p397 = por %p395, %p396
      %p398 = scmp.ne.s32.totalorder %s390, %s392
      %p399 = scmp.eq.s32.totalorder %s52, 1
      %p400 = por %p398, %p399
      %p401 = scmp.ne.s32.totalorder %s392, %s393
      %p402 = scmp.eq.s32.totalorder %s52, 0
      %p403 = por %p401, %p402
      %p404 = scmp.ne.s32.totalorder %s392, %s393
      %p405 = scmp.eq.s32.totalorder %s53, 1
      %p406 = por %p404, %p405
      %p408 = scmp.ne.s32.totalorder %s393, %s407
      %p409 = scmp.eq.s32.totalorder %s53, 0
      %p410 = por %p408, %p409
      %s412 = sadd.s32 %s411, 1
      %p415 = scmp.eq.s32.totalorder %s47, 1
      %p416 = scmp.ne.s32.totalorder %s411, %s413
      %p417 = scmp.eq.s32.totalorder %s47, 0
      %p418 = por %p416, %p417
      %p419 = scmp.ne.s32.totalorder %s411, %s413
      %p420 = scmp.eq.s32.totalorder %s52, 1
      %p421 = por %p419, %p420
      %p422 = scmp.ne.s32.totalorder %s413, %s414
      %p423 = scmp.eq.s32.totalorder %s52, 0
      %p424 = por %p422, %p423
      %p425 = scmp.ne.s32.totalorder %s413, %s414
      %p426 = scmp.eq.s32.totalorder %s53, 1
      %p427 = por %p425, %p426
      %p429 = scmp.ne.s32.totalorder %s414, %s428
      %p430 = scmp.eq.s32.totalorder %s53, 0
      %p431 = por %p429, %p430
      %s433 = sadd.s32 %s432, 1
      %p436 = scmp.eq.s32.totalorder %s47, 1
      %p437 = scmp.ne.s32.totalorder %s432, %s434
      %p438 = scmp.eq.s32.totalorder %s47, 0
      %p439 = por %p437, %p438
      %p440 = scmp.ne.s32.totalorder %s432, %s434
      %p441 = scmp.eq.s32.totalorder %s52, 1
      %p442 = por %p440, %p441
      %p443 = scmp.ne.s32.totalorder %s434, %s435
      %p444 = scmp.eq.s32.totalorder %s52, 0
      %p445 = por %p443, %p444
      %p446 = scmp.ne.s32.totalorder %s434, %s435
      %p447 = scmp.eq.s32.totalorder %s53, 1
      %p448 = por %p446, %p447
      %p450 = scmp.ne.s32.totalorder %s435, %s449
      %p451 = scmp.eq.s32.totalorder %s53, 0
      %p452 = por %p450, %p451
      %s454 = sadd.s32 %s453, 1
      %p457 = scmp.eq.s32.totalorder %s47, 1
      %p458 = scmp.ne.s32.totalorder %s453, %s455
      %p459 = scmp.eq.s32.totalorder %s47, 0
      %p460 = por %p458, %p459
      %p461 = scmp.ne.s32.totalorder %s453, %s455
      %p462 = scmp.eq.s32.totalorder %s52, 1
      %p463 = por %p461, %p462
      %p464 = scmp.ne.s32.totalorder %s455, %s456
      %p465 = scmp.eq.s32.totalorder %s52, 0
      %p466 = por %p464, %p465
      %p467 = scmp.ne.s32.totalorder %s455, %s456
      %p468 = scmp.eq.s32.totalorder %s53, 1
      %p469 = por %p467, %p468
      %p471 = scmp.ne.s32.totalorder %s456, %s470
      %p472 = scmp.eq.s32.totalorder %s53, 0
      %p473 = por %p471, %p472
      %s475 = sadd.s32 %s474, 1
      %p478 = scmp.eq.s32.totalorder %s47, 1
      %p479 = scmp.ne.s32.totalorder %s474, %s476
      %p480 = scmp.eq.s32.totalorder %s47, 0
      %p481 = por %p479, %p480
      %p482 = scmp.ne.s32.totalorder %s474, %s476
      %p483 = scmp.eq.s32.totalorder %s52, 1
      %p484 = por %p482, %p483
      %p485 = scmp.ne.s32.totalorder %s476, %s477
      %p486 = scmp.eq.s32.totalorder %s52, 0
      %p487 = por %p485, %p486
      %p488 = scmp.ne.s32.totalorder %s476, %s477
      %p489 = scmp.eq.s32.totalorder %s53, 1
      %p490 = por %p488, %p489
      %p492 = scmp.ne.s32.totalorder %s477, %s491
      %p493 = scmp.eq.s32.totalorder %s53, 0
      %p494 = por %p492, %p493
      %s496 = sadd.s32 %s495, 1
      %p499 = scmp.eq.s32.totalorder %s47, 1
      %p500 = scmp.ne.s32.totalorder %s495, %s497
      %p501 = scmp.eq.s32.totalorder %s47, 0
      %p502 = por %p500, %p501
      %p503 = scmp.ne.s32.totalorder %s495, %s497
      %p504 = scmp.eq.s32.totalorder %s52, 1
      %p505 = por %p503, %p504
      %p506 = scmp.ne.s32.totalorder %s497, %s498
      %p507 = scmp.eq.s32.totalorder %s52, 0
      %p508 = por %p506, %p507
      %p509 = scmp.ne.s32.totalorder %s497, %s498
      %p510 = scmp.eq.s32.totalorder %s53, 1
      %p511 = por %p509, %p510
      %p513 = scmp.ne.s32.totalorder %s498, %s512
      %p514 = scmp.eq.s32.totalorder %s53, 0
      %p515 = por %p513, %p514
      %s517 = sadd.s32 %s516, 1
      %p520 = scmp.eq.s32.totalorder %s47, 1
      %p521 = scmp.ne.s32.totalorder %s516, %s518
      %p522 = scmp.eq.s32.totalorder %s47, 0
      %p523 = por %p521, %p522
      %p524 = scmp.ne.s32.totalorder %s516, %s518
      %p525 = scmp.eq.s32.totalorder %s52, 1
      %p526 = por %p524, %p525
      %p527 = scmp.ne.s32.totalorder %s518, %s519
      %p528 = scmp.eq.s32.totalorder %s52, 0
      %p529 = por %p527, %p528
      %p530 = scmp.ne.s32.totalorder %s518, %s519
      %p531 = scmp.eq.s32.totalorder %s53, 1
      %p532 = por %p530, %p531
      %p534 = scmp.ne.s32.totalorder %s519, %s533
      %p535 = scmp.eq.s32.totalorder %s53, 0
      %p536 = por %p534, %p535
      %s538 = sadd.s32 %s537, 1
      %p541 = scmp.eq.s32.totalorder %s47, 1
      %p542 = scmp.ne.s32.totalorder %s537, %s539
      %p543 = scmp.eq.s32.totalorder %s47, 0
      %p544 = por %p542, %p543
      %p545 = scmp.ne.s32.totalorder %s537, %s539
      %p546 = scmp.eq.s32.totalorder %s52, 1
      %p547 = por %p545, %p546
      %p548 = scmp.ne.s32.totalorder %s539, %s540
      %p549 = scmp.eq.s32.totalorder %s52, 0
      %p550 = por %p548, %p549
      %p551 = scmp.ne.s32.totalorder %s539, %s540
      %p552 = scmp.eq.s32.totalorder %s53, 1
      %p553 = por %p551, %p552
      %p555 = scmp.ne.s32.totalorder %s540, %s554
      %p556 = scmp.eq.s32.totalorder %s53, 0
      %p557 = por %p555, %p556
      %s559 = sadd.s32 %s558, 1
      %p562 = scmp.eq.s32.totalorder %s47, 1
      %p563 = scmp.ne.s32.totalorder %s558, %s560
      %p564 = scmp.eq.s32.totalorder %s47, 0
      %p565 = por %p563, %p564
      %p566 = scmp.ne.s32.totalorder %s558, %s560
      %p567 = scmp.eq.s32.totalorder %s52, 1
      %p568 = por %p566, %p567
      %p569 = scmp.ne.s32.totalorder %s560, %s561
      %p570 = scmp.eq.s32.totalorder %s52, 0
      %p571 = por %p569, %p570
      %p572 = scmp.ne.s32.totalorder %s560, %s561
      %p573 = scmp.eq.s32.totalorder %s53, 1
      %p574 = por %p572, %p573
      %p576 = scmp.ne.s32.totalorder %s561, %s575
      %p577 = scmp.eq.s32.totalorder %s53, 0
      %p578 = por %p576, %p577
      %s579 = ssub.s32 %s47, %s54
      %p580 = scmp.eq.s32.totalorder %s579, 0
      %s582 = sadd.s32 %s581, 1
      %s583 = scalar_select %p580, %s581, %s582
      %p586 = pneg %p580
      %p587 = scmp.eq.s32.totalorder %s47, 1
      %p588 = por %p586, %p587
      %p589 = scmp.ne.s32.totalorder %s581, %s584
      %p590 = scmp.eq.s32.totalorder %s47, 0
      %p591 = por %p589, %p590
      %p592 = scmp.ne.s32.totalorder %s581, %s584
      %p593 = scmp.eq.s32.totalorder %s52, 1
      %p594 = por %p592, %p593
      %p595 = scmp.ne.s32.totalorder %s584, %s585
      %p596 = scmp.eq.s32.totalorder %s52, 0
      %p597 = por %p595, %p596
      %p598 = scmp.ne.s32.totalorder %s584, %s585
      %p599 = scmp.eq.s32.totalorder %s53, 1
      %p600 = por %p598, %p599
      %p602 = scmp.ne.s32.totalorder %s585, %s601
      %p603 = scmp.eq.s32.totalorder %s53, 0
      %p604 = por %p602, %p603
      %p605 = scmp.le.s32.totalorder 1, %s47
      %p606 = scmp.lt.s32.totalorder %s47, 3
      %p607 = pnand %p605, %p606
      %p608 = pneg %p607
      // Predicated region
      $region9: #{tpu_custom_call.1} parent=5 // pred_check
        _
      $region10: #{tpu_custom_call.1} parent=5 // pred_check_branch
        %610 = sbr.rel (%p607) target = $region12
      $region11: #{tpu_custom_call.1} parent=5 // pred_region
        %s611 = ssub.s32 %s47, 1
        // Predicated region
        $region13: #{tpu_custom_call.1} parent=11 // pred_check
          %p612 = pneg %p172
        $region14: #{tpu_custom_call.1} parent=11 // pred_check_branch
          %614 = sbr.rel (%p612) target = $region16
        $region15: #{tpu_custom_call.1} parent=11 // pred_region
          %s616 = ssub.s32 16, 16
          %617 = vsyncadd [#allocation9], %s616
          %s619 = sshll.u32 [#allocation10], 4
          %s620 = int_to_ptr.vmem [resolvable:$true] %s619
          %622 = dma.hbm_to_vmem [thread:$0]  %s4, 16, %s620, [#allocation9]
        $region16: #{tpu_custom_call.1} parent=11 // pred_fallthru
          _
        // Predicated region
        $region17: #{tpu_custom_call.1} parent=11 // pred_check
          %p623 = pneg %p193
        $region18: #{tpu_custom_call.1} parent=11 // pred_check_branch
          %625 = sbr.rel (%p623) target = $region20
        $region19: #{tpu_custom_call.1} parent=11 // pred_region
          %s627 = ssub.s32 16, 16
          %628 = vsyncadd [#allocation12], %s627
          %s630 = sshll.u32 [#allocation11], 4
          %s631 = int_to_ptr.vmem [resolvable:$true] %s630
          %633 = dma.hbm_to_vmem [thread:$0]  %s5, 16, %s631, [#allocation12]
        $region20: #{tpu_custom_call.1} parent=11 // pred_fallthru
          _
        // Predicated region
        $region21: #{tpu_custom_call.1} parent=11 // pred_check
          %p634 = pneg %p214
        $region22: #{tpu_custom_call.1} parent=11 // pred_check_branch
          %636 = sbr.rel (%p634) target = $region24
        $region23: #{tpu_custom_call.1} parent=11 // pred_region
          _
        $region24: #{tpu_custom_call.1} parent=11 // pred_fallthru
          _
        // Predicated region
        $region25: #{tpu_custom_call.1} parent=11 // pred_check
          %p637 = pneg %p235
        $region26: #{tpu_custom_call.1} parent=11 // pred_check_branch
          %639 = sbr.rel (%p637) target = $region28
        $region27: #{tpu_custom_call.1} parent=11 // pred_region
          %s641 = ssub.s32 16, 16
          %642 = vsyncadd [#allocation12], %s641
          %s644 = sshll.u32 [#allocation13], 4
          %s645 = int_to_ptr.vmem [resolvable:$true] %s644
          %647 = dma.hbm_to_vmem [thread:$0]  %s7, 16, %s645, [#allocation12]
        $region28: #{tpu_custom_call.1} parent=11 // pred_fallthru
          _
        // Predicated region
        $region29: #{tpu_custom_call.1} parent=11 // pred_check
          %p648 = pneg %p256
        $region30: #{tpu_custom_call.1} parent=11 // pred_check_branch
          %650 = sbr.rel (%p648) target = $region32
        $region31: #{tpu_custom_call.1} parent=11 // pred_region
          _
        $region32: #{tpu_custom_call.1} parent=11 // pred_fallthru
          _
        // Predicated region
        $region33: #{tpu_custom_call.1} parent=11 // pred_check
          %p651 = pneg %p277
        $region34: #{tpu_custom_call.1} parent=11 // pred_check_branch
          %653 = sbr.rel (%p651) target = $region36
        $region35: #{tpu_custom_call.1} parent=11 // pred_region
          %s655 = ssub.s32 16, 16
          %656 = vsyncadd [#allocation15], %s655
          %s658 = sshll.u32 [#allocation14], 4
          %s659 = int_to_ptr.vmem [resolvable:$true] %s658
          %661 = dma.hbm_to_vmem [thread:$0]  %s9, 16, %s659, [#allocation15]
        $region36: #{tpu_custom_call.1} parent=11 // pred_fallthru
          _
        // Predicated region
        $region37: #{tpu_custom_call.1} parent=11 // pred_check
          %p662 = pneg %p298
        $region38: #{tpu_custom_call.1} parent=11 // pred_check_branch
          %664 = sbr.rel (%p662) target = $region40
        $region39: #{tpu_custom_call.1} parent=11 // pred_region
          %s666 = ssub.s32 16, 16
          %667 = vsyncadd [#allocation15], %s666
          %s669 = sshll.u32 [#allocation16], 4
          %s670 = int_to_ptr.vmem [resolvable:$true] %s669
          %672 = dma.hbm_to_vmem [thread:$0]  %s10, 16, %s670, [#allocation15]
        $region40: #{tpu_custom_call.1} parent=11 // pred_fallthru
          _
        // Predicated region
        $region41: #{tpu_custom_call.1} parent=11 // pred_check
          %p673 = pneg %p319
        $region42: #{tpu_custom_call.1} parent=11 // pred_check_branch
          %675 = sbr.rel (%p673) target = $region44
        $region43: #{tpu_custom_call.1} parent=11 // pred_region
          %s677 = ssub.s32 16, 16
          %678 = vsyncadd [#allocation18], %s677
          %s680 = sshll.u32 [#allocation17], 4
          %s681 = int_to_ptr.vmem [resolvable:$true] %s680
          %683 = dma.hbm_to_vmem [thread:$0]  %s11, 16, %s681, [#allocation18]
        $region44: #{tpu_custom_call.1} parent=11 // pred_fallthru
          _
        // Predicated region
        $region45: #{tpu_custom_call.1} parent=11 // pred_check
          %p684 = pneg %p340
        $region46: #{tpu_custom_call.1} parent=11 // pred_check_branch
          %686 = sbr.rel (%p684) target = $region48
        $region47: #{tpu_custom_call.1} parent=11 // pred_region
          _
        $region48: #{tpu_custom_call.1} parent=11 // pred_fallthru
          _
        // Predicated region
        $region49: #{tpu_custom_call.1} parent=11 // pred_check
          %p687 = pneg %p361
        $region50: #{tpu_custom_call.1} parent=11 // pred_check_branch
          %689 = sbr.rel (%p687) target = $region52
        $region51: #{tpu_custom_call.1} parent=11 // pred_region
          %s691 = ssub.s32 16, 16
          %692 = vsyncadd [#allocation18], %s691
          %s694 = sshll.u32 [#allocation19], 4
          %s695 = int_to_ptr.vmem [resolvable:$true] %s694
          %697 = dma.hbm_to_vmem [thread:$0]  %s13, 16, %s695, [#allocation18]
        $region52: #{tpu_custom_call.1} parent=11 // pred_fallthru
          _
        // Predicated region
        $region53: #{tpu_custom_call.1} parent=11 // pred_check
          %p698 = pneg %p382
        $region54: #{tpu_custom_call.1} parent=11 // pred_check_branch
          %700 = sbr.rel (%p698) target = $region56
        $region55: #{tpu_custom_call.1} parent=11 // pred_region
          _
        $region56: #{tpu_custom_call.1} parent=11 // pred_fallthru
          _
        // Predicated region
        $region57: #{tpu_custom_call.1} parent=11 // pred_check
          %p701 = pneg %p403
        $region58: #{tpu_custom_call.1} parent=11 // pred_check_branch
          %703 = sbr.rel (%p701) target = $region60
        $region59: #{tpu_custom_call.1} parent=11 // pred_region
          %s705 = ssub.s32 16, 16
          %706 = vsyncadd [#allocation21], %s705
          %s708 = sshll.u32 [#allocation20], 4
          %s709 = int_to_ptr.vmem [resolvable:$true] %s708
          %711 = dma.hbm_to_vmem [thread:$0]  %s15, 16, %s709, [#allocation21]
        $region60: #{tpu_custom_call.1} parent=11 // pred_fallthru
          _
        // Predicated region
        $region61: #{tpu_custom_call.1} parent=11 // pred_check
          %p712 = pneg %p424
        $region62: #{tpu_custom_call.1} parent=11 // pred_check_branch
          %714 = sbr.rel (%p712) target = $region64
        $region63: #{tpu_custom_call.1} parent=11 // pred_region
          %s716 = ssub.s32 512, 512
          %717 = vsyncadd [#allocation21], %s716
          %s718 = sshll.u32 [#allocation22], 4
          %s719 = int_to_ptr.vmem [resolvable:$true] %s718
          %724 = dma.hbm_to_vmem [thread:$0]  %s16, 512, %s719, [#allocation21], 128, 128, 8
        $region64: #{tpu_custom_call.1} parent=11 // pred_fallthru
          _
        // Predicated region
        $region65: #{tpu_custom_call.1} parent=11 // pred_check
          %p725 = pneg %p445
        $region66: #{tpu_custom_call.1} parent=11 // pred_check_branch
          %727 = sbr.rel (%p725) target = $region68
        $region67: #{tpu_custom_call.1} parent=11 // pred_region
          %s729 = ssub.s32 16, 16
          %730 = vsyncadd [#allocation24], %s729
          %s732 = sshll.u32 [#allocation23], 4
          %s733 = int_to_ptr.vmem [resolvable:$true] %s732
          %735 = dma.hbm_to_vmem [thread:$0]  %s17, 16, %s733, [#allocation24]
        $region68: #{tpu_custom_call.1} parent=11 // pred_fallthru
          _
        // Predicated region
        $region69: #{tpu_custom_call.1} parent=11 // pred_check
          %p736 = pneg %p466
        $region70: #{tpu_custom_call.1} parent=11 // pred_check_branch
          %738 = sbr.rel (%p736) target = $region72
        $region71: #{tpu_custom_call.1} parent=11 // pred_region
          _
        $region72: #{tpu_custom_call.1} parent=11 // pred_fallthru
          _
        // Predicated region
        $region73: #{tpu_custom_call.1} parent=11 // pred_check
          %p739 = pneg %p487
        $region74: #{tpu_custom_call.1} parent=11 // pred_check_branch
          %741 = sbr.rel (%p739) target = $region76
        $region75: #{tpu_custom_call.1} parent=11 // pred_region
          _
        $region76: #{tpu_custom_call.1} parent=11 // pred_fallthru
          _
        // Predicated region
        $region77: #{tpu_custom_call.1} parent=11 // pred_check
          %p742 = pneg %p508
        $region78: #{tpu_custom_call.1} parent=11 // pred_check_branch
          %744 = sbr.rel (%p742) target = $region80
        $region79: #{tpu_custom_call.1} parent=11 // pred_region
          %s746 = ssub.s32 512, 512
          %747 = vsyncadd [#allocation24], %s746
          %s748 = sshll.u32 [#allocation25], 4
          %s749 = int_to_ptr.vmem [resolvable:$true] %s748
          %754 = dma.hbm_to_vmem [thread:$0]  %s20, 512, %s749, [#allocation24], 128, 128, 8
        $region80: #{tpu_custom_call.1} parent=11 // pred_fallthru
          _
        // Predicated region
        $region81: #{tpu_custom_call.1} parent=11 // pred_check
          %p755 = pneg %p529
        $region82: #{tpu_custom_call.1} parent=11 // pred_check_branch
          %757 = sbr.rel (%p755) target = $region84
        $region83: #{tpu_custom_call.1} parent=11 // pred_region
          _
        $region84: #{tpu_custom_call.1} parent=11 // pred_fallthru
          _
        // Predicated region
        $region85: #{tpu_custom_call.1} parent=11 // pred_check
          %p758 = pneg %p550
        $region86: #{tpu_custom_call.1} parent=11 // pred_check_branch
          %760 = sbr.rel (%p758) target = $region88
        $region87: #{tpu_custom_call.1} parent=11 // pred_region
          _
        $region88: #{tpu_custom_call.1} parent=11 // pred_fallthru
          _
        // Predicated region
        $region89: #{tpu_custom_call.1} parent=11 // pred_check
          %p761 = pneg %p571
        $region90: #{tpu_custom_call.1} parent=11 // pred_check_branch
          %763 = sbr.rel (%p761) target = $region92
        $region91: #{tpu_custom_call.1} parent=11 // pred_region
          _
        $region92: #{tpu_custom_call.1} parent=11 // pred_fallthru
          _
      $region12: #{tpu_custom_call.1} parent=5 // pred_fallthru
        _
      %p764 = scmp.lt.s32.totalorder %s47, 2
      // Predicated region
      $region93: #{tpu_custom_call.1} parent=5 // pred_check
        %p765 = pneg %p764
      $region94: #{tpu_custom_call.1} parent=5 // pred_check_branch
        %767 = sbr.rel (%p765) target = $region96
      $region95: #{tpu_custom_call.1} parent=5 // pred_region
        // Predicated region
        $region97: #{tpu_custom_call.1} parent=95 // pred_check
          %p768 = pneg %p67
        $region98: #{tpu_custom_call.1} parent=95 // pred_check_branch
          %770 = sbr.rel (%p768) target = $region100
        $region99: #{tpu_custom_call.1} parent=95 // pred_region
          %s771 = sand.u32 %s57, 1
          %s772 = scalar_lea.sflag [#allocation3], %s771
          %s773 = sand.u32 %s57, 1
          %s774 = smul.addr %s773, 8
          %s775 = scalar_lea.vmem [#allocation2], %s774
          %s777 = ssub.s32 128, 128
          %778 = vsyncadd %s772, %s777
          %s779 = smul.addr %s47, 128
          %s780 = scalar_lea.hbm %s0, %s779
          %s782 = sshll.u32 %s775, 4
          %s783 = int_to_ptr.vmem [resolvable:$true] %s782
          %785 = dma.hbm_to_vmem [thread:$0]  %s780, 128, %s783, %s772
        $region100: #{tpu_custom_call.1} parent=95 // pred_fallthru
          _
        // Predicated region
        $region101: #{tpu_custom_call.1} parent=95 // pred_check
          %p786 = pneg %p93
        $region102: #{tpu_custom_call.1} parent=95 // pred_check_branch
          %788 = sbr.rel (%p786) target = $region104
        $region103: #{tpu_custom_call.1} parent=95 // pred_region
          %s789 = sand.u32 %s47, 1
          %s790 = scalar_lea.sflag [#allocation6], %s789
          %s791 = sand.u32 %s83, 1
          %s792 = smul.addr %s791, 8
          %s793 = scalar_lea.vmem [#allocation5], %s792
          %s795 = ssub.s32 128, 128
          %796 = vsyncadd %s790, %s795
          %s797 = smul.addr %s47, 128
          %s798 = scalar_lea.hbm %s1, %s797
          %s800 = sshll.u32 %s793, 4
          %s801 = int_to_ptr.vmem [resolvable:$true] %s800
          %803 = dma.hbm_to_vmem [thread:$0]  %s798, 128, %s801, %s790
        $region104: #{tpu_custom_call.1} parent=95 // pred_fallthru
          _
        // Predicated region
        $region105: #{tpu_custom_call.1} parent=95 // pred_check
          %p804 = pneg %p119
        $region106: #{tpu_custom_call.1} parent=95 // pred_check_branch
          %806 = sbr.rel (%p804) target = $region108
        $region107: #{tpu_custom_call.1} parent=95 // pred_region
          %s807 = sand.u32 %s47, 1
          %s808 = scalar_lea.sflag [#allocation6], %s807
          %s809 = sand.u32 %s109, 1
          %s810 = scalar_lea.vmem [#allocation7], %s809
          %s812 = ssub.s32 16, 16
          %813 = vsyncadd %s808, %s812
          %s814 = smul.addr %s47, 16
          %s815 = scalar_lea.hbm %s2, %s814
          %s817 = sshll.u32 %s810, 4
          %s818 = int_to_ptr.vmem [resolvable:$true] %s817
          %820 = dma.hbm_to_vmem [thread:$0]  %s815, 16, %s818, %s808
        $region108: #{tpu_custom_call.1} parent=95 // pred_fallthru
          _
        // Predicated region
        $region109: #{tpu_custom_call.1} parent=95 // pred_check
          %p821 = pneg %p145
        $region110: #{tpu_custom_call.1} parent=95 // pred_check_branch
          %823 = sbr.rel (%p821) target = $region112
        $region111: #{tpu_custom_call.1} parent=95 // pred_region
          %s824 = sand.u32 %s47, 1
          %s825 = scalar_lea.sflag [#allocation9], %s824
          %s826 = sand.u32 %s135, 1
          %s827 = smul.addr %s826, 8
          %s828 = scalar_lea.vmem [#allocation8], %s827
          %s830 = ssub.s32 128, 128
          %831 = vsyncadd %s825, %s830
          %s832 = smul.addr %s47, 128
          %s833 = scalar_lea.hbm %s3, %s832
          %s835 = sshll.u32 %s828, 4
          %s836 = int_to_ptr.vmem [resolvable:$true] %s835
          %838 = dma.hbm_to_vmem [thread:$0]  %s833, 128, %s836, %s825
        $region112: #{tpu_custom_call.1} parent=95 // pred_fallthru
          _
      $region96: #{tpu_custom_call.1} parent=5 // pred_fallthru
        _
      %p839 = scmp.le.s32.totalorder 1, %s47
      %p840 = scmp.lt.s32.totalorder %s47, 3
      %p841 = pnand %p839, %p840
      %p842 = pneg %p841
      // Predicated region
      $region113: #{tpu_custom_call.1} parent=5 // pred_check
        _
      $region114: #{tpu_custom_call.1} parent=5 // pred_check_branch
        %844 = sbr.rel (%p841) target = $region116
      $region115: #{tpu_custom_call.1} parent=5 // pred_region
        %s845 = ssub.s32 %s47, 1
        %s846 = sand.u32 %s60, 1
        %s847 = scalar_lea.sflag [#allocation3], %s846
        %s848 = sand.u32 %s60, 1
        %s849 = smul.addr %s848, 8
        %s850 = scalar_lea.vmem [#allocation2], %s849
        // Predicated region
        $region117: #{tpu_custom_call.1} parent=115 // pred_check
          %p851 = pneg %p73
        $region118: #{tpu_custom_call.1} parent=115 // pred_check_branch
          %853 = sbr.rel (%p851) target = $region120
        $region119: #{tpu_custom_call.1} parent=115 // pred_region
          %854 = dma.done %s847, 128
        $region120: #{tpu_custom_call.1} parent=115 // pred_fallthru
          _
        %s855 = sand.u32 %s52, 1
        %s856 = scalar_lea.sflag [#allocation6], %s855
        %s857 = sand.u32 %s86, 1
        %s858 = smul.addr %s857, 8
        %s859 = scalar_lea.vmem [#allocation5], %s858
        // Predicated region
        $region121: #{tpu_custom_call.1} parent=115 // pred_check
          %p860 = pneg %p99
        $region122: #{tpu_custom_call.1} parent=115 // pred_check_branch
          %862 = sbr.rel (%p860) target = $region124
        $region123: #{tpu_custom_call.1} parent=115 // pred_region
          %863 = dma.done %s856, 128
        $region124: #{tpu_custom_call.1} parent=115 // pred_fallthru
          _
        %s864 = sand.u32 %s52, 1
        %s865 = scalar_lea.sflag [#allocation6], %s864
        %s866 = sand.u32 %s112, 1
        %s867 = scalar_lea.vmem [#allocation7], %s866
        // Predicated region
        $region125: #{tpu_custom_call.1} parent=115 // pred_check
          %p868 = pneg %p125
        $region126: #{tpu_custom_call.1} parent=115 // pred_check_branch
          %870 = sbr.rel (%p868) target = $region128
        $region127: #{tpu_custom_call.1} parent=115 // pred_region
          %871 = dma.done %s865, 16
        $region128: #{tpu_custom_call.1} parent=115 // pred_fallthru
          _
        %s872 = sand.u32 %s52, 1
        %s873 = scalar_lea.sflag [#allocation9], %s872
        %s874 = sand.u32 %s138, 1
        %s875 = smul.addr %s874, 8
        %s876 = scalar_lea.vmem [#allocation8], %s875
        // Predicated region
        $region129: #{tpu_custom_call.1} parent=115 // pred_check
          %p877 = pneg %p151
        $region130: #{tpu_custom_call.1} parent=115 // pred_check_branch
          %879 = sbr.rel (%p877) target = $region132
        $region131: #{tpu_custom_call.1} parent=115 // pred_region
          %880 = dma.done %s873, 128
        $region132: #{tpu_custom_call.1} parent=115 // pred_fallthru
          _
        // Predicated region
        $region133: #{tpu_custom_call.1} parent=115 // pred_check
          %p881 = pneg %p172
        $region134: #{tpu_custom_call.1} parent=115 // pred_check_branch
          %883 = sbr.rel (%p881) target = $region136
        $region135: #{tpu_custom_call.1} parent=115 // pred_region
          %884 = dma.done [#allocation9], 16
        $region136: #{tpu_custom_call.1} parent=115 // pred_fallthru
          _
        // Predicated region
        $region137: #{tpu_custom_call.1} parent=115 // pred_check
          %p885 = pneg %p193
        $region138: #{tpu_custom_call.1} parent=115 // pred_check_branch
          %887 = sbr.rel (%p885) target = $region140
        $region139: #{tpu_custom_call.1} parent=115 // pred_region
          %888 = dma.done [#allocation12], 16
        $region140: #{tpu_custom_call.1} parent=115 // pred_fallthru
          _
        // Predicated region
        $region141: #{tpu_custom_call.1} parent=115 // pred_check
          %p889 = pneg %p235
        $region142: #{tpu_custom_call.1} parent=115 // pred_check_branch
          %891 = sbr.rel (%p889) target = $region144
        $region143: #{tpu_custom_call.1} parent=115 // pred_region
          %892 = dma.done [#allocation12], 16
        $region144: #{tpu_custom_call.1} parent=115 // pred_fallthru
          _
        // Predicated region
        $region145: #{tpu_custom_call.1} parent=115 // pred_check
          %p893 = pneg %p277
        $region146: #{tpu_custom_call.1} parent=115 // pred_check_branch
          %895 = sbr.rel (%p893) target = $region148
        $region147: #{tpu_custom_call.1} parent=115 // pred_region
          %896 = dma.done [#allocation15], 16
        $region148: #{tpu_custom_call.1} parent=115 // pred_fallthru
          _
        // Predicated region
        $region149: #{tpu_custom_call.1} parent=115 // pred_check
          %p897 = pneg %p298
        $region150: #{tpu_custom_call.1} parent=115 // pred_check_branch
          %899 = sbr.rel (%p897) target = $region152
        $region151: #{tpu_custom_call.1} parent=115 // pred_region
          %900 = dma.done [#allocation15], 16
        $region152: #{tpu_custom_call.1} parent=115 // pred_fallthru
          _
        // Predicated region
        $region153: #{tpu_custom_call.1} parent=115 // pred_check
          %p901 = pneg %p319
        $region154: #{tpu_custom_call.1} parent=115 // pred_check_branch
          %903 = sbr.rel (%p901) target = $region156
        $region155: #{tpu_custom_call.1} parent=115 // pred_region
          %904 = dma.done [#allocation18], 16
        $region156: #{tpu_custom_call.1} parent=115 // pred_fallthru
          _
        // Predicated region
        $region157: #{tpu_custom_call.1} parent=115 // pred_check
          %p905 = pneg %p361
        $region158: #{tpu_custom_call.1} parent=115 // pred_check_branch
          %907 = sbr.rel (%p905) target = $region160
        $region159: #{tpu_custom_call.1} parent=115 // pred_region
          %908 = dma.done [#allocation18], 16
        $region160: #{tpu_custom_call.1} parent=115 // pred_fallthru
          _
        // Predicated region
        $region161: #{tpu_custom_call.1} parent=115 // pred_check
          %p909 = pneg %p403
        $region162: #{tpu_custom_call.1} parent=115 // pred_check_branch
          %911 = sbr.rel (%p909) target = $region164
        $region163: #{tpu_custom_call.1} parent=115 // pred_region
          %912 = dma.done [#allocation21], 16
        $region164: #{tpu_custom_call.1} parent=115 // pred_fallthru
          _
        // Predicated region
        $region165: #{tpu_custom_call.1} parent=115 // pred_check
          %p913 = pneg %p424
        $region166: #{tpu_custom_call.1} parent=115 // pred_check_branch
          %915 = sbr.rel (%p913) target = $region168
        $region167: #{tpu_custom_call.1} parent=115 // pred_region
          %916 = dma.done [#allocation21], 512
        $region168: #{tpu_custom_call.1} parent=115 // pred_fallthru
          _
        // Predicated region
        $region169: #{tpu_custom_call.1} parent=115 // pred_check
          %p917 = pneg %p445
        $region170: #{tpu_custom_call.1} parent=115 // pred_check_branch
          %919 = sbr.rel (%p917) target = $region172
        $region171: #{tpu_custom_call.1} parent=115 // pred_region
          %920 = dma.done [#allocation24], 16
        $region172: #{tpu_custom_call.1} parent=115 // pred_fallthru
          _
        // Predicated region
        $region173: #{tpu_custom_call.1} parent=115 // pred_check
          %p921 = pneg %p508
        $region174: #{tpu_custom_call.1} parent=115 // pred_check_branch
          %923 = sbr.rel (%p921) target = $region176
        $region175: #{tpu_custom_call.1} parent=115 // pred_region
          %924 = dma.done [#allocation24], 512
        $region176: #{tpu_custom_call.1} parent=115 // pred_fallthru
          _
        %s925 = sand.u32 %s60, 1
        %s926 = scalar_lea.sflag [#allocation3], %s925
        %s927 = sand.u32 %s60, 1
        %s928 = smul.addr %s927, 8
        %s929 = scalar_lea.vmem [#allocation2], %s928
        %p930 = pneg %p73
        %p931 = pneg %p70
        %s932 = sand.u32 %s52, 1
        %s933 = scalar_lea.sflag [#allocation6], %s932
        %s934 = sand.u32 %s86, 1
        %s935 = smul.addr %s934, 8
        %s936 = scalar_lea.vmem [#allocation5], %s935
        %p937 = pneg %p99
        %p938 = pneg %p96
        %s939 = sand.u32 %s52, 1
        %s940 = scalar_lea.sflag [#allocation6], %s939
        %s941 = sand.u32 %s112, 1
        %s942 = scalar_lea.vmem [#allocation7], %s941
        %p943 = pneg %p125
        %p944 = pneg %p122
        %s945 = sand.u32 %s52, 1
        %s946 = scalar_lea.sflag [#allocation9], %s945
        %s947 = sand.u32 %s138, 1
        %s948 = smul.addr %s947, 8
        %s949 = scalar_lea.vmem [#allocation8], %s948
        %p950 = pneg %p151
        %p951 = pneg %p148
        %p952 = pneg %p172
        %p953 = pneg %p169
        %p954 = pneg %p193
        %p955 = pneg %p190
        %p956 = pneg %p214
        %p957 = pneg %p211
        %p958 = pneg %p235
        %p959 = pneg %p232
        %p960 = pneg %p256
        %p961 = pneg %p253
        %p962 = pneg %p277
        %p963 = pneg %p274
        %p964 = pneg %p298
        %p965 = pneg %p295
        %p966 = pneg %p319
        %p967 = pneg %p316
        %p968 = pneg %p340
        %p969 = pneg %p337
        %p970 = pneg %p361
        %p971 = pneg %p358
        %p972 = pneg %p382
        %p973 = pneg %p379
        %p974 = pneg %p403
        %p975 = pneg %p400
        %p976 = pneg %p424
        %p977 = pneg %p421
        %p978 = pneg %p445
        %p979 = pneg %p442
        %p980 = pneg %p466
        %p981 = pneg %p463
        %p982 = pneg %p487
        %p983 = pneg %p484
        %p984 = pneg %p508
        %p985 = pneg %p505
        %p986 = pneg %p529
        %p987 = pneg %p526
        %p988 = pneg %p550
        %p989 = pneg %p547
        %p990 = pneg %p571
        %p991 = pneg %p568
        %p992 = pneg %p597
        %p993 = pneg %p594
        %s994 = sand.u32 %s584, 1
        %s995 = scalar_lea.sflag [#allocation4], %s994
        %s996 = sand.u32 %s584, 1
        %s997 = smul.addr %s996, 8
        %s998 = scalar_lea.vmem [#allocation26], %s997
        %v999 = vld [vmem:[%s850] sm:$0xff]
        %v1000 = vld [vmem:[%s859] sm:$0xff]
        %vm1001 = vcmask 261120
        %v1002 = vsel %vm1001, %v999, 0.0
        %1003 = vadd.xlane.f32.xlu0 %v1002
        %v1004 = vpop.xlane.xlu0 %1003
        %v1005 = vrcp.pop 32.0
        %v1006 = vmul.f32 %v1004, %v1005
        %v1007 = vsub.f32 %v999, %v1006
        %v1008 = vmul.f32 %v1007, %v1007
        %v1009 = vsel %vm1001, %v1008, 0.0
        %1010 = vadd.xlane.f32.xlu0 %v1009
        %v1011 = vpop.xlane.xlu0 %1010
        %v1012 = vmul.f32 %v1011, 0.032258064
        %v1013 = vrsqrt.pop %v1012
        %v1014 = vmul.f32 %v1012, %v1013
        %vm1015 = vcmp.eq.f32.partialorder %v1012, inf
        %v1016 = vsel %vm1015, %v1012, %v1014
        %vm1017 = vcmp.eq.f32.partialorder %v1012, 0.0
        %v1018 = vand.u32 %v1012, 2147483648
        %v1019 = vsel %vm1017, %v1018, %v1016
        %v1020 = vadd.f32 %v1019, 1e-06
        %v1021 = vrcp.pop %v1020
        %v1022 = vld [vmem:[#allocation10] sm:$0x1]
        %v1024 = vlaneseq
        %v1025 = vshrl.u32 %v1024, 7
        %v1026 = vsub.s32 0, %v1025
        %v1027 = vrot.slane %v1022, %v1026
        %v1029 = vmul.f32 %v1027, %v1007
        %v1030 = vmul.f32 %v1029, %v1021
        %v1031 = vld [vmem:[#allocation11] sm:$0x1]
        %v1033 = vlaneseq
        %v1034 = vshrl.u32 %v1033, 7
        %v1035 = vsub.s32 0, %v1034
        %v1036 = vrot.slane %v1031, %v1035
        %v1038 = vadd.f32 %v1030, %v1036
        %v1039 = vld [vmem:[%s6] sm:$0xff]
        %v1040 = vld [vmem:[%s6 + $0x8] sm:$0xff]
        %v1041 = vld [vmem:[%s6 + $0x10] sm:$0xff]
        %v1042 = vld [vmem:[%s6 + $0x18] sm:$0xff]
        %v1043 = vld [vmem:[#allocation13] sm:$0x1]
        %v1045 = vlaneseq
        %v1046 = vshrl.u32 %v1045, 7
        %v1047 = vsub.s32 0, %v1046
        %v1048 = vrot.slane %v1043, %v1047
        %v1051 = vsel %vm1001, %v1038, 0
        %1053 = vmatprep.subr.mxu0 0.0
        %1054 = vmatpush1.msra.mxu0 %v1039
        %1055 = vmatprep.subr.mxu0 0.0
        %1056 = vmatpush1.msra.mxu0 %v1040
        %1057 = vmatprep.subr.mxu0 0.0
        %1058 = vmatpush1.msra.mxu0 %v1041
        %1059 = vmatprep.subr.mxu0 0.0
        %1060 = vmatpush1.msra.mxu0 %v1042
        %1061 = vmatprep.subr.mxu0 0.0
        %1062 = vmatpush1.msra.mxu0 0.0
        %1063 = vmatprep.subr.mxu0 0.0
        %1064 = vmatpush1.msra.mxu0 0.0
        %1065 = vmatprep.subr.mxu0 0.0
        %1066 = vmatpush1.msra.mxu0 0.0
        %1067 = vmatprep.subr.mxu0 0.0
        %1068 = vmatpush1.msra.mxu0 0.0
        %1069 = vmatprep.subr.mxu0 0.0
        %1070 = vmatpush1.msra.mxu0 0.0
        %1071 = vmatprep.subr.mxu0 0.0
        %1072 = vmatpush1.msra.mxu0 0.0
        %1073 = vmatprep.subr.mxu0 0.0
        %1074 = vmatpush1.msra.mxu0 0.0
        %1075 = vmatprep.subr.mxu0 0.0
        %1076 = vmatpush1.msra.mxu0 0.0
        %1077 = vmatprep.subr.mxu0 0.0
        %1078 = vmatpush1.msra.mxu0 0.0
        %1079 = vmatprep.subr.mxu0 0.0
        %1080 = vmatpush1.msra.mxu0 0.0
        %1081 = vmatprep.subr.mxu0 0.0
        %1082 = vmatpush1.msra.mxu0 0.0
        %1083 = vmatprep.subr.mxu0 0.0
        %1084 = vmatpush1.msra.mxu0 0.0
        %1085 = vmatprep.subr.mxu0 0.0
        %1086 = vmatpush1.msra.mxu0 0.0
        %1087 = vmatprep.subr.mxu0 0.0
        %1088 = vmatpush1.msra.mxu0 0.0
        %1089 = vmatprep.subr.mxu0 0.0
        %1090 = vmatpush1.msra.mxu0 0.0
        %1091 = vmatprep.subr.mxu0 0.0
        %1092 = vmatpush1.msra.mxu0 0.0
        %1093 = vmatprep.subr.mxu0 0.0
        %1094 = vmatpush1.msra.mxu0 0.0
        %1095 = vmatprep.subr.mxu0 0.0
        %1096 = vmatpush1.msra.mxu0 0.0
        %1097 = vmatprep.subr.mxu0 0.0
        %1098 = vmatpush1.msra.mxu0 0.0
        %1099 = vmatprep.subr.mxu0 0.0
        %1100 = vmatpush1.msra.mxu0 0.0
        %1101 = vmatprep.subr.mxu0 0.0
        %1102 = vmatpush1.msra.mxu0 0.0
        %1103 = vmatprep.subr.mxu0 0.0
        %1104 = vmatpush1.msra.mxu0 0.0
        %1105 = vmatprep.subr.mxu0 0.0
        %1106 = vmatpush1.msra.mxu0 0.0
        %1107 = vmatprep.subr.mxu0 0.0
        %1108 = vmatpush1.msra.mxu0 0.0
        %1109 = vmatprep.subr.mxu0 0.0
        %1110 = vmatpush1.msra.mxu0 0.0
        %1111 = vmatprep.subr.mxu0 0.0
        %1112 = vmatpush1.msra.mxu0 0.0
        %1113 = vmatprep.subr.mxu0 0.0
        %1114 = vmatpush1.msra.mxu0 0.0
        %1115 = vmatprep.subr.mxu0 0.0
        %1116 = vmatpush1.msra.mxu0 0.0
        %1117 = vmatprep.mubr.f32.mxu0 0.0
        %1118 = vmatmul.mubr.f32.gmra.mrb[0].mxu0 %v1051
        %v1119 = vpop.f32.mrb[0].mxu0
        %v1120 = vadd.f32 %v1048, %v1119
        %v1121 = vpop.f32.mrb[0].mxu0
        %1122 = vdwg.mxu0
        %1124 = vrot.lane.b32.xlu0 %v1120, 120
        %v1125 = vpop.permute.xlu0 %1124
        %1127 = vrot.lane.b32.xlu0 %v1120, 112
        %v1128 = vpop.permute.xlu0 %1127
        %1130 = vrot.lane.b32.xlu0 %v1120, 104
        %v1131 = vpop.permute.xlu0 %1130
        %v1133 = vcombine.low %v1120, %v1128
        %v1134 = vcombine.high %v1120, %v1128
        %v1136 = vunpack.c.l.s4 1983009808
        %v1137 = vunpack.c.0.s8 %v1136
        %v1138 = vlaneseq
        %v1139 = vshrl.u32 %v1138, 7
        %v1140 = vsub.s32 %v1137, %v1139
        %v1141 = vrot.slane %v1133, %v1140
        %v1143 = vunpack.c.l.s4 1983009808
        %v1144 = vunpack.c.0.s8 %v1143
        %v1145 = vlaneseq
        %v1146 = vshrl.u32 %v1145, 7
        %v1147 = vsub.s32 %v1144, %v1146
        %v1148 = vrot.slane %v1134, %v1147
        %v1149 = vcombine.low %v1125, %v1131
        %v1150 = vcombine.high %v1125, %v1131
        %v1152 = vunpack.c.l.s4 1983009808
        %v1153 = vunpack.c.0.s8 %v1152
        %v1154 = vlaneseq
        %v1155 = vshrl.u32 %v1154, 7
        %v1156 = vsub.s32 %v1153, %v1155
        %v1157 = vrot.slane %v1149, %v1156
        %v1159 = vunpack.c.l.s4 1983009808
        %v1160 = vunpack.c.0.s8 %v1159
        %v1161 = vlaneseq
        %v1162 = vshrl.u32 %v1161, 7
        %v1163 = vsub.s32 %v1160, %v1162
        %v1164 = vrot.slane %v1150, %v1163
        %v1165 = vcombine.low %v1141, %v1157
        %v1166 = vcombine.high %v1141, %v1157
        %v1168 = vunpack.c.l.s4 1934713408
        %v1169 = vunpack.c.0.s8 %v1168
        %v1170 = vlaneseq
        %v1171 = vshrl.u32 %v1170, 7
        %v1172 = vsub.s32 %v1169, %v1171
        %v1173 = vrot.slane %v1165, %v1172
        %v1175 = vunpack.c.l.s4 1934713408
        %v1176 = vunpack.c.0.s8 %v1175
        %v1177 = vlaneseq
        %v1178 = vshrl.u32 %v1177, 7
        %v1179 = vsub.s32 %v1176, %v1178
        %v1180 = vrot.slane %v1166, %v1179
        %v1181 = vcombine.low %v1148, %v1164
        %v1182 = vcombine.high %v1148, %v1164
        %v1184 = vunpack.c.l.s4 1934713408
        %v1185 = vunpack.c.0.s8 %v1184
        %v1186 = vlaneseq
        %v1187 = vshrl.u32 %v1186, 7
        %v1188 = vsub.s32 %v1185, %v1187
        %v1189 = vrot.slane %v1181, %v1188
        %v1191 = vunpack.c.l.s4 1934713408
        %v1192 = vunpack.c.0.s8 %v1191
        %v1193 = vlaneseq
        %v1194 = vshrl.u32 %v1193, 7
        %v1195 = vsub.s32 %v1192, %v1194
        %v1196 = vrot.slane %v1182, %v1195
        %v1197 = vcombine.high %v1173, 0.0
        %v1198 = vcombine.high %v1180, 0.0
        %v1199 = vcombine.high %v1189, 0.0
        %v1200 = vcombine.high %v1196, 0.0
        %v1201 = vcombine.low %v1173, %v1180
        %v1203 = vunpack.c.l.s4 1983009808
        %v1204 = vunpack.c.0.s8 %v1203
        %v1205 = vlaneseq
        %v1206 = vshrl.u32 %v1205, 7
        %v1207 = vsub.s32 %v1204, %v1206
        %v1208 = vrot.slane %v1201, %v1207
        %v1209 = vcombine.low %v1197, %v1198
        %v1211 = vunpack.c.l.s4 1983009808
        %v1212 = vunpack.c.0.s8 %v1211
        %v1213 = vlaneseq
        %v1214 = vshrl.u32 %v1213, 7
        %v1215 = vsub.s32 %v1212, %v1214
        %v1216 = vrot.slane %v1209, %v1215
        %v1217 = vcombine.low %v1189, %v1196
        %v1219 = vunpack.c.l.s4 1983009808
        %v1220 = vunpack.c.0.s8 %v1219
        %v1221 = vlaneseq
        %v1222 = vshrl.u32 %v1221, 7
        %v1223 = vsub.s32 %v1220, %v1222
        %v1224 = vrot.slane %v1217, %v1223
        %v1225 = vcombine.low %v1199, %v1200
        %v1227 = vunpack.c.l.s4 1983009808
        %v1228 = vunpack.c.0.s8 %v1227
        %v1229 = vlaneseq
        %v1230 = vshrl.u32 %v1229, 7
        %v1231 = vsub.s32 %v1228, %v1230
        %v1232 = vrot.slane %v1225, %v1231
        %v1233 = vcombine.low %v1208, %v1216
        %v1234 = vcombine.high %v1208, %v1216
        %v1236 = vunpack.c.l.s4 1934713408
        %v1237 = vunpack.c.0.s8 %v1236
        %v1238 = vlaneseq
        %v1239 = vshrl.u32 %v1238, 7
        %v1240 = vsub.s32 %v1237, %v1239
        %v1241 = vrot.slane %v1233, %v1240
        %v1243 = vunpack.c.l.s4 1934713408
        %v1244 = vunpack.c.0.s8 %v1243
        %v1245 = vlaneseq
        %v1246 = vshrl.u32 %v1245, 7
        %v1247 = vsub.s32 %v1244, %v1246
        %v1248 = vrot.slane %v1234, %v1247
        %v1249 = vcombine.low %v1224, %v1232
        %v1250 = vcombine.high %v1224, %v1232
        %v1252 = vunpack.c.l.s4 1934713408
        %v1253 = vunpack.c.0.s8 %v1252
        %v1254 = vlaneseq
        %v1255 = vshrl.u32 %v1254, 7
        %v1256 = vsub.s32 %v1253, %v1255
        %v1257 = vrot.slane %v1249, %v1256
        %v1259 = vunpack.c.l.s4 1934713408
        %v1260 = vunpack.c.0.s8 %v1259
        %v1261 = vlaneseq
        %v1262 = vshrl.u32 %v1261, 7
        %v1263 = vsub.s32 %v1260, %v1262
        %v1264 = vrot.slane %v1250, %v1263
        %v1265 = vcombine.low %v1241, %v1257
        %v1266 = vcombine.high %v1241, %v1257
        %v1267 = vcombine.low %v1248, %v1264
        %v1268 = vcombine.high %v1248, %v1264
        %v1269 = vmul.f32 %v1265, 0.35355338
        %v1270 = vmul.f32 %v1266, 0.35355338
        %v1271 = vmul.f32 %v1267, 0.35355338
        %v1272 = vmul.f32 %v1268, 0.35355338
        %1273 = vrot.lane.b32.xlu0 %v1120, 96
        %v1274 = vpop.permute.xlu0 %1273
        %1275 = vrot.lane.b32.xlu0 %v1125, 96
        %v1276 = vpop.permute.xlu0 %1275
        %1277 = vrot.lane.b32.xlu0 %v1128, 96
        %v1278 = vpop.permute.xlu0 %1277
        %1279 = vrot.lane.b32.xlu0 %v1131, 96
        %v1280 = vpop.permute.xlu0 %1279
        %v1285 = vcombine.low %v1274, %v1278
        %v1286 = vcombine.high %v1274, %v1278
        %v1288 = vunpack.c.l.s4 1983009808
        %v1289 = vunpack.c.0.s8 %v1288
        %v1290 = vlaneseq
        %v1291 = vshrl.u32 %v1290, 7
        %v1292 = vsub.s32 %v1289, %v1291
        %v1293 = vrot.slane %v1285, %v1292
        %v1295 = vunpack.c.l.s4 1983009808
        %v1296 = vunpack.c.0.s8 %v1295
        %v1297 = vlaneseq
        %v1298 = vshrl.u32 %v1297, 7
        %v1299 = vsub.s32 %v1296, %v1298
        %v1300 = vrot.slane %v1286, %v1299
        %v1301 = vcombine.low %v1276, %v1280
        %v1302 = vcombine.high %v1276, %v1280
        %v1304 = vunpack.c.l.s4 1983009808
        %v1305 = vunpack.c.0.s8 %v1304
        %v1306 = vlaneseq
        %v1307 = vshrl.u32 %v1306, 7
        %v1308 = vsub.s32 %v1305, %v1307
        %v1309 = vrot.slane %v1301, %v1308
        %v1311 = vunpack.c.l.s4 1983009808
        %v1312 = vunpack.c.0.s8 %v1311
        %v1313 = vlaneseq
        %v1314 = vshrl.u32 %v1313, 7
        %v1315 = vsub.s32 %v1312, %v1314
        %v1316 = vrot.slane %v1302, %v1315
        %v1317 = vcombine.low %v1293, %v1309
        %v1318 = vcombine.high %v1293, %v1309
        %v1320 = vunpack.c.l.s4 1934713408
        %v1321 = vunpack.c.0.s8 %v1320
        %v1322 = vlaneseq
        %v1323 = vshrl.u32 %v1322, 7
        %v1324 = vsub.s32 %v1321, %v1323
        %v1325 = vrot.slane %v1317, %v1324
        %v1327 = vunpack.c.l.s4 1934713408
        %v1328 = vunpack.c.0.s8 %v1327
        %v1329 = vlaneseq
        %v1330 = vshrl.u32 %v1329, 7
        %v1331 = vsub.s32 %v1328, %v1330
        %v1332 = vrot.slane %v1318, %v1331
        %v1333 = vcombine.low %v1300, %v1316
        %v1334 = vcombine.high %v1300, %v1316
        %v1336 = vunpack.c.l.s4 1934713408
        %v1337 = vunpack.c.0.s8 %v1336
        %v1338 = vlaneseq
        %v1339 = vshrl.u32 %v1338, 7
        %v1340 = vsub.s32 %v1337, %v1339
        %v1341 = vrot.slane %v1333, %v1340
        %v1343 = vunpack.c.l.s4 1934713408
        %v1344 = vunpack.c.0.s8 %v1343
        %v1345 = vlaneseq
        %v1346 = vshrl.u32 %v1345, 7
        %v1347 = vsub.s32 %v1344, %v1346
        %v1348 = vrot.slane %v1334, %v1347
        %v1349 = vcombine.high %v1325, 0.0
        %v1350 = vcombine.high %v1332, 0.0
        %v1351 = vcombine.high %v1341, 0.0
        %v1352 = vcombine.high %v1348, 0.0
        %v1353 = vcombine.low %v1325, %v1332
        %v1355 = vunpack.c.l.s4 1983009808
        %v1356 = vunpack.c.0.s8 %v1355
        %v1357 = vlaneseq
        %v1358 = vshrl.u32 %v1357, 7
        %v1359 = vsub.s32 %v1356, %v1358
        %v1360 = vrot.slane %v1353, %v1359
        %v1361 = vcombine.low %v1349, %v1350
        %v1363 = vunpack.c.l.s4 1983009808
        %v1364 = vunpack.c.0.s8 %v1363
        %v1365 = vlaneseq
        %v1366 = vshrl.u32 %v1365, 7
        %v1367 = vsub.s32 %v1364, %v1366
        %v1368 = vrot.slane %v1361, %v1367
        %v1369 = vcombine.low %v1341, %v1348
        %v1371 = vunpack.c.l.s4 1983009808
        %v1372 = vunpack.c.0.s8 %v1371
        %v1373 = vlaneseq
        %v1374 = vshrl.u32 %v1373, 7
        %v1375 = vsub.s32 %v1372, %v1374
        %v1376 = vrot.slane %v1369, %v1375
        %v1377 = vcombine.low %v1351, %v1352
        %v1379 = vunpack.c.l.s4 1983009808
        %v1380 = vunpack.c.0.s8 %v1379
        %v1381 = vlaneseq
        %v1382 = vshrl.u32 %v1381, 7
        %v1383 = vsub.s32 %v1380, %v1382
        %v1384 = vrot.slane %v1377, %v1383
        %v1385 = vcombine.low %v1360, %v1368
        %v1386 = vcombine.high %v1360, %v1368
        %v1388 = vunpack.c.l.s4 1934713408
        %v1389 = vunpack.c.0.s8 %v1388
        %v1390 = vlaneseq
        %v1391 = vshrl.u32 %v1390, 7
        %v1392 = vsub.s32 %v1389, %v1391
        %v1393 = vrot.slane %v1385, %v1392
        %v1395 = vunpack.c.l.s4 1934713408
        %v1396 = vunpack.c.0.s8 %v1395
        %v1397 = vlaneseq
        %v1398 = vshrl.u32 %v1397, 7
        %v1399 = vsub.s32 %v1396, %v1398
        %v1400 = vrot.slane %v1386, %v1399
        %v1401 = vcombine.low %v1376, %v1384
        %v1402 = vcombine.high %v1376, %v1384
        %v1404 = vunpack.c.l.s4 1934713408
        %v1405 = vunpack.c.0.s8 %v1404
        %v1406 = vlaneseq
        %v1407 = vshrl.u32 %v1406, 7
        %v1408 = vsub.s32 %v1405, %v1407
        %v1409 = vrot.slane %v1401, %v1408
        %v1411 = vunpack.c.l.s4 1934713408
        %v1412 = vunpack.c.0.s8 %v1411
        %v1413 = vlaneseq
        %v1414 = vshrl.u32 %v1413, 7
        %v1415 = vsub.s32 %v1412, %v1414
        %v1416 = vrot.slane %v1402, %v1415
        %v1417 = vcombine.low %v1393, %v1409
        %v1418 = vcombine.high %v1393, %v1409
        %v1419 = vcombine.low %v1400, %v1416
        %v1420 = vcombine.high %v1400, %v1416
        %1421 = vrot.lane.b32.xlu0 %v1120, 64
        %v1422 = vpop.permute.xlu0 %1421
        %1423 = vrot.lane.b32.xlu0 %v1125, 64
        %v1424 = vpop.permute.xlu0 %1423
        %1425 = vrot.lane.b32.xlu0 %v1128, 64
        %v1426 = vpop.permute.xlu0 %1425
        %1427 = vrot.lane.b32.xlu0 %v1131, 64
        %v1428 = vpop.permute.xlu0 %1427
        %v1433 = vcombine.low %v1422, %v1426
        %v1434 = vcombine.high %v1422, %v1426
        %v1436 = vunpack.c.l.s4 1983009808
        %v1437 = vunpack.c.0.s8 %v1436
        %v1438 = vlaneseq
        %v1439 = vshrl.u32 %v1438, 7
        %v1440 = vsub.s32 %v1437, %v1439
        %v1441 = vrot.slane %v1433, %v1440
        %v1443 = vunpack.c.l.s4 1983009808
        %v1444 = vunpack.c.0.s8 %v1443
        %v1445 = vlaneseq
        %v1446 = vshrl.u32 %v1445, 7
        %v1447 = vsub.s32 %v1444, %v1446
        %v1448 = vrot.slane %v1434, %v1447
        %v1449 = vcombine.low %v1424, %v1428
        %v1450 = vcombine.high %v1424, %v1428
        %v1452 = vunpack.c.l.s4 1983009808
        %v1453 = vunpack.c.0.s8 %v1452
        %v1454 = vlaneseq
        %v1455 = vshrl.u32 %v1454, 7
        %v1456 = vsub.s32 %v1453, %v1455
        %v1457 = vrot.slane %v1449, %v1456
        %v1459 = vunpack.c.l.s4 1983009808
        %v1460 = vunpack.c.0.s8 %v1459
        %v1461 = vlaneseq
        %v1462 = vshrl.u32 %v1461, 7
        %v1463 = vsub.s32 %v1460, %v1462
        %v1464 = vrot.slane %v1450, %v1463
        %v1465 = vcombine.low %v1441, %v1457
        %v1466 = vcombine.high %v1441, %v1457
        %v1468 = vunpack.c.l.s4 1934713408
        %v1469 = vunpack.c.0.s8 %v1468
        %v1470 = vlaneseq
        %v1471 = vshrl.u32 %v1470, 7
        %v1472 = vsub.s32 %v1469, %v1471
        %v1473 = vrot.slane %v1465, %v1472
        %v1475 = vunpack.c.l.s4 1934713408
        %v1476 = vunpack.c.0.s8 %v1475
        %v1477 = vlaneseq
        %v1478 = vshrl.u32 %v1477, 7
        %v1479 = vsub.s32 %v1476, %v1478
        %v1480 = vrot.slane %v1466, %v1479
        %v1481 = vcombine.low %v1448, %v1464
        %v1482 = vcombine.high %v1448, %v1464
        %v1484 = vunpack.c.l.s4 1934713408
        %v1485 = vunpack.c.0.s8 %v1484
        %v1486 = vlaneseq
        %v1487 = vshrl.u32 %v1486, 7
        %v1488 = vsub.s32 %v1485, %v1487
        %v1489 = vrot.slane %v1481, %v1488
        %v1491 = vunpack.c.l.s4 1934713408
        %v1492 = vunpack.c.0.s8 %v1491
        %v1493 = vlaneseq
        %v1494 = vshrl.u32 %v1493, 7
        %v1495 = vsub.s32 %v1492, %v1494
        %v1496 = vrot.slane %v1482, %v1495
        %v1497 = vcombine.high %v1473, 0.0
        %v1498 = vcombine.high %v1480, 0.0
        %v1499 = vcombine.high %v1489, 0.0
        %v1500 = vcombine.high %v1496, 0.0
        %v1501 = vcombine.low %v1473, %v1480
        %v1503 = vunpack.c.l.s4 1983009808
        %v1504 = vunpack.c.0.s8 %v1503
        %v1505 = vlaneseq
        %v1506 = vshrl.u32 %v1505, 7
        %v1507 = vsub.s32 %v1504, %v1506
        %v1508 = vrot.slane %v1501, %v1507
        %v1509 = vcombine.low %v1497, %v1498
        %v1511 = vunpack.c.l.s4 1983009808
        %v1512 = vunpack.c.0.s8 %v1511
        %v1513 = vlaneseq
        %v1514 = vshrl.u32 %v1513, 7
        %v1515 = vsub.s32 %v1512, %v1514
        %v1516 = vrot.slane %v1509, %v1515
        %v1517 = vcombine.low %v1489, %v1496
        %v1519 = vunpack.c.l.s4 1983009808
        %v1520 = vunpack.c.0.s8 %v1519
        %v1521 = vlaneseq
        %v1522 = vshrl.u32 %v1521, 7
        %v1523 = vsub.s32 %v1520, %v1522
        %v1524 = vrot.slane %v1517, %v1523
        %v1525 = vcombine.low %v1499, %v1500
        %v1527 = vunpack.c.l.s4 1983009808
        %v1528 = vunpack.c.0.s8 %v1527
        %v1529 = vlaneseq
        %v1530 = vshrl.u32 %v1529, 7
        %v1531 = vsub.s32 %v1528, %v1530
        %v1532 = vrot.slane %v1525, %v1531
        %v1533 = vcombine.low %v1508, %v1516
        %v1534 = vcombine.high %v1508, %v1516
        %v1536 = vunpack.c.l.s4 1934713408
        %v1537 = vunpack.c.0.s8 %v1536
        %v1538 = vlaneseq
        %v1539 = vshrl.u32 %v1538, 7
        %v1540 = vsub.s32 %v1537, %v1539
        %v1541 = vrot.slane %v1533, %v1540
        %v1543 = vunpack.c.l.s4 1934713408
        %v1544 = vunpack.c.0.s8 %v1543
        %v1545 = vlaneseq
        %v1546 = vshrl.u32 %v1545, 7
        %v1547 = vsub.s32 %v1544, %v1546
        %v1548 = vrot.slane %v1534, %v1547
        %v1549 = vcombine.low %v1524, %v1532
        %v1550 = vcombine.high %v1524, %v1532
        %v1552 = vunpack.c.l.s4 1934713408
        %v1553 = vunpack.c.0.s8 %v1552
        %v1554 = vlaneseq
        %v1555 = vshrl.u32 %v1554, 7
        %v1556 = vsub.s32 %v1553, %v1555
        %v1557 = vrot.slane %v1549, %v1556
        %v1559 = vunpack.c.l.s4 1934713408
        %v1560 = vunpack.c.0.s8 %v1559
        %v1561 = vlaneseq
        %v1562 = vshrl.u32 %v1561, 7
        %v1563 = vsub.s32 %v1560, %v1562
        %v1564 = vrot.slane %v1550, %v1563
        %v1565 = vcombine.low %v1541, %v1557
        %v1566 = vcombine.high %v1541, %v1557
        %v1567 = vcombine.low %v1548, %v1564
        %v1568 = vcombine.high %v1548, %v1564
        %vm1569 = vcmask 64512
        %v1571 = vsel %vm1569, %v1269, 0
        %v1574 = vsel %vm1569, %v1417, 0
        %1576 = vmatprep.subr.mxu0 0.0
        %1577 = vmatpush1.xpose.msra.mxu0 %v1574
        %1578 = vmatprep.subr.mxu0 0.0
        %1579 = vmatpush1.xpose.msra.mxu0 0.0
        %1580 = vmatprep.subr.mxu0 0.0
        %1581 = vmatpush1.xpose.msra.mxu0 0.0
        %1582 = vmatprep.subr.mxu0 0.0
        %1583 = vmatpush1.xpose.msra.mxu0 0.0
        %1584 = vmatprep.subr.mxu0 0.0
        %1585 = vmatpush1.xpose.msra.mxu0 0.0
        %1586 = vmatprep.subr.mxu0 0.0
        %1587 = vmatpush1.xpose.msra.mxu0 0.0
        %1588 = vmatprep.subr.mxu0 0.0
        %1589 = vmatpush1.xpose.msra.mxu0 0.0
        %1590 = vmatprep.subr.mxu0 0.0
        %1591 = vmatpush1.xpose.msra.mxu0 0.0
        %1592 = vmatprep.subr.mxu0 0.0
        %1593 = vmatpush1.xpose.msra.mxu0 0.0
        %1594 = vmatprep.subr.mxu0 0.0
        %1595 = vmatpush1.xpose.msra.mxu0 0.0
        %1596 = vmatprep.subr.mxu0 0.0
        %1597 = vmatpush1.xpose.msra.mxu0 0.0
        %1598 = vmatprep.subr.mxu0 0.0
        %1599 = vmatpush1.xpose.msra.mxu0 0.0
        %1600 = vmatprep.subr.mxu0 0.0
        %1601 = vmatpush1.xpose.msra.mxu0 0.0
        %1602 = vmatprep.subr.mxu0 0.0
        %1603 = vmatpush1.xpose.msra.mxu0 0.0
        %1604 = vmatprep.subr.mxu0 0.0
        %1605 = vmatpush1.xpose.msra.mxu0 0.0
        %1606 = vmatprep.subr.mxu0 0.0
        %1607 = vmatpush1.xpose.msra.mxu0 0.0
        %1608 = vmatprep.subr.mxu0 0.0
        %1609 = vmatpush1.xpose.msra.mxu0 0.0
        %1610 = vmatprep.subr.mxu0 0.0
        %1611 = vmatpush1.xpose.msra.mxu0 0.0
        %1612 = vmatprep.subr.mxu0 0.0
        %1613 = vmatpush1.xpose.msra.mxu0 0.0
        %1614 = vmatprep.subr.mxu0 0.0
        %1615 = vmatpush1.xpose.msra.mxu0 0.0
        %1616 = vmatprep.subr.mxu0 0.0
        %1617 = vmatpush1.xpose.msra.mxu0 0.0
        %1618 = vmatprep.subr.mxu0 0.0
        %1619 = vmatpush1.xpose.msra.mxu0 0.0
        %1620 = vmatprep.subr.mxu0 0.0
        %1621 = vmatpush1.xpose.msra.mxu0 0.0
        %1622 = vmatprep.subr.mxu0 0.0
        %1623 = vmatpush1.xpose.msra.mxu0 0.0
        %1624 = vmatprep.subr.mxu0 0.0
        %1625 = vmatpush1.xpose.msra.mxu0 0.0
        %1626 = vmatprep.subr.mxu0 0.0
        %1627 = vmatpush1.xpose.msra.mxu0 0.0
        %1628 = vmatprep.subr.mxu0 0.0
        %1629 = vmatpush1.xpose.msra.mxu0 0.0
        %1630 = vmatprep.subr.mxu0 0.0
        %1631 = vmatpush1.xpose.msra.mxu0 0.0
        %1632 = vmatprep.subr.mxu0 0.0
        %1633 = vmatpush1.xpose.msra.mxu0 0.0
        %1634 = vmatprep.subr.mxu0 0.0
        %1635 = vmatpush1.xpose.msra.mxu0 0.0
        %1636 = vmatprep.subr.mxu0 0.0
        %1637 = vmatpush1.xpose.msra.mxu0 0.0
        %1638 = vmatprep.subr.mxu0 0.0
        %1639 = vmatpush1.xpose.msra.mxu0 0.0
        %1640 = vmatprep.mubr.f32.mxu0 0.0
        %1641 = vmatmul.mubr.f32.gmra.mrb[0].mxu0 %v1571
        %v1642 = vpop.f32.mrb[0].mxu0
        %v1643 = vadd.f32 0.0, %v1642
        %v1644 = vpop.f32.mrb[0].mxu0
        %1645 = vdwg.mxu0
        %v1647 = vsel %vm1569, %v1270, 0
        %v1650 = vsel %vm1569, %v1418, 0
        %1652 = vmatprep.subr.mxu0 0.0
        %1653 = vmatpush1.xpose.msra.mxu0 %v1650
        %1654 = vmatprep.subr.mxu0 0.0
        %1655 = vmatpush1.xpose.msra.mxu0 0.0
        %1656 = vmatprep.subr.mxu0 0.0
        %1657 = vmatpush1.xpose.msra.mxu0 0.0
        %1658 = vmatprep.subr.mxu0 0.0
        %1659 = vmatpush1.xpose.msra.mxu0 0.0
        %1660 = vmatprep.subr.mxu0 0.0
        %1661 = vmatpush1.xpose.msra.mxu0 0.0
        %1662 = vmatprep.subr.mxu0 0.0
        %1663 = vmatpush1.xpose.msra.mxu0 0.0
        %1664 = vmatprep.subr.mxu0 0.0
        %1665 = vmatpush1.xpose.msra.mxu0 0.0
        %1666 = vmatprep.subr.mxu0 0.0
        %1667 = vmatpush1.xpose.msra.mxu0 0.0
        %1668 = vmatprep.subr.mxu0 0.0
        %1669 = vmatpush1.xpose.msra.mxu0 0.0
        %1670 = vmatprep.subr.mxu0 0.0
        %1671 = vmatpush1.xpose.msra.mxu0 0.0
        %1672 = vmatprep.subr.mxu0 0.0
        %1673 = vmatpush1.xpose.msra.mxu0 0.0
        %1674 = vmatprep.subr.mxu0 0.0
        %1675 = vmatpush1.xpose.msra.mxu0 0.0
        %1676 = vmatprep.subr.mxu0 0.0
        %1677 = vmatpush1.xpose.msra.mxu0 0.0
        %1678 = vmatprep.subr.mxu0 0.0
        %1679 = vmatpush1.xpose.msra.mxu0 0.0
        %1680 = vmatprep.subr.mxu0 0.0
        %1681 = vmatpush1.xpose.msra.mxu0 0.0
        %1682 = vmatprep.subr.mxu0 0.0
        %1683 = vmatpush1.xpose.msra.mxu0 0.0
        %1684 = vmatprep.subr.mxu0 0.0
        %1685 = vmatpush1.xpose.msra.mxu0 0.0
        %1686 = vmatprep.subr.mxu0 0.0
        %1687 = vmatpush1.xpose.msra.mxu0 0.0
        %1688 = vmatprep.subr.mxu0 0.0
        %1689 = vmatpush1.xpose.msra.mxu0 0.0
        %1690 = vmatprep.subr.mxu0 0.0
        %1691 = vmatpush1.xpose.msra.mxu0 0.0
        %1692 = vmatprep.subr.mxu0 0.0
        %1693 = vmatpush1.xpose.msra.mxu0 0.0
        %1694 = vmatprep.subr.mxu0 0.0
        %1695 = vmatpush1.xpose.msra.mxu0 0.0
        %1696 = vmatprep.subr.mxu0 0.0
        %1697 = vmatpush1.xpose.msra.mxu0 0.0
        %1698 = vmatprep.subr.mxu0 0.0
        %1699 = vmatpush1.xpose.msra.mxu0 0.0
        %1700 = vmatprep.subr.mxu0 0.0
        %1701 = vmatpush1.xpose.msra.mxu0 0.0
        %1702 = vmatprep.subr.mxu0 0.0
        %1703 = vmatpush1.xpose.msra.mxu0 0.0
        %1704 = vmatprep.subr.mxu0 0.0
        %1705 = vmatpush1.xpose.msra.mxu0 0.0
        %1706 = vmatprep.subr.mxu0 0.0
        %1707 = vmatpush1.xpose.msra.mxu0 0.0
        %1708 = vmatprep.subr.mxu0 0.0
        %1709 = vmatpush1.xpose.msra.mxu0 0.0
        %1710 = vmatprep.subr.mxu0 0.0
        %1711 = vmatpush1.xpose.msra.mxu0 0.0
        %1712 = vmatprep.subr.mxu0 0.0
        %1713 = vmatpush1.xpose.msra.mxu0 0.0
        %1714 = vmatprep.subr.mxu0 0.0
        %1715 = vmatpush1.xpose.msra.mxu0 0.0
        %1716 = vmatprep.mubr.f32.mxu0 0.0
        %1717 = vmatmul.mubr.f32.gmra.mrb[0].mxu0 %v1647
        %v1718 = vpop.f32.mrb[0].mxu0
        %v1719 = vadd.f32 0.0, %v1718
        %v1720 = vpop.f32.mrb[0].mxu0
        %1721 = vdwg.mxu0
        %v1723 = vsel %vm1569, %v1271, 0
        %v1726 = vsel %vm1569, %v1419, 0
        %1728 = vmatprep.subr.mxu0 0.0
        %1729 = vmatpush1.xpose.msra.mxu0 %v1726
        %1730 = vmatprep.subr.mxu0 0.0
        %1731 = vmatpush1.xpose.msra.mxu0 0.0
        %1732 = vmatprep.subr.mxu0 0.0
        %1733 = vmatpush1.xpose.msra.mxu0 0.0
        %1734 = vmatprep.subr.mxu0 0.0
        %1735 = vmatpush1.xpose.msra.mxu0 0.0
        %1736 = vmatprep.subr.mxu0 0.0
        %1737 = vmatpush1.xpose.msra.mxu0 0.0
        %1738 = vmatprep.subr.mxu0 0.0
        %1739 = vmatpush1.xpose.msra.mxu0 0.0
        %1740 = vmatprep.subr.mxu0 0.0
        %1741 = vmatpush1.xpose.msra.mxu0 0.0
        %1742 = vmatprep.subr.mxu0 0.0
        %1743 = vmatpush1.xpose.msra.mxu0 0.0
        %1744 = vmatprep.subr.mxu0 0.0
        %1745 = vmatpush1.xpose.msra.mxu0 0.0
        %1746 = vmatprep.subr.mxu0 0.0
        %1747 = vmatpush1.xpose.msra.mxu0 0.0
        %1748 = vmatprep.subr.mxu0 0.0
        %1749 = vmatpush1.xpose.msra.mxu0 0.0
        %1750 = vmatprep.subr.mxu0 0.0
        %1751 = vmatpush1.xpose.msra.mxu0 0.0
        %1752 = vmatprep.subr.mxu0 0.0
        %1753 = vmatpush1.xpose.msra.mxu0 0.0
        %1754 = vmatprep.subr.mxu0 0.0
        %1755 = vmatpush1.xpose.msra.mxu0 0.0
        %1756 = vmatprep.subr.mxu0 0.0
        %1757 = vmatpush1.xpose.msra.mxu0 0.0
        %1758 = vmatprep.subr.mxu0 0.0
        %1759 = vmatpush1.xpose.msra.mxu0 0.0
        %1760 = vmatprep.subr.mxu0 0.0
        %1761 = vmatpush1.xpose.msra.mxu0 0.0
        %1762 = vmatprep.subr.mxu0 0.0
        %1763 = vmatpush1.xpose.msra.mxu0 0.0
        %1764 = vmatprep.subr.mxu0 0.0
        %1765 = vmatpush1.xpose.msra.mxu0 0.0
        %1766 = vmatprep.subr.mxu0 0.0
        %1767 = vmatpush1.xpose.msra.mxu0 0.0
        %1768 = vmatprep.subr.mxu0 0.0
        %1769 = vmatpush1.xpose.msra.mxu0 0.0
        %1770 = vmatprep.subr.mxu0 0.0
        %1771 = vmatpush1.xpose.msra.mxu0 0.0
        %1772 = vmatprep.subr.mxu0 0.0
        %1773 = vmatpush1.xpose.msra.mxu0 0.0
        %1774 = vmatprep.subr.mxu0 0.0
        %1775 = vmatpush1.xpose.msra.mxu0 0.0
        %1776 = vmatprep.subr.mxu0 0.0
        %1777 = vmatpush1.xpose.msra.mxu0 0.0
        %1778 = vmatprep.subr.mxu0 0.0
        %1779 = vmatpush1.xpose.msra.mxu0 0.0
        %1780 = vmatprep.subr.mxu0 0.0
        %1781 = vmatpush1.xpose.msra.mxu0 0.0
        %1782 = vmatprep.subr.mxu0 0.0
        %1783 = vmatpush1.xpose.msra.mxu0 0.0
        %1784 = vmatprep.subr.mxu0 0.0
        %1785 = vmatpush1.xpose.msra.mxu0 0.0
        %1786 = vmatprep.subr.mxu0 0.0
        %1787 = vmatpush1.xpose.msra.mxu0 0.0
        %1788 = vmatprep.subr.mxu0 0.0
        %1789 = vmatpush1.xpose.msra.mxu0 0.0
        %1790 = vmatprep.subr.mxu0 0.0
        %1791 = vmatpush1.xpose.msra.mxu0 0.0
        %1792 = vmatprep.mubr.f32.mxu0 0.0
        %1793 = vmatmul.mubr.f32.gmra.mrb[0].mxu0 %v1723
        %v1794 = vpop.f32.mrb[0].mxu0
        %v1795 = vadd.f32 0.0, %v1794
        %v1796 = vpop.f32.mrb[0].mxu0
        %1797 = vdwg.mxu0
        %v1799 = vsel %vm1569, %v1272, 0
        %v1802 = vsel %vm1569, %v1420, 0
        %1804 = vmatprep.subr.mxu0 0.0
        %1805 = vmatpush1.xpose.msra.mxu0 %v1802
        %1806 = vmatprep.subr.mxu0 0.0
        %1807 = vmatpush1.xpose.msra.mxu0 0.0
        %1808 = vmatprep.subr.mxu0 0.0
        %1809 = vmatpush1.xpose.msra.mxu0 0.0
        %1810 = vmatprep.subr.mxu0 0.0
        %1811 = vmatpush1.xpose.msra.mxu0 0.0
        %1812 = vmatprep.subr.mxu0 0.0
        %1813 = vmatpush1.xpose.msra.mxu0 0.0
        %1814 = vmatprep.subr.mxu0 0.0
        %1815 = vmatpush1.xpose.msra.mxu0 0.0
        %1816 = vmatprep.subr.mxu0 0.0
        %1817 = vmatpush1.xpose.msra.mxu0 0.0
        %1818 = vmatprep.subr.mxu0 0.0
        %1819 = vmatpush1.xpose.msra.mxu0 0.0
        %1820 = vmatprep.subr.mxu0 0.0
        %1821 = vmatpush1.xpose.msra.mxu0 0.0
        %1822 = vmatprep.subr.mxu0 0.0
        %1823 = vmatpush1.xpose.msra.mxu0 0.0
        %1824 = vmatprep.subr.mxu0 0.0
        %1825 = vmatpush1.xpose.msra.mxu0 0.0
        %1826 = vmatprep.subr.mxu0 0.0
        %1827 = vmatpush1.xpose.msra.mxu0 0.0
        %1828 = vmatprep.subr.mxu0 0.0
        %1829 = vmatpush1.xpose.msra.mxu0 0.0
        %1830 = vmatprep.subr.mxu0 0.0
        %1831 = vmatpush1.xpose.msra.mxu0 0.0
        %1832 = vmatprep.subr.mxu0 0.0
        %1833 = vmatpush1.xpose.msra.mxu0 0.0
        %1834 = vmatprep.subr.mxu0 0.0
        %1835 = vmatpush1.xpose.msra.mxu0 0.0
        %1836 = vmatprep.subr.mxu0 0.0
        %1837 = vmatpush1.xpose.msra.mxu0 0.0
        %1838 = vmatprep.subr.mxu0 0.0
        %1839 = vmatpush1.xpose.msra.mxu0 0.0
        %1840 = vmatprep.subr.mxu0 0.0
        %1841 = vmatpush1.xpose.msra.mxu0 0.0
        %1842 = vmatprep.subr.mxu0 0.0
        %1843 = vmatpush1.xpose.msra.mxu0 0.0
        %1844 = vmatprep.subr.mxu0 0.0
        %1845 = vmatpush1.xpose.msra.mxu0 0.0
        %1846 = vmatprep.subr.mxu0 0.0
        %1847 = vmatpush1.xpose.msra.mxu0 0.0
        %1848 = vmatprep.subr.mxu0 0.0
        %1849 = vmatpush1.xpose.msra.mxu0 0.0
        %1850 = vmatprep.subr.mxu0 0.0
        %1851 = vmatpush1.xpose.msra.mxu0 0.0
        %1852 = vmatprep.subr.mxu0 0.0
        %1853 = vmatpush1.xpose.msra.mxu0 0.0
        %1854 = vmatprep.subr.mxu0 0.0
        %1855 = vmatpush1.xpose.msra.mxu0 0.0
        %1856 = vmatprep.subr.mxu0 0.0
        %1857 = vmatpush1.xpose.msra.mxu0 0.0
        %1858 = vmatprep.subr.mxu0 0.0
        %1859 = vmatpush1.xpose.msra.mxu0 0.0
        %1860 = vmatprep.subr.mxu0 0.0
        %1861 = vmatpush1.xpose.msra.mxu0 0.0
        %1862 = vmatprep.subr.mxu0 0.0
        %1863 = vmatpush1.xpose.msra.mxu0 0.0
        %1864 = vmatprep.subr.mxu0 0.0
        %1865 = vmatpush1.xpose.msra.mxu0 0.0
        %1866 = vmatprep.subr.mxu0 0.0
        %1867 = vmatpush1.xpose.msra.mxu0 0.0
        %1868 = vmatprep.mubr.f32.mxu0 0.0
        %1869 = vmatmul.mubr.f32.gmra.mrb[0].mxu0 %v1799
        %v1870 = vpop.f32.mrb[0].mxu0
        %v1871 = vadd.f32 0.0, %v1870
        %v1872 = vpop.f32.mrb[0].mxu0
        %1873 = vdwg.mxu0
        %v1874 = vld [vmem:[%s876] sm:$0xff]
        %vm1875 = vcmp.gt.f32.partialorder %v1874, 0.0
        %v1876 = vsel %vm1875, 1, 0
        %vm1877 = vcmp.eq.s32.totalorder %v1876, 1
        %v1878 = vsel %vm1877, %v1643, -1e+09
        %v1879 = vsel %vm1877, %v1719, -1e+09
        %v1880 = vsel %vm1877, %v1795, -1e+09
        %v1881 = vsel %vm1877, %v1871, -1e+09
        %v1882 = vsel %vm1569, %v1878, -inf
        %1883 = vmax.xlane.f32.xlu0 %v1882
        %v1884 = vpop.xlane.xlu0 %1883
        %v1885 = vsel %vm1569, %v1879, -inf
        %1886 = vmax.xlane.f32.xlu0 %v1885
        %v1887 = vpop.xlane.xlu0 %1886
        %v1888 = vsel %vm1569, %v1880, -inf
        %1889 = vmax.xlane.f32.xlu0 %v1888
        %v1890 = vpop.xlane.xlu0 %1889
        %v1891 = vsel %vm1569, %v1881, -inf
        %1892 = vmax.xlane.f32.xlu0 %v1891
        %v1893 = vpop.xlane.xlu0 %1892
        %v1894 = vsub.f32 %v1878, %v1884
        %v1895 = vsub.f32 %v1879, %v1887
        %v1896 = vsub.f32 %v1880, %v1890
        %v1897 = vsub.f32 %v1881, %v1893
        %v1898 = vmul.f32 %v1894, 1.442695
        %v1899 = vpow.pop %v1898
        %v1900 = vmul.f32 %v1895, 1.442695
        %v1901 = vpow.pop %v1900
        %v1902 = vmul.f32 %v1896, 1.442695
        %v1903 = vpow.pop %v1902
        %v1904 = vmul.f32 %v1897, 1.442695
        %v1905 = vpow.pop %v1904
        %v1906 = vsel %vm1569, %v1899, 0.0
        %1907 = vadd.xlane.f32.xlu0 %v1906
        %v1908 = vpop.xlane.xlu0 %1907
        %v1909 = vsel %vm1569, %v1901, 0.0
        %1910 = vadd.xlane.f32.xlu0 %v1909
        %v1911 = vpop.xlane.xlu0 %1910
        %v1912 = vsel %vm1569, %v1903, 0.0
        %1913 = vadd.xlane.f32.xlu0 %v1912
        %v1914 = vpop.xlane.xlu0 %1913
        %v1915 = vsel %vm1569, %v1905, 0.0
        %1916 = vadd.xlane.f32.xlu0 %v1915
        %v1917 = vpop.xlane.xlu0 %1916
        %v1918 = vrcp.pop %v1908
        %v1919 = vrcp.pop %v1911
        %v1920 = vrcp.pop %v1914
        %v1921 = vrcp.pop %v1917
        %v1922 = vmul.f32 %v1899, %v1918
        %v1923 = vmul.f32 %v1901, %v1919
        %v1924 = vmul.f32 %v1903, %v1920
        %v1925 = vmul.f32 %v1905, %v1921
        %v1927 = vsel %vm1569, %v1922, 0
        %1929 = vmatprep.subr.mxu0 0.0
        %1930 = vmatpush1.msra.mxu0 %v1565
        %1931 = vmatprep.subr.mxu0 0.0
        %1932 = vmatpush1.msra.mxu0 0.0
        %1933 = vmatprep.subr.mxu0 0.0
        %1934 = vmatpush1.msra.mxu0 0.0
        %1935 = vmatprep.subr.mxu0 0.0
        %1936 = vmatpush1.msra.mxu0 0.0
        %1937 = vmatprep.subr.mxu0 0.0
        %1938 = vmatpush1.msra.mxu0 0.0
        %1939 = vmatprep.subr.mxu0 0.0
        %1940 = vmatpush1.msra.mxu0 0.0
        %1941 = vmatprep.subr.mxu0 0.0
        %1942 = vmatpush1.msra.mxu0 0.0
        %1943 = vmatprep.subr.mxu0 0.0
        %1944 = vmatpush1.msra.mxu0 0.0
        %1945 = vmatprep.subr.mxu0 0.0
        %1946 = vmatpush1.msra.mxu0 0.0
        %1947 = vmatprep.subr.mxu0 0.0
        %1948 = vmatpush1.msra.mxu0 0.0
        %1949 = vmatprep.subr.mxu0 0.0
        %1950 = vmatpush1.msra.mxu0 0.0
        %1951 = vmatprep.subr.mxu0 0.0
        %1952 = vmatpush1.msra.mxu0 0.0
        %1953 = vmatprep.subr.mxu0 0.0
        %1954 = vmatpush1.msra.mxu0 0.0
        %1955 = vmatprep.subr.mxu0 0.0
        %1956 = vmatpush1.msra.mxu0 0.0
        %1957 = vmatprep.subr.mxu0 0.0
        %1958 = vmatpush1.msra.mxu0 0.0
        %1959 = vmatprep.subr.mxu0 0.0
        %1960 = vmatpush1.msra.mxu0 0.0
        %1961 = vmatprep.subr.mxu0 0.0
        %1962 = vmatpush1.msra.mxu0 0.0
        %1963 = vmatprep.subr.mxu0 0.0
        %1964 = vmatpush1.msra.mxu0 0.0
        %1965 = vmatprep.subr.mxu0 0.0
        %1966 = vmatpush1.msra.mxu0 0.0
        %1967 = vmatprep.subr.mxu0 0.0
        %1968 = vmatpush1.msra.mxu0 0.0
        %1969 = vmatprep.subr.mxu0 0.0
        %1970 = vmatpush1.msra.mxu0 0.0
        %1971 = vmatprep.subr.mxu0 0.0
        %1972 = vmatpush1.msra.mxu0 0.0
        %1973 = vmatprep.subr.mxu0 0.0
        %1974 = vmatpush1.msra.mxu0 0.0
        %1975 = vmatprep.subr.mxu0 0.0
        %1976 = vmatpush1.msra.mxu0 0.0
        %1977 = vmatprep.subr.mxu0 0.0
        %1978 = vmatpush1.msra.mxu0 0.0
        %1979 = vmatprep.subr.mxu0 0.0
        %1980 = vmatpush1.msra.mxu0 0.0
        %1981 = vmatprep.subr.mxu0 0.0
        %1982 = vmatpush1.msra.mxu0 0.0
        %1983 = vmatprep.subr.mxu0 0.0
        %1984 = vmatpush1.msra.mxu0 0.0
        %1985 = vmatprep.subr.mxu0 0.0
        %1986 = vmatpush1.msra.mxu0 0.0
        %1987 = vmatprep.subr.mxu0 0.0
        %1988 = vmatpush1.msra.mxu0 0.0
        %1989 = vmatprep.subr.mxu0 0.0
        %1990 = vmatpush1.msra.mxu0 0.0
        %1991 = vmatprep.subr.mxu0 0.0
        %1992 = vmatpush1.msra.mxu0 0.0
        %1993 = vmatprep.mubr.f32.mxu0 0.0
        %1994 = vmatmul.mubr.f32.gmra.mrb[0].mxu0 %v1927
        %v1995 = vpop.f32.mrb[0].mxu0
        %v1996 = vadd.f32 0.0, %v1995
        %v1997 = vpop.f32.mrb[0].mxu0
        %1998 = vdwg.mxu0
        %v2000 = vsel %vm1569, %v1923, 0
        %2002 = vmatprep.subr.mxu0 0.0
        %2003 = vmatpush1.msra.mxu0 %v1566
        %2004 = vmatprep.subr.mxu0 0.0
        %2005 = vmatpush1.msra.mxu0 0.0
        %2006 = vmatprep.subr.mxu0 0.0
        %2007 = vmatpush1.msra.mxu0 0.0
        %2008 = vmatprep.subr.mxu0 0.0
        %2009 = vmatpush1.msra.mxu0 0.0
        %2010 = vmatprep.subr.mxu0 0.0
        %2011 = vmatpush1.msra.mxu0 0.0
        %2012 = vmatprep.subr.mxu0 0.0
        %2013 = vmatpush1.msra.mxu0 0.0
        %2014 = vmatprep.subr.mxu0 0.0
        %2015 = vmatpush1.msra.mxu0 0.0
        %2016 = vmatprep.subr.mxu0 0.0
        %2017 = vmatpush1.msra.mxu0 0.0
        %2018 = vmatprep.subr.mxu0 0.0
        %2019 = vmatpush1.msra.mxu0 0.0
        %2020 = vmatprep.subr.mxu0 0.0
        %2021 = vmatpush1.msra.mxu0 0.0
        %2022 = vmatprep.subr.mxu0 0.0
        %2023 = vmatpush1.msra.mxu0 0.0
        %2024 = vmatprep.subr.mxu0 0.0
        %2025 = vmatpush1.msra.mxu0 0.0
        %2026 = vmatprep.subr.mxu0 0.0
        %2027 = vmatpush1.msra.mxu0 0.0
        %2028 = vmatprep.subr.mxu0 0.0
        %2029 = vmatpush1.msra.mxu0 0.0
        %2030 = vmatprep.subr.mxu0 0.0
        %2031 = vmatpush1.msra.mxu0 0.0
        %2032 = vmatprep.subr.mxu0 0.0
        %2033 = vmatpush1.msra.mxu0 0.0
        %2034 = vmatprep.subr.mxu0 0.0
        %2035 = vmatpush1.msra.mxu0 0.0
        %2036 = vmatprep.subr.mxu0 0.0
        %2037 = vmatpush1.msra.mxu0 0.0
        %2038 = vmatprep.subr.mxu0 0.0
        %2039 = vmatpush1.msra.mxu0 0.0
        %2040 = vmatprep.subr.mxu0 0.0
        %2041 = vmatpush1.msra.mxu0 0.0
        %2042 = vmatprep.subr.mxu0 0.0
        %2043 = vmatpush1.msra.mxu0 0.0
        %2044 = vmatprep.subr.mxu0 0.0
        %2045 = vmatpush1.msra.mxu0 0.0
        %2046 = vmatprep.subr.mxu0 0.0
        %2047 = vmatpush1.msra.mxu0 0.0
        %2048 = vmatprep.subr.mxu0 0.0
        %2049 = vmatpush1.msra.mxu0 0.0
        %2050 = vmatprep.subr.mxu0 0.0
        %2051 = vmatpush1.msra.mxu0 0.0
        %2052 = vmatprep.subr.mxu0 0.0
        %2053 = vmatpush1.msra.mxu0 0.0
        %2054 = vmatprep.subr.mxu0 0.0
        %2055 = vmatpush1.msra.mxu0 0.0
        %2056 = vmatprep.subr.mxu0 0.0
        %2057 = vmatpush1.msra.mxu0 0.0
        %2058 = vmatprep.subr.mxu0 0.0
        %2059 = vmatpush1.msra.mxu0 0.0
        %2060 = vmatprep.subr.mxu0 0.0
        %2061 = vmatpush1.msra.mxu0 0.0
        %2062 = vmatprep.subr.mxu0 0.0
        %2063 = vmatpush1.msra.mxu0 0.0
        %2064 = vmatprep.subr.mxu0 0.0
        %2065 = vmatpush1.msra.mxu0 0.0
        %2066 = vmatprep.mubr.f32.mxu0 0.0
        %2067 = vmatmul.mubr.f32.gmra.mrb[0].mxu0 %v2000
        %v2068 = vpop.f32.mrb[0].mxu0
        %v2069 = vadd.f32 0.0, %v2068
        %v2070 = vpop.f32.mrb[0].mxu0
        %2071 = vdwg.mxu0
        %v2073 = vsel %vm1569, %v1924, 0
        %2075 = vmatprep.subr.mxu0 0.0
        %2076 = vmatpush1.msra.mxu0 %v1567
        %2077 = vmatprep.subr.mxu0 0.0
        %2078 = vmatpush1.msra.mxu0 0.0
        %2079 = vmatprep.subr.mxu0 0.0
        %2080 = vmatpush1.msra.mxu0 0.0
        %2081 = vmatprep.subr.mxu0 0.0
        %2082 = vmatpush1.msra.mxu0 0.0
        %2083 = vmatprep.subr.mxu0 0.0
        %2084 = vmatpush1.msra.mxu0 0.0
        %2085 = vmatprep.subr.mxu0 0.0
        %2086 = vmatpush1.msra.mxu0 0.0
        %2087 = vmatprep.subr.mxu0 0.0
        %2088 = vmatpush1.msra.mxu0 0.0
        %2089 = vmatprep.subr.mxu0 0.0
        %2090 = vmatpush1.msra.mxu0 0.0
        %2091 = vmatprep.subr.mxu0 0.0
        %2092 = vmatpush1.msra.mxu0 0.0
        %2093 = vmatprep.subr.mxu0 0.0
        %2094 = vmatpush1.msra.mxu0 0.0
        %2095 = vmatprep.subr.mxu0 0.0
        %2096 = vmatpush1.msra.mxu0 0.0
        %2097 = vmatprep.subr.mxu0 0.0
        %2098 = vmatpush1.msra.mxu0 0.0
        %2099 = vmatprep.subr.mxu0 0.0
        %2100 = vmatpush1.msra.mxu0 0.0
        %2101 = vmatprep.subr.mxu0 0.0
        %2102 = vmatpush1.msra.mxu0 0.0
        %2103 = vmatprep.subr.mxu0 0.0
        %2104 = vmatpush1.msra.mxu0 0.0
        %2105 = vmatprep.subr.mxu0 0.0
        %2106 = vmatpush1.msra.mxu0 0.0
        %2107 = vmatprep.subr.mxu0 0.0
        %2108 = vmatpush1.msra.mxu0 0.0
        %2109 = vmatprep.subr.mxu0 0.0
        %2110 = vmatpush1.msra.mxu0 0.0
        %2111 = vmatprep.subr.mxu0 0.0
        %2112 = vmatpush1.msra.mxu0 0.0
        %2113 = vmatprep.subr.mxu0 0.0
        %2114 = vmatpush1.msra.mxu0 0.0
        %2115 = vmatprep.subr.mxu0 0.0
        %2116 = vmatpush1.msra.mxu0 0.0
        %2117 = vmatprep.subr.mxu0 0.0
        %2118 = vmatpush1.msra.mxu0 0.0
        %2119 = vmatprep.subr.mxu0 0.0
        %2120 = vmatpush1.msra.mxu0 0.0
        %2121 = vmatprep.subr.mxu0 0.0
        %2122 = vmatpush1.msra.mxu0 0.0
        %2123 = vmatprep.subr.mxu0 0.0
        %2124 = vmatpush1.msra.mxu0 0.0
        %2125 = vmatprep.subr.mxu0 0.0
        %2126 = vmatpush1.msra.mxu0 0.0
        %2127 = vmatprep.subr.mxu0 0.0
        %2128 = vmatpush1.msra.mxu0 0.0
        %2129 = vmatprep.subr.mxu0 0.0
        %2130 = vmatpush1.msra.mxu0 0.0
        %2131 = vmatprep.subr.mxu0 0.0
        %2132 = vmatpush1.msra.mxu0 0.0
        %2133 = vmatprep.subr.mxu0 0.0
        %2134 = vmatpush1.msra.mxu0 0.0
        %2135 = vmatprep.subr.mxu0 0.0
        %2136 = vmatpush1.msra.mxu0 0.0
        %2137 = vmatprep.subr.mxu0 0.0
        %2138 = vmatpush1.msra.mxu0 0.0
        %2139 = vmatprep.mubr.f32.mxu0 0.0
        %2140 = vmatmul.mubr.f32.gmra.mrb[0].mxu0 %v2073
        %v2141 = vpop.f32.mrb[0].mxu0
        %v2142 = vadd.f32 0.0, %v2141
        %v2143 = vpop.f32.mrb[0].mxu0
        %2144 = vdwg.mxu0
        %v2146 = vsel %vm1569, %v1925, 0
        %2148 = vmatprep.subr.mxu0 0.0
        %2149 = vmatpush1.msra.mxu0 %v1568
        %2150 = vmatprep.subr.mxu0 0.0
        %2151 = vmatpush1.msra.mxu0 0.0
        %2152 = vmatprep.subr.mxu0 0.0
        %2153 = vmatpush1.msra.mxu0 0.0
        %2154 = vmatprep.subr.mxu0 0.0
        %2155 = vmatpush1.msra.mxu0 0.0
        %2156 = vmatprep.subr.mxu0 0.0
        %2157 = vmatpush1.msra.mxu0 0.0
        %2158 = vmatprep.subr.mxu0 0.0
        %2159 = vmatpush1.msra.mxu0 0.0
        %2160 = vmatprep.subr.mxu0 0.0
        %2161 = vmatpush1.msra.mxu0 0.0
        %2162 = vmatprep.subr.mxu0 0.0
        %2163 = vmatpush1.msra.mxu0 0.0
        %2164 = vmatprep.subr.mxu0 0.0
        %2165 = vmatpush1.msra.mxu0 0.0
        %2166 = vmatprep.subr.mxu0 0.0
        %2167 = vmatpush1.msra.mxu0 0.0
        %2168 = vmatprep.subr.mxu0 0.0
        %2169 = vmatpush1.msra.mxu0 0.0
        %2170 = vmatprep.subr.mxu0 0.0
        %2171 = vmatpush1.msra.mxu0 0.0
        %2172 = vmatprep.subr.mxu0 0.0
        %2173 = vmatpush1.msra.mxu0 0.0
        %2174 = vmatprep.subr.mxu0 0.0
        %2175 = vmatpush1.msra.mxu0 0.0
        %2176 = vmatprep.subr.mxu0 0.0
        %2177 = vmatpush1.msra.mxu0 0.0
        %2178 = vmatprep.subr.mxu0 0.0
        %2179 = vmatpush1.msra.mxu0 0.0
        %2180 = vmatprep.subr.mxu0 0.0
        %2181 = vmatpush1.msra.mxu0 0.0
        %2182 = vmatprep.subr.mxu0 0.0
        %2183 = vmatpush1.msra.mxu0 0.0
        %2184 = vmatprep.subr.mxu0 0.0
        %2185 = vmatpush1.msra.mxu0 0.0
        %2186 = vmatprep.subr.mxu0 0.0
        %2187 = vmatpush1.msra.mxu0 0.0
        %2188 = vmatprep.subr.mxu0 0.0
        %2189 = vmatpush1.msra.mxu0 0.0
        %2190 = vmatprep.subr.mxu0 0.0
        %2191 = vmatpush1.msra.mxu0 0.0
        %2192 = vmatprep.subr.mxu0 0.0
        %2193 = vmatpush1.msra.mxu0 0.0
        %2194 = vmatprep.subr.mxu0 0.0
        %2195 = vmatpush1.msra.mxu0 0.0
        %2196 = vmatprep.subr.mxu0 0.0
        %2197 = vmatpush1.msra.mxu0 0.0
        %2198 = vmatprep.subr.mxu0 0.0
        %2199 = vmatpush1.msra.mxu0 0.0
        %2200 = vmatprep.subr.mxu0 0.0
        %2201 = vmatpush1.msra.mxu0 0.0
        %2202 = vmatprep.subr.mxu0 0.0
        %2203 = vmatpush1.msra.mxu0 0.0
        %2204 = vmatprep.subr.mxu0 0.0
        %2205 = vmatpush1.msra.mxu0 0.0
        %2206 = vmatprep.subr.mxu0 0.0
        %2207 = vmatpush1.msra.mxu0 0.0
        %2208 = vmatprep.subr.mxu0 0.0
        %2209 = vmatpush1.msra.mxu0 0.0
        %2210 = vmatprep.subr.mxu0 0.0
        %2211 = vmatpush1.msra.mxu0 0.0
        %2212 = vmatprep.mubr.f32.mxu0 0.0
        %2213 = vmatmul.mubr.f32.gmra.mrb[0].mxu0 %v2146
        %v2214 = vpop.f32.mrb[0].mxu0
        %v2215 = vadd.f32 0.0, %v2214
        %v2216 = vpop.f32.mrb[0].mxu0
        %2217 = vdwg.mxu0
        %v2218 = vcombine.low %v1996, %v2142
        %v2219 = vcombine.high %v1996, %v2142
        %v2221 = vunpack.c.l.s4 1983009808
        %v2222 = vunpack.c.0.s8 %v2221
        %v2223 = vlaneseq
        %v2224 = vshrl.u32 %v2223, 7
        %v2225 = vsub.s32 %v2222, %v2224
        %v2226 = vrot.slane %v2218, %v2225
        %v2228 = vunpack.c.l.s4 1983009808
        %v2229 = vunpack.c.0.s8 %v2228
        %v2230 = vlaneseq
        %v2231 = vshrl.u32 %v2230, 7
        %v2232 = vsub.s32 %v2229, %v2231
        %v2233 = vrot.slane %v2219, %v2232
        %v2234 = vcombine.low %v2069, %v2215
        %v2235 = vcombine.high %v2069, %v2215
        %v2237 = vunpack.c.l.s4 1983009808
        %v2238 = vunpack.c.0.s8 %v2237
        %v2239 = vlaneseq
        %v2240 = vshrl.u32 %v2239, 7
        %v2241 = vsub.s32 %v2238, %v2240
        %v2242 = vrot.slane %v2234, %v2241
        %v2244 = vunpack.c.l.s4 1983009808
        %v2245 = vunpack.c.0.s8 %v2244
        %v2246 = vlaneseq
        %v2247 = vshrl.u32 %v2246, 7
        %v2248 = vsub.s32 %v2245, %v2247
        %v2249 = vrot.slane %v2235, %v2248
        %v2250 = vcombine.low %v2226, %v2242
        %v2251 = vcombine.high %v2226, %v2242
        %v2253 = vunpack.c.l.s4 1934713408
        %v2254 = vunpack.c.0.s8 %v2253
        %v2255 = vlaneseq
        %v2256 = vshrl.u32 %v2255, 7
        %v2257 = vsub.s32 %v2254, %v2256
        %v2258 = vrot.slane %v2250, %v2257
        %v2260 = vunpack.c.l.s4 1934713408
        %v2261 = vunpack.c.0.s8 %v2260
        %v2262 = vlaneseq
        %v2263 = vshrl.u32 %v2262, 7
        %v2264 = vsub.s32 %v2261, %v2263
        %v2265 = vrot.slane %v2251, %v2264
        %v2266 = vcombine.low %v2233, %v2249
        %v2267 = vcombine.high %v2233, %v2249
        %v2269 = vunpack.c.l.s4 1934713408
        %v2270 = vunpack.c.0.s8 %v2269
        %v2271 = vlaneseq
        %v2272 = vshrl.u32 %v2271, 7
        %v2273 = vsub.s32 %v2270, %v2272
        %v2274 = vrot.slane %v2266, %v2273
        %v2276 = vunpack.c.l.s4 1934713408
        %v2277 = vunpack.c.0.s8 %v2276
        %v2278 = vlaneseq
        %v2279 = vshrl.u32 %v2278, 7
        %v2280 = vsub.s32 %v2277, %v2279
        %v2281 = vrot.slane %v2267, %v2280
        %v2282 = vcombine.high %v2258, 0.0
        %v2283 = vcombine.high %v2265, 0.0
        %v2284 = vcombine.high %v2274, 0.0
        %v2285 = vcombine.high %v2281, 0.0
        %v2286 = vcombine.low %v2258, %v2265
        %v2288 = vunpack.c.l.s4 1983009808
        %v2289 = vunpack.c.0.s8 %v2288
        %v2290 = vlaneseq
        %v2291 = vshrl.u32 %v2290, 7
        %v2292 = vsub.s32 %v2289, %v2291
        %v2293 = vrot.slane %v2286, %v2292
        %v2294 = vcombine.low %v2282, %v2283
        %v2296 = vunpack.c.l.s4 1983009808
        %v2297 = vunpack.c.0.s8 %v2296
        %v2298 = vlaneseq
        %v2299 = vshrl.u32 %v2298, 7
        %v2300 = vsub.s32 %v2297, %v2299
        %v2301 = vrot.slane %v2294, %v2300
        %v2302 = vcombine.low %v2274, %v2281
        %v2304 = vunpack.c.l.s4 1983009808
        %v2305 = vunpack.c.0.s8 %v2304
        %v2306 = vlaneseq
        %v2307 = vshrl.u32 %v2306, 7
        %v2308 = vsub.s32 %v2305, %v2307
        %v2309 = vrot.slane %v2302, %v2308
        %v2310 = vcombine.low %v2284, %v2285
        %v2312 = vunpack.c.l.s4 1983009808
        %v2313 = vunpack.c.0.s8 %v2312
        %v2314 = vlaneseq
        %v2315 = vshrl.u32 %v2314, 7
        %v2316 = vsub.s32 %v2313, %v2315
        %v2317 = vrot.slane %v2310, %v2316
        %v2318 = vcombine.low %v2293, %v2301
        %v2319 = vcombine.high %v2293, %v2301
        %v2321 = vunpack.c.l.s4 1934713408
        %v2322 = vunpack.c.0.s8 %v2321
        %v2323 = vlaneseq
        %v2324 = vshrl.u32 %v2323, 7
        %v2325 = vsub.s32 %v2322, %v2324
        %v2326 = vrot.slane %v2318, %v2325
        %v2328 = vunpack.c.l.s4 1934713408
        %v2329 = vunpack.c.0.s8 %v2328
        %v2330 = vlaneseq
        %v2331 = vshrl.u32 %v2330, 7
        %v2332 = vsub.s32 %v2329, %v2331
        %v2333 = vrot.slane %v2319, %v2332
        %v2334 = vcombine.low %v2309, %v2317
        %v2335 = vcombine.high %v2309, %v2317
        %v2337 = vunpack.c.l.s4 1934713408
        %v2338 = vunpack.c.0.s8 %v2337
        %v2339 = vlaneseq
        %v2340 = vshrl.u32 %v2339, 7
        %v2341 = vsub.s32 %v2338, %v2340
        %v2342 = vrot.slane %v2334, %v2341
        %v2344 = vunpack.c.l.s4 1934713408
        %v2345 = vunpack.c.0.s8 %v2344
        %v2346 = vlaneseq
        %v2347 = vshrl.u32 %v2346, 7
        %v2348 = vsub.s32 %v2345, %v2347
        %v2349 = vrot.slane %v2335, %v2348
        %v2350 = vcombine.low %v2326, %v2342
        %v2351 = vcombine.high %v2326, %v2342
        %v2352 = vcombine.low %v2333, %v2349
        %v2353 = vcombine.high %v2333, %v2349
        %2355 = vrot.lane.b32.xlu0 %v2351, 8
        %v2356 = vpop.permute.xlu0 %2355
        %2359 = vrot.lane.b32.xlu0 %v2352, 16
        %v2360 = vpop.permute.xlu0 %2359
        %2363 = vrot.lane.b32.xlu0 %v2353, 24
        %v2364 = vpop.permute.xlu0 %2363
        %v2366 = vsel %vm1569, %v2350, %v2356
        %vm2367 = vcmask 130048
        %v2368 = vsel %vm2367, %v2366, %v2360
        %vm2369 = vcmask 195584
        %v2370 = vsel %vm2369, %v2368, %v2364
        %v2371 = vld [vmem:[%s8] sm:$0xff]
        %v2372 = vld [vmem:[%s8 + $0x8] sm:$0xff]
        %v2373 = vld [vmem:[%s8 + $0x10] sm:$0xff]
        %v2374 = vld [vmem:[%s8 + $0x18] sm:$0xff]
        %v2376 = vsel %vm1001, %v2370, 0
        %2378 = vmatprep.subr.mxu0 0.0
        %2379 = vmatpush1.msra.mxu0 %v2371
        %2380 = vmatprep.subr.mxu0 0.0
        %2381 = vmatpush1.msra.mxu0 %v2372
        %2382 = vmatprep.subr.mxu0 0.0
        %2383 = vmatpush1.msra.mxu0 %v2373
        %2384 = vmatprep.subr.mxu0 0.0
        %2385 = vmatpush1.msra.mxu0 %v2374
        %2386 = vmatprep.subr.mxu0 0.0
        %2387 = vmatpush1.msra.mxu0 0.0
        %2388 = vmatprep.subr.mxu0 0.0
        %2389 = vmatpush1.msra.mxu0 0.0
        %2390 = vmatprep.subr.mxu0 0.0
        %2391 = vmatpush1.msra.mxu0 0.0
        %2392 = vmatprep.subr.mxu0 0.0
        %2393 = vmatpush1.msra.mxu0 0.0
        %2394 = vmatprep.subr.mxu0 0.0
        %2395 = vmatpush1.msra.mxu0 0.0
        %2396 = vmatprep.subr.mxu0 0.0
        %2397 = vmatpush1.msra.mxu0 0.0
        %2398 = vmatprep.subr.mxu0 0.0
        %2399 = vmatpush1.msra.mxu0 0.0
        %2400 = vmatprep.subr.mxu0 0.0
        %2401 = vmatpush1.msra.mxu0 0.0
        %2402 = vmatprep.subr.mxu0 0.0
        %2403 = vmatpush1.msra.mxu0 0.0
        %2404 = vmatprep.subr.mxu0 0.0
        %2405 = vmatpush1.msra.mxu0 0.0
        %2406 = vmatprep.subr.mxu0 0.0
        %2407 = vmatpush1.msra.mxu0 0.0
        %2408 = vmatprep.subr.mxu0 0.0
        %2409 = vmatpush1.msra.mxu0 0.0
        %2410 = vmatprep.subr.mxu0 0.0
        %2411 = vmatpush1.msra.mxu0 0.0
        %2412 = vmatprep.subr.mxu0 0.0
        %2413 = vmatpush1.msra.mxu0 0.0
        %2414 = vmatprep.subr.mxu0 0.0
        %2415 = vmatpush1.msra.mxu0 0.0
        %2416 = vmatprep.subr.mxu0 0.0
        %2417 = vmatpush1.msra.mxu0 0.0
        %2418 = vmatprep.subr.mxu0 0.0
        %2419 = vmatpush1.msra.mxu0 0.0
        %2420 = vmatprep.subr.mxu0 0.0
        %2421 = vmatpush1.msra.mxu0 0.0
        %2422 = vmatprep.subr.mxu0 0.0
        %2423 = vmatpush1.msra.mxu0 0.0
        %2424 = vmatprep.subr.mxu0 0.0
        %2425 = vmatpush1.msra.mxu0 0.0
        %2426 = vmatprep.subr.mxu0 0.0
        %2427 = vmatpush1.msra.mxu0 0.0
        %2428 = vmatprep.subr.mxu0 0.0
        %2429 = vmatpush1.msra.mxu0 0.0
        %2430 = vmatprep.subr.mxu0 0.0
        %2431 = vmatpush1.msra.mxu0 0.0
        %2432 = vmatprep.subr.mxu0 0.0
        %2433 = vmatpush1.msra.mxu0 0.0
        %2434 = vmatprep.subr.mxu0 0.0
        %2435 = vmatpush1.msra.mxu0 0.0
        %2436 = vmatprep.subr.mxu0 0.0
        %2437 = vmatpush1.msra.mxu0 0.0
        %2438 = vmatprep.subr.mxu0 0.0
        %2439 = vmatpush1.msra.mxu0 0.0
        %2440 = vmatprep.subr.mxu0 0.0
        %2441 = vmatpush1.msra.mxu0 0.0
        %2442 = vmatprep.mubr.f32.mxu0 0.0
        %2443 = vmatmul.mubr.f32.gmra.mrb[0].mxu0 %v2376
        %v2444 = vpop.f32.mrb[0].mxu0
        %v2445 = vadd.f32 0.0, %v2444
        %v2446 = vpop.f32.mrb[0].mxu0
        %2447 = vdwg.mxu0
        %v2448 = vadd.f32 %v999, %v2445
        %v2449 = vld [vmem:[#allocation14] sm:$0x1]
        %v2451 = vlaneseq
        %v2452 = vshrl.u32 %v2451, 7
        %v2453 = vsub.s32 0, %v2452
        %v2454 = vrot.slane %v2449, %v2453
        %v2456 = vadd.f32 %v2448, %v2454
        %v2457 = vsel %vm1001, %v2456, 0.0
        %2458 = vadd.xlane.f32.xlu0 %v2457
        %v2459 = vpop.xlane.xlu0 %2458
        %v2460 = vmul.f32 %v2459, %v1005
        %v2461 = vsub.f32 %v2456, %v2460
        %v2462 = vmul.f32 %v2461, %v2461
        %v2463 = vsel %vm1001, %v2462, 0.0
        %2464 = vadd.xlane.f32.xlu0 %v2463
        %v2465 = vpop.xlane.xlu0 %2464
        %v2466 = vmul.f32 %v2465, 0.032258064
        %v2467 = vrsqrt.pop %v2466
        %v2468 = vmul.f32 %v2466, %v2467
        %vm2469 = vcmp.eq.f32.partialorder %v2466, inf
        %v2470 = vsel %vm2469, %v2466, %v2468
        %vm2471 = vcmp.eq.f32.partialorder %v2466, 0.0
        %v2472 = vand.u32 %v2466, 2147483648
        %v2473 = vsel %vm2471, %v2472, %v2470
        %v2474 = vadd.f32 %v2473, 1e-06
        %v2475 = vrcp.pop %v2474
        %v2476 = vld [vmem:[#allocation16] sm:$0x1]
        %v2478 = vlaneseq
        %v2479 = vshrl.u32 %v2478, 7
        %v2480 = vsub.s32 0, %v2479
        %v2481 = vrot.slane %v2476, %v2480
        %v2483 = vmul.f32 %v2481, %v2461
        %v2484 = vmul.f32 %v2483, %v2475
        %v2485 = vld [vmem:[#allocation17] sm:$0x1]
        %v2487 = vlaneseq
        %v2488 = vshrl.u32 %v2487, 7
        %v2489 = vsub.s32 0, %v2488
        %v2490 = vrot.slane %v2485, %v2489
        %v2492 = vadd.f32 %v2484, %v2490
        %v2493 = vld [vmem:[%s12] sm:$0xff]
        %v2494 = vld [vmem:[%s12 + $0x8] sm:$0xff]
        %v2495 = vld [vmem:[%s12 + $0x10] sm:$0xff]
        %v2496 = vld [vmem:[%s12 + $0x18] sm:$0xff]
        %v2497 = vld [vmem:[#allocation19] sm:$0x1]
        %v2499 = vlaneseq
        %v2500 = vshrl.u32 %v2499, 7
        %v2501 = vsub.s32 0, %v2500
        %v2502 = vrot.slane %v2497, %v2501
        %v2505 = vsel %vm1001, %v2492, 0
        %2507 = vmatprep.subr.mxu0 0.0
        %2508 = vmatpush1.msra.mxu0 %v2493
        %2509 = vmatprep.subr.mxu0 0.0
        %2510 = vmatpush1.msra.mxu0 %v2494
        %2511 = vmatprep.subr.mxu0 0.0
        %2512 = vmatpush1.msra.mxu0 %v2495
        %2513 = vmatprep.subr.mxu0 0.0
        %2514 = vmatpush1.msra.mxu0 %v2496
        %2515 = vmatprep.subr.mxu0 0.0
        %2516 = vmatpush1.msra.mxu0 0.0
        %2517 = vmatprep.subr.mxu0 0.0
        %2518 = vmatpush1.msra.mxu0 0.0
        %2519 = vmatprep.subr.mxu0 0.0
        %2520 = vmatpush1.msra.mxu0 0.0
        %2521 = vmatprep.subr.mxu0 0.0
        %2522 = vmatpush1.msra.mxu0 0.0
        %2523 = vmatprep.subr.mxu0 0.0
        %2524 = vmatpush1.msra.mxu0 0.0
        %2525 = vmatprep.subr.mxu0 0.0
        %2526 = vmatpush1.msra.mxu0 0.0
        %2527 = vmatprep.subr.mxu0 0.0
        %2528 = vmatpush1.msra.mxu0 0.0
        %2529 = vmatprep.subr.mxu0 0.0
        %2530 = vmatpush1.msra.mxu0 0.0
        %2531 = vmatprep.subr.mxu0 0.0
        %2532 = vmatpush1.msra.mxu0 0.0
        %2533 = vmatprep.subr.mxu0 0.0
        %2534 = vmatpush1.msra.mxu0 0.0
        %2535 = vmatprep.subr.mxu0 0.0
        %2536 = vmatpush1.msra.mxu0 0.0
        %2537 = vmatprep.subr.mxu0 0.0
        %2538 = vmatpush1.msra.mxu0 0.0
        %2539 = vmatprep.subr.mxu0 0.0
        %2540 = vmatpush1.msra.mxu0 0.0
        %2541 = vmatprep.subr.mxu0 0.0
        %2542 = vmatpush1.msra.mxu0 0.0
        %2543 = vmatprep.subr.mxu0 0.0
        %2544 = vmatpush1.msra.mxu0 0.0
        %2545 = vmatprep.subr.mxu0 0.0
        %2546 = vmatpush1.msra.mxu0 0.0
        %2547 = vmatprep.subr.mxu0 0.0
        %2548 = vmatpush1.msra.mxu0 0.0
        %2549 = vmatprep.subr.mxu0 0.0
        %2550 = vmatpush1.msra.mxu0 0.0
        %2551 = vmatprep.subr.mxu0 0.0
        %2552 = vmatpush1.msra.mxu0 0.0
        %2553 = vmatprep.subr.mxu0 0.0
        %2554 = vmatpush1.msra.mxu0 0.0
        %2555 = vmatprep.subr.mxu0 0.0
        %2556 = vmatpush1.msra.mxu0 0.0
        %2557 = vmatprep.subr.mxu0 0.0
        %2558 = vmatpush1.msra.mxu0 0.0
        %2559 = vmatprep.subr.mxu0 0.0
        %2560 = vmatpush1.msra.mxu0 0.0
        %2561 = vmatprep.subr.mxu0 0.0
        %2562 = vmatpush1.msra.mxu0 0.0
        %2563 = vmatprep.subr.mxu0 0.0
        %2564 = vmatpush1.msra.mxu0 0.0
        %2565 = vmatprep.subr.mxu0 0.0
        %2566 = vmatpush1.msra.mxu0 0.0
        %2567 = vmatprep.subr.mxu0 0.0
        %2568 = vmatpush1.msra.mxu0 0.0
        %2569 = vmatprep.subr.mxu0 0.0
        %2570 = vmatpush1.msra.mxu0 0.0
        %2571 = vmatprep.mubr.f32.mxu0 0.0
        %2572 = vmatmul.mubr.f32.gmra.mrb[0].mxu0 %v2505
        %v2573 = vpop.f32.mrb[0].mxu0
        %v2574 = vadd.f32 %v2502, %v2573
        %v2575 = vpop.f32.mrb[0].mxu0
        %2576 = vdwg.mxu0
        %2578 = vrot.lane.b32.xlu0 %v2574, 120
        %v2579 = vpop.permute.xlu0 %2578
        %2581 = vrot.lane.b32.xlu0 %v2574, 112
        %v2582 = vpop.permute.xlu0 %2581
        %2584 = vrot.lane.b32.xlu0 %v2574, 104
        %v2585 = vpop.permute.xlu0 %2584
        %v2587 = vcombine.low %v2574, %v2582
        %v2588 = vcombine.high %v2574, %v2582
        %v2590 = vunpack.c.l.s4 1983009808
        %v2591 = vunpack.c.0.s8 %v2590
        %v2592 = vlaneseq
        %v2593 = vshrl.u32 %v2592, 7
        %v2594 = vsub.s32 %v2591, %v2593
        %v2595 = vrot.slane %v2587, %v2594
        %v2597 = vunpack.c.l.s4 1983009808
        %v2598 = vunpack.c.0.s8 %v2597
        %v2599 = vlaneseq
        %v2600 = vshrl.u32 %v2599, 7
        %v2601 = vsub.s32 %v2598, %v2600
        %v2602 = vrot.slane %v2588, %v2601
        %v2603 = vcombine.low %v2579, %v2585
        %v2604 = vcombine.high %v2579, %v2585
        %v2606 = vunpack.c.l.s4 1983009808
        %v2607 = vunpack.c.0.s8 %v2606
        %v2608 = vlaneseq
        %v2609 = vshrl.u32 %v2608, 7
        %v2610 = vsub.s32 %v2607, %v2609
        %v2611 = vrot.slane %v2603, %v2610
        %v2613 = vunpack.c.l.s4 1983009808
        %v2614 = vunpack.c.0.s8 %v2613
        %v2615 = vlaneseq
        %v2616 = vshrl.u32 %v2615, 7
        %v2617 = vsub.s32 %v2614, %v2616
        %v2618 = vrot.slane %v2604, %v2617
        %v2619 = vcombine.low %v2595, %v2611
        %v2620 = vcombine.high %v2595, %v2611
        %v2622 = vunpack.c.l.s4 1934713408
        %v2623 = vunpack.c.0.s8 %v2622
        %v2624 = vlaneseq
        %v2625 = vshrl.u32 %v2624, 7
        %v2626 = vsub.s32 %v2623, %v2625
        %v2627 = vrot.slane %v2619, %v2626
        %v2629 = vunpack.c.l.s4 1934713408
        %v2630 = vunpack.c.0.s8 %v2629
        %v2631 = vlaneseq
        %v2632 = vshrl.u32 %v2631, 7
        %v2633 = vsub.s32 %v2630, %v2632
        %v2634 = vrot.slane %v2620, %v2633
        %v2635 = vcombine.low %v2602, %v2618
        %v2636 = vcombine.high %v2602, %v2618
        %v2638 = vunpack.c.l.s4 1934713408
        %v2639 = vunpack.c.0.s8 %v2638
        %v2640 = vlaneseq
        %v2641 = vshrl.u32 %v2640, 7
        %v2642 = vsub.s32 %v2639, %v2641
        %v2643 = vrot.slane %v2635, %v2642
        %v2645 = vunpack.c.l.s4 1934713408
        %v2646 = vunpack.c.0.s8 %v2645
        %v2647 = vlaneseq
        %v2648 = vshrl.u32 %v2647, 7
        %v2649 = vsub.s32 %v2646, %v2648
        %v2650 = vrot.slane %v2636, %v2649
        %v2651 = vcombine.high %v2627, 0.0
        %v2652 = vcombine.high %v2634, 0.0
        %v2653 = vcombine.high %v2643, 0.0
        %v2654 = vcombine.high %v2650, 0.0
        %v2655 = vcombine.low %v2627, %v2634
        %v2657 = vunpack.c.l.s4 1983009808
        %v2658 = vunpack.c.0.s8 %v2657
        %v2659 = vlaneseq
        %v2660 = vshrl.u32 %v2659, 7
        %v2661 = vsub.s32 %v2658, %v2660
        %v2662 = vrot.slane %v2655, %v2661
        %v2663 = vcombine.low %v2651, %v2652
        %v2665 = vunpack.c.l.s4 1983009808
        %v2666 = vunpack.c.0.s8 %v2665
        %v2667 = vlaneseq
        %v2668 = vshrl.u32 %v2667, 7
        %v2669 = vsub.s32 %v2666, %v2668
        %v2670 = vrot.slane %v2663, %v2669
        %v2671 = vcombine.low %v2643, %v2650
        %v2673 = vunpack.c.l.s4 1983009808
        %v2674 = vunpack.c.0.s8 %v2673
        %v2675 = vlaneseq
        %v2676 = vshrl.u32 %v2675, 7
        %v2677 = vsub.s32 %v2674, %v2676
        %v2678 = vrot.slane %v2671, %v2677
        %v2679 = vcombine.low %v2653, %v2654
        %v2681 = vunpack.c.l.s4 1983009808
        %v2682 = vunpack.c.0.s8 %v2681
        %v2683 = vlaneseq
        %v2684 = vshrl.u32 %v2683, 7
        %v2685 = vsub.s32 %v2682, %v2684
        %v2686 = vrot.slane %v2679, %v2685
        %v2687 = vcombine.low %v2662, %v2670
        %v2688 = vcombine.high %v2662, %v2670
        %v2690 = vunpack.c.l.s4 1934713408
        %v2691 = vunpack.c.0.s8 %v2690
        %v2692 = vlaneseq
        %v2693 = vshrl.u32 %v2692, 7
        %v2694 = vsub.s32 %v2691, %v2693
        %v2695 = vrot.slane %v2687, %v2694
        %v2697 = vunpack.c.l.s4 1934713408
        %v2698 = vunpack.c.0.s8 %v2697
        %v2699 = vlaneseq
        %v2700 = vshrl.u32 %v2699, 7
        %v2701 = vsub.s32 %v2698, %v2700
        %v2702 = vrot.slane %v2688, %v2701
        %v2703 = vcombine.low %v2678, %v2686
        %v2704 = vcombine.high %v2678, %v2686
        %v2706 = vunpack.c.l.s4 1934713408
        %v2707 = vunpack.c.0.s8 %v2706
        %v2708 = vlaneseq
        %v2709 = vshrl.u32 %v2708, 7
        %v2710 = vsub.s32 %v2707, %v2709
        %v2711 = vrot.slane %v2703, %v2710
        %v2713 = vunpack.c.l.s4 1934713408
        %v2714 = vunpack.c.0.s8 %v2713
        %v2715 = vlaneseq
        %v2716 = vshrl.u32 %v2715, 7
        %v2717 = vsub.s32 %v2714, %v2716
        %v2718 = vrot.slane %v2704, %v2717
        %v2719 = vcombine.low %v2695, %v2711
        %v2720 = vcombine.high %v2695, %v2711
        %v2721 = vcombine.low %v2702, %v2718
        %v2722 = vcombine.high %v2702, %v2718
        %v2723 = vmul.f32 %v2719, 0.35355338
        %v2724 = vmul.f32 %v2720, 0.35355338
        %v2725 = vmul.f32 %v2721, 0.35355338
        %v2726 = vmul.f32 %v2722, 0.35355338
        %v2727 = vld [vmem:[%s14] sm:$0xff]
        %v2728 = vld [vmem:[%s14 + $0x8] sm:$0xff]
        %v2729 = vld [vmem:[%s14 + $0x10] sm:$0xff]
        %v2730 = vld [vmem:[%s14 + $0x18] sm:$0xff]
        %v2731 = vld [vmem:[#allocation20] sm:$0x1]
        %v2733 = vlaneseq
        %v2734 = vshrl.u32 %v2733, 7
        %v2735 = vsub.s32 0, %v2734
        %v2736 = vrot.slane %v2731, %v2735
        %v2739 = vsel %vm1001, %v1000, 0
        %2741 = vmatprep.subr.mxu0 0.0
        %2742 = vmatpush1.msra.mxu0 %v2727
        %2743 = vmatprep.subr.mxu0 0.0
        %2744 = vmatpush1.msra.mxu0 %v2728
        %2745 = vmatprep.subr.mxu0 0.0
        %2746 = vmatpush1.msra.mxu0 %v2729
        %2747 = vmatprep.subr.mxu0 0.0
        %2748 = vmatpush1.msra.mxu0 %v2730
        %2749 = vmatprep.subr.mxu0 0.0
        %2750 = vmatpush1.msra.mxu0 0.0
        %2751 = vmatprep.subr.mxu0 0.0
        %2752 = vmatpush1.msra.mxu0 0.0
        %2753 = vmatprep.subr.mxu0 0.0
        %2754 = vmatpush1.msra.mxu0 0.0
        %2755 = vmatprep.subr.mxu0 0.0
        %2756 = vmatpush1.msra.mxu0 0.0
        %2757 = vmatprep.subr.mxu0 0.0
        %2758 = vmatpush1.msra.mxu0 0.0
        %2759 = vmatprep.subr.mxu0 0.0
        %2760 = vmatpush1.msra.mxu0 0.0
        %2761 = vmatprep.subr.mxu0 0.0
        %2762 = vmatpush1.msra.mxu0 0.0
        %2763 = vmatprep.subr.mxu0 0.0
        %2764 = vmatpush1.msra.mxu0 0.0
        %2765 = vmatprep.subr.mxu0 0.0
        %2766 = vmatpush1.msra.mxu0 0.0
        %2767 = vmatprep.subr.mxu0 0.0
        %2768 = vmatpush1.msra.mxu0 0.0
        %2769 = vmatprep.subr.mxu0 0.0
        %2770 = vmatpush1.msra.mxu0 0.0
        %2771 = vmatprep.subr.mxu0 0.0
        %2772 = vmatpush1.msra.mxu0 0.0
        %2773 = vmatprep.subr.mxu0 0.0
        %2774 = vmatpush1.msra.mxu0 0.0
        %2775 = vmatprep.subr.mxu0 0.0
        %2776 = vmatpush1.msra.mxu0 0.0
        %2777 = vmatprep.subr.mxu0 0.0
        %2778 = vmatpush1.msra.mxu0 0.0
        %2779 = vmatprep.subr.mxu0 0.0
        %2780 = vmatpush1.msra.mxu0 0.0
        %2781 = vmatprep.subr.mxu0 0.0
        %2782 = vmatpush1.msra.mxu0 0.0
        %2783 = vmatprep.subr.mxu0 0.0
        %2784 = vmatpush1.msra.mxu0 0.0
        %2785 = vmatprep.subr.mxu0 0.0
        %2786 = vmatpush1.msra.mxu0 0.0
        %2787 = vmatprep.subr.mxu0 0.0
        %2788 = vmatpush1.msra.mxu0 0.0
        %2789 = vmatprep.subr.mxu0 0.0
        %2790 = vmatpush1.msra.mxu0 0.0
        %2791 = vmatprep.subr.mxu0 0.0
        %2792 = vmatpush1.msra.mxu0 0.0
        %2793 = vmatprep.subr.mxu0 0.0
        %2794 = vmatpush1.msra.mxu0 0.0
        %2795 = vmatprep.subr.mxu0 0.0
        %2796 = vmatpush1.msra.mxu0 0.0
        %2797 = vmatprep.subr.mxu0 0.0
        %2798 = vmatpush1.msra.mxu0 0.0
        %2799 = vmatprep.subr.mxu0 0.0
        %2800 = vmatpush1.msra.mxu0 0.0
        %2801 = vmatprep.subr.mxu0 0.0
        %2802 = vmatpush1.msra.mxu0 0.0
        %2803 = vmatprep.subr.mxu0 0.0
        %2804 = vmatpush1.msra.mxu0 0.0
        %2805 = vmatprep.mubr.f32.mxu0 0.0
        %2806 = vmatmul.mubr.f32.gmra.mrb[0].mxu0 %v2739
        %v2807 = vpop.f32.mrb[0].mxu0
        %v2808 = vadd.f32 %v2736, %v2807
        %v2809 = vpop.f32.mrb[0].mxu0
        %2810 = vdwg.mxu0
        %2812 = vrot.lane.b32.xlu0 %v2808, 120
        %v2813 = vpop.permute.xlu0 %2812
        %2815 = vrot.lane.b32.xlu0 %v2808, 112
        %v2816 = vpop.permute.xlu0 %2815
        %2818 = vrot.lane.b32.xlu0 %v2808, 104
        %v2819 = vpop.permute.xlu0 %2818
        %v2821 = vcombine.low %v2808, %v2816
        %v2822 = vcombine.high %v2808, %v2816
        %v2824 = vunpack.c.l.s4 1983009808
        %v2825 = vunpack.c.0.s8 %v2824
        %v2826 = vlaneseq
        %v2827 = vshrl.u32 %v2826, 7
        %v2828 = vsub.s32 %v2825, %v2827
        %v2829 = vrot.slane %v2821, %v2828
        %v2831 = vunpack.c.l.s4 1983009808
        %v2832 = vunpack.c.0.s8 %v2831
        %v2833 = vlaneseq
        %v2834 = vshrl.u32 %v2833, 7
        %v2835 = vsub.s32 %v2832, %v2834
        %v2836 = vrot.slane %v2822, %v2835
        %v2837 = vcombine.low %v2813, %v2819
        %v2838 = vcombine.high %v2813, %v2819
        %v2840 = vunpack.c.l.s4 1983009808
        %v2841 = vunpack.c.0.s8 %v2840
        %v2842 = vlaneseq
        %v2843 = vshrl.u32 %v2842, 7
        %v2844 = vsub.s32 %v2841, %v2843
        %v2845 = vrot.slane %v2837, %v2844
        %v2847 = vunpack.c.l.s4 1983009808
        %v2848 = vunpack.c.0.s8 %v2847
        %v2849 = vlaneseq
        %v2850 = vshrl.u32 %v2849, 7
        %v2851 = vsub.s32 %v2848, %v2850
        %v2852 = vrot.slane %v2838, %v2851
        %v2853 = vcombine.low %v2829, %v2845
        %v2854 = vcombine.high %v2829, %v2845
        %v2856 = vunpack.c.l.s4 1934713408
        %v2857 = vunpack.c.0.s8 %v2856
        %v2858 = vlaneseq
        %v2859 = vshrl.u32 %v2858, 7
        %v2860 = vsub.s32 %v2857, %v2859
        %v2861 = vrot.slane %v2853, %v2860
        %v2863 = vunpack.c.l.s4 1934713408
        %v2864 = vunpack.c.0.s8 %v2863
        %v2865 = vlaneseq
        %v2866 = vshrl.u32 %v2865, 7
        %v2867 = vsub.s32 %v2864, %v2866
        %v2868 = vrot.slane %v2854, %v2867
        %v2869 = vcombine.low %v2836, %v2852
        %v2870 = vcombine.high %v2836, %v2852
        %v2872 = vunpack.c.l.s4 1934713408
        %v2873 = vunpack.c.0.s8 %v2872
        %v2874 = vlaneseq
        %v2875 = vshrl.u32 %v2874, 7
        %v2876 = vsub.s32 %v2873, %v2875
        %v2877 = vrot.slane %v2869, %v2876
        %v2879 = vunpack.c.l.s4 1934713408
        %v2880 = vunpack.c.0.s8 %v2879
        %v2881 = vlaneseq
        %v2882 = vshrl.u32 %v2881, 7
        %v2883 = vsub.s32 %v2880, %v2882
        %v2884 = vrot.slane %v2870, %v2883
        %v2885 = vcombine.high %v2861, 0.0
        %v2886 = vcombine.high %v2868, 0.0
        %v2887 = vcombine.high %v2877, 0.0
        %v2888 = vcombine.high %v2884, 0.0
        %v2889 = vcombine.low %v2861, %v2868
        %v2891 = vunpack.c.l.s4 1983009808
        %v2892 = vunpack.c.0.s8 %v2891
        %v2893 = vlaneseq
        %v2894 = vshrl.u32 %v2893, 7
        %v2895 = vsub.s32 %v2892, %v2894
        %v2896 = vrot.slane %v2889, %v2895
        %v2897 = vcombine.low %v2885, %v2886
        %v2899 = vunpack.c.l.s4 1983009808
        %v2900 = vunpack.c.0.s8 %v2899
        %v2901 = vlaneseq
        %v2902 = vshrl.u32 %v2901, 7
        %v2903 = vsub.s32 %v2900, %v2902
        %v2904 = vrot.slane %v2897, %v2903
        %v2905 = vcombine.low %v2877, %v2884
        %v2907 = vunpack.c.l.s4 1983009808
        %v2908 = vunpack.c.0.s8 %v2907
        %v2909 = vlaneseq
        %v2910 = vshrl.u32 %v2909, 7
        %v2911 = vsub.s32 %v2908, %v2910
        %v2912 = vrot.slane %v2905, %v2911
        %v2913 = vcombine.low %v2887, %v2888
        %v2915 = vunpack.c.l.s4 1983009808
        %v2916 = vunpack.c.0.s8 %v2915
        %v2917 = vlaneseq
        %v2918 = vshrl.u32 %v2917, 7
        %v2919 = vsub.s32 %v2916, %v2918
        %v2920 = vrot.slane %v2913, %v2919
        %v2921 = vcombine.low %v2896, %v2904
        %v2922 = vcombine.high %v2896, %v2904
        %v2924 = vunpack.c.l.s4 1934713408
        %v2925 = vunpack.c.0.s8 %v2924
        %v2926 = vlaneseq
        %v2927 = vshrl.u32 %v2926, 7
        %v2928 = vsub.s32 %v2925, %v2927
        %v2929 = vrot.slane %v2921, %v2928
        %v2931 = vunpack.c.l.s4 1934713408
        %v2932 = vunpack.c.0.s8 %v2931
        %v2933 = vlaneseq
        %v2934 = vshrl.u32 %v2933, 7
        %v2935 = vsub.s32 %v2932, %v2934
        %v2936 = vrot.slane %v2922, %v2935
        %v2937 = vcombine.low %v2912, %v2920
        %v2938 = vcombine.high %v2912, %v2920
        %v2940 = vunpack.c.l.s4 1934713408
        %v2941 = vunpack.c.0.s8 %v2940
        %v2942 = vlaneseq
        %v2943 = vshrl.u32 %v2942, 7
        %v2944 = vsub.s32 %v2941, %v2943
        %v2945 = vrot.slane %v2937, %v2944
        %v2947 = vunpack.c.l.s4 1934713408
        %v2948 = vunpack.c.0.s8 %v2947
        %v2949 = vlaneseq
        %v2950 = vshrl.u32 %v2949, 7
        %v2951 = vsub.s32 %v2948, %v2950
        %v2952 = vrot.slane %v2938, %v2951
        %v2953 = vcombine.low %v2929, %v2945
        %v2954 = vcombine.high %v2929, %v2945
        %v2955 = vcombine.low %v2936, %v2952
        %v2956 = vcombine.high %v2936, %v2952
        %2957 = vrot.lane.b32.xlu0 %v2808, 96
        %v2958 = vpop.permute.xlu0 %2957
        %2959 = vrot.lane.b32.xlu0 %v2813, 96
        %v2960 = vpop.permute.xlu0 %2959
        %2961 = vrot.lane.b32.xlu0 %v2816, 96
        %v2962 = vpop.permute.xlu0 %2961
        %2963 = vrot.lane.b32.xlu0 %v2819, 96
        %v2964 = vpop.permute.xlu0 %2963
        %v2969 = vcombine.low %v2958, %v2962
        %v2970 = vcombine.high %v2958, %v2962
        %v2972 = vunpack.c.l.s4 1983009808
        %v2973 = vunpack.c.0.s8 %v2972
        %v2974 = vlaneseq
        %v2975 = vshrl.u32 %v2974, 7
        %v2976 = vsub.s32 %v2973, %v2975
        %v2977 = vrot.slane %v2969, %v2976
        %v2979 = vunpack.c.l.s4 1983009808
        %v2980 = vunpack.c.0.s8 %v2979
        %v2981 = vlaneseq
        %v2982 = vshrl.u32 %v2981, 7
        %v2983 = vsub.s32 %v2980, %v2982
        %v2984 = vrot.slane %v2970, %v2983
        %v2985 = vcombine.low %v2960, %v2964
        %v2986 = vcombine.high %v2960, %v2964
        %v2988 = vunpack.c.l.s4 1983009808
        %v2989 = vunpack.c.0.s8 %v2988
        %v2990 = vlaneseq
        %v2991 = vshrl.u32 %v2990, 7
        %v2992 = vsub.s32 %v2989, %v2991
        %v2993 = vrot.slane %v2985, %v2992
        %v2995 = vunpack.c.l.s4 1983009808
        %v2996 = vunpack.c.0.s8 %v2995
        %v2997 = vlaneseq
        %v2998 = vshrl.u32 %v2997, 7
        %v2999 = vsub.s32 %v2996, %v2998
        %v3000 = vrot.slane %v2986, %v2999
        %v3001 = vcombine.low %v2977, %v2993
        %v3002 = vcombine.high %v2977, %v2993
        %v3004 = vunpack.c.l.s4 1934713408
        %v3005 = vunpack.c.0.s8 %v3004
        %v3006 = vlaneseq
        %v3007 = vshrl.u32 %v3006, 7
        %v3008 = vsub.s32 %v3005, %v3007
        %v3009 = vrot.slane %v3001, %v3008
        %v3011 = vunpack.c.l.s4 1934713408
        %v3012 = vunpack.c.0.s8 %v3011
        %v3013 = vlaneseq
        %v3014 = vshrl.u32 %v3013, 7
        %v3015 = vsub.s32 %v3012, %v3014
        %v3016 = vrot.slane %v3002, %v3015
        %v3017 = vcombine.low %v2984, %v3000
        %v3018 = vcombine.high %v2984, %v3000
        %v3020 = vunpack.c.l.s4 1934713408
        %v3021 = vunpack.c.0.s8 %v3020
        %v3022 = vlaneseq
        %v3023 = vshrl.u32 %v3022, 7
        %v3024 = vsub.s32 %v3021, %v3023
        %v3025 = vrot.slane %v3017, %v3024
        %v3027 = vunpack.c.l.s4 1934713408
        %v3028 = vunpack.c.0.s8 %v3027
        %v3029 = vlaneseq
        %v3030 = vshrl.u32 %v3029, 7
        %v3031 = vsub.s32 %v3028, %v3030
        %v3032 = vrot.slane %v3018, %v3031
        %v3033 = vcombine.high %v3009, 0.0
        %v3034 = vcombine.high %v3016, 0.0
        %v3035 = vcombine.high %v3025, 0.0
        %v3036 = vcombine.high %v3032, 0.0
        %v3037 = vcombine.low %v3009, %v3016
        %v3039 = vunpack.c.l.s4 1983009808
        %v3040 = vunpack.c.0.s8 %v3039
        %v3041 = vlaneseq
        %v3042 = vshrl.u32 %v3041, 7
        %v3043 = vsub.s32 %v3040, %v3042
        %v3044 = vrot.slane %v3037, %v3043
        %v3045 = vcombine.low %v3033, %v3034
        %v3047 = vunpack.c.l.s4 1983009808
        %v3048 = vunpack.c.0.s8 %v3047
        %v3049 = vlaneseq
        %v3050 = vshrl.u32 %v3049, 7
        %v3051 = vsub.s32 %v3048, %v3050
        %v3052 = vrot.slane %v3045, %v3051
        %v3053 = vcombine.low %v3025, %v3032
        %v3055 = vunpack.c.l.s4 1983009808
        %v3056 = vunpack.c.0.s8 %v3055
        %v3057 = vlaneseq
        %v3058 = vshrl.u32 %v3057, 7
        %v3059 = vsub.s32 %v3056, %v3058
        %v3060 = vrot.slane %v3053, %v3059
        %v3061 = vcombine.low %v3035, %v3036
        %v3063 = vunpack.c.l.s4 1983009808
        %v3064 = vunpack.c.0.s8 %v3063
        %v3065 = vlaneseq
        %v3066 = vshrl.u32 %v3065, 7
        %v3067 = vsub.s32 %v3064, %v3066
        %v3068 = vrot.slane %v3061, %v3067
        %v3069 = vcombine.low %v3044, %v3052
        %v3070 = vcombine.high %v3044, %v3052
        %v3072 = vunpack.c.l.s4 1934713408
        %v3073 = vunpack.c.0.s8 %v3072
        %v3074 = vlaneseq
        %v3075 = vshrl.u32 %v3074, 7
        %v3076 = vsub.s32 %v3073, %v3075
        %v3077 = vrot.slane %v3069, %v3076
        %v3079 = vunpack.c.l.s4 1934713408
        %v3080 = vunpack.c.0.s8 %v3079
        %v3081 = vlaneseq
        %v3082 = vshrl.u32 %v3081, 7
        %v3083 = vsub.s32 %v3080, %v3082
        %v3084 = vrot.slane %v3070, %v3083
        %v3085 = vcombine.low %v3060, %v3068
        %v3086 = vcombine.high %v3060, %v3068
        %v3088 = vunpack.c.l.s4 1934713408
        %v3089 = vunpack.c.0.s8 %v3088
        %v3090 = vlaneseq
        %v3091 = vshrl.u32 %v3090, 7
        %v3092 = vsub.s32 %v3089, %v3091
        %v3093 = vrot.slane %v3085, %v3092
        %v3095 = vunpack.c.l.s4 1934713408
        %v3096 = vunpack.c.0.s8 %v3095
        %v3097 = vlaneseq
        %v3098 = vshrl.u32 %v3097, 7
        %v3099 = vsub.s32 %v3096, %v3098
        %v3100 = vrot.slane %v3086, %v3099
        %v3101 = vcombine.low %v3077, %v3093
        %v3102 = vcombine.high %v3077, %v3093
        %v3103 = vcombine.low %v3084, %v3100
        %v3104 = vcombine.high %v3084, %v3100
        %v3106 = vsel %vm1569, %v2723, 0
        %v3109 = vsel %vm1569, %v2953, 0
        %3111 = vmatprep.subr.mxu0 0.0
        %3112 = vmatpush1.xpose.msra.mxu0 %v3109
        %3113 = vmatprep.subr.mxu0 0.0
        %3114 = vmatpush1.xpose.msra.mxu0 0.0
        %3115 = vmatprep.subr.mxu0 0.0
        %3116 = vmatpush1.xpose.msra.mxu0 0.0
        %3117 = vmatprep.subr.mxu0 0.0
        %3118 = vmatpush1.xpose.msra.mxu0 0.0
        %3119 = vmatprep.subr.mxu0 0.0
        %3120 = vmatpush1.xpose.msra.mxu0 0.0
        %3121 = vmatprep.subr.mxu0 0.0
        %3122 = vmatpush1.xpose.msra.mxu0 0.0
        %3123 = vmatprep.subr.mxu0 0.0
        %3124 = vmatpush1.xpose.msra.mxu0 0.0
        %3125 = vmatprep.subr.mxu0 0.0
        %3126 = vmatpush1.xpose.msra.mxu0 0.0
        %3127 = vmatprep.subr.mxu0 0.0
        %3128 = vmatpush1.xpose.msra.mxu0 0.0
        %3129 = vmatprep.subr.mxu0 0.0
        %3130 = vmatpush1.xpose.msra.mxu0 0.0
        %3131 = vmatprep.subr.mxu0 0.0
        %3132 = vmatpush1.xpose.msra.mxu0 0.0
        %3133 = vmatprep.subr.mxu0 0.0
        %3134 = vmatpush1.xpose.msra.mxu0 0.0
        %3135 = vmatprep.subr.mxu0 0.0
        %3136 = vmatpush1.xpose.msra.mxu0 0.0
        %3137 = vmatprep.subr.mxu0 0.0
        %3138 = vmatpush1.xpose.msra.mxu0 0.0
        %3139 = vmatprep.subr.mxu0 0.0
        %3140 = vmatpush1.xpose.msra.mxu0 0.0
        %3141 = vmatprep.subr.mxu0 0.0
        %3142 = vmatpush1.xpose.msra.mxu0 0.0
        %3143 = vmatprep.subr.mxu0 0.0
        %3144 = vmatpush1.xpose.msra.mxu0 0.0
        %3145 = vmatprep.subr.mxu0 0.0
        %3146 = vmatpush1.xpose.msra.mxu0 0.0
        %3147 = vmatprep.subr.mxu0 0.0
        %3148 = vmatpush1.xpose.msra.mxu0 0.0
        %3149 = vmatprep.subr.mxu0 0.0
        %3150 = vmatpush1.xpose.msra.mxu0 0.0
        %3151 = vmatprep.subr.mxu0 0.0
        %3152 = vmatpush1.xpose.msra.mxu0 0.0
        %3153 = vmatprep.subr.mxu0 0.0
        %3154 = vmatpush1.xpose.msra.mxu0 0.0
        %3155 = vmatprep.subr.mxu0 0.0
        %3156 = vmatpush1.xpose.msra.mxu0 0.0
        %3157 = vmatprep.subr.mxu0 0.0
        %3158 = vmatpush1.xpose.msra.mxu0 0.0
        %3159 = vmatprep.subr.mxu0 0.0
        %3160 = vmatpush1.xpose.msra.mxu0 0.0
        %3161 = vmatprep.subr.mxu0 0.0
        %3162 = vmatpush1.xpose.msra.mxu0 0.0
        %3163 = vmatprep.subr.mxu0 0.0
        %3164 = vmatpush1.xpose.msra.mxu0 0.0
        %3165 = vmatprep.subr.mxu0 0.0
        %3166 = vmatpush1.xpose.msra.mxu0 0.0
        %3167 = vmatprep.subr.mxu0 0.0
        %3168 = vmatpush1.xpose.msra.mxu0 0.0
        %3169 = vmatprep.subr.mxu0 0.0
        %3170 = vmatpush1.xpose.msra.mxu0 0.0
        %3171 = vmatprep.subr.mxu0 0.0
        %3172 = vmatpush1.xpose.msra.mxu0 0.0
        %3173 = vmatprep.subr.mxu0 0.0
        %3174 = vmatpush1.xpose.msra.mxu0 0.0
        %3175 = vmatprep.mubr.f32.mxu0 0.0
        %3176 = vmatmul.mubr.f32.gmra.mrb[0].mxu0 %v3106
        %v3177 = vpop.f32.mrb[0].mxu0
        %v3178 = vadd.f32 0.0, %v3177
        %v3179 = vpop.f32.mrb[0].mxu0
        %3180 = vdwg.mxu0
        %v3182 = vsel %vm1569, %v2724, 0
        %v3185 = vsel %vm1569, %v2954, 0
        %3187 = vmatprep.subr.mxu0 0.0
        %3188 = vmatpush1.xpose.msra.mxu0 %v3185
        %3189 = vmatprep.subr.mxu0 0.0
        %3190 = vmatpush1.xpose.msra.mxu0 0.0
        %3191 = vmatprep.subr.mxu0 0.0
        %3192 = vmatpush1.xpose.msra.mxu0 0.0
        %3193 = vmatprep.subr.mxu0 0.0
        %3194 = vmatpush1.xpose.msra.mxu0 0.0
        %3195 = vmatprep.subr.mxu0 0.0
        %3196 = vmatpush1.xpose.msra.mxu0 0.0
        %3197 = vmatprep.subr.mxu0 0.0
        %3198 = vmatpush1.xpose.msra.mxu0 0.0
        %3199 = vmatprep.subr.mxu0 0.0
        %3200 = vmatpush1.xpose.msra.mxu0 0.0
        %3201 = vmatprep.subr.mxu0 0.0
        %3202 = vmatpush1.xpose.msra.mxu0 0.0
        %3203 = vmatprep.subr.mxu0 0.0
        %3204 = vmatpush1.xpose.msra.mxu0 0.0
        %3205 = vmatprep.subr.mxu0 0.0
        %3206 = vmatpush1.xpose.msra.mxu0 0.0
        %3207 = vmatprep.subr.mxu0 0.0
        %3208 = vmatpush1.xpose.msra.mxu0 0.0
        %3209 = vmatprep.subr.mxu0 0.0
        %3210 = vmatpush1.xpose.msra.mxu0 0.0
        %3211 = vmatprep.subr.mxu0 0.0
        %3212 = vmatpush1.xpose.msra.mxu0 0.0
        %3213 = vmatprep.subr.mxu0 0.0
        %3214 = vmatpush1.xpose.msra.mxu0 0.0
        %3215 = vmatprep.subr.mxu0 0.0
        %3216 = vmatpush1.xpose.msra.mxu0 0.0
        %3217 = vmatprep.subr.mxu0 0.0
        %3218 = vmatpush1.xpose.msra.mxu0 0.0
        %3219 = vmatprep.subr.mxu0 0.0
        %3220 = vmatpush1.xpose.msra.mxu0 0.0
        %3221 = vmatprep.subr.mxu0 0.0
        %3222 = vmatpush1.xpose.msra.mxu0 0.0
        %3223 = vmatprep.subr.mxu0 0.0
        %3224 = vmatpush1.xpose.msra.mxu0 0.0
        %3225 = vmatprep.subr.mxu0 0.0
        %3226 = vmatpush1.xpose.msra.mxu0 0.0
        %3227 = vmatprep.subr.mxu0 0.0
        %3228 = vmatpush1.xpose.msra.mxu0 0.0
        %3229 = vmatprep.subr.mxu0 0.0
        %3230 = vmatpush1.xpose.msra.mxu0 0.0
        %3231 = vmatprep.subr.mxu0 0.0
        %3232 = vmatpush1.xpose.msra.mxu0 0.0
        %3233 = vmatprep.subr.mxu0 0.0
        %3234 = vmatpush1.xpose.msra.mxu0 0.0
        %3235 = vmatprep.subr.mxu0 0.0
        %3236 = vmatpush1.xpose.msra.mxu0 0.0
        %3237 = vmatprep.subr.mxu0 0.0
        %3238 = vmatpush1.xpose.msra.mxu0 0.0
        %3239 = vmatprep.subr.mxu0 0.0
        %3240 = vmatpush1.xpose.msra.mxu0 0.0
        %3241 = vmatprep.subr.mxu0 0.0
        %3242 = vmatpush1.xpose.msra.mxu0 0.0
        %3243 = vmatprep.subr.mxu0 0.0
        %3244 = vmatpush1.xpose.msra.mxu0 0.0
        %3245 = vmatprep.subr.mxu0 0.0
        %3246 = vmatpush1.xpose.msra.mxu0 0.0
        %3247 = vmatprep.subr.mxu0 0.0
        %3248 = vmatpush1.xpose.msra.mxu0 0.0
        %3249 = vmatprep.subr.mxu0 0.0
        %3250 = vmatpush1.xpose.msra.mxu0 0.0
        %3251 = vmatprep.mubr.f32.mxu0 0.0
        %3252 = vmatmul.mubr.f32.gmra.mrb[0].mxu0 %v3182
        %v3253 = vpop.f32.mrb[0].mxu0
        %v3254 = vadd.f32 0.0, %v3253
        %v3255 = vpop.f32.mrb[0].mxu0
        %3256 = vdwg.mxu0
        %v3258 = vsel %vm1569, %v2725, 0
        %v3261 = vsel %vm1569, %v2955, 0
        %3263 = vmatprep.subr.mxu0 0.0
        %3264 = vmatpush1.xpose.msra.mxu0 %v3261
        %3265 = vmatprep.subr.mxu0 0.0
        %3266 = vmatpush1.xpose.msra.mxu0 0.0
        %3267 = vmatprep.subr.mxu0 0.0
        %3268 = vmatpush1.xpose.msra.mxu0 0.0
        %3269 = vmatprep.subr.mxu0 0.0
        %3270 = vmatpush1.xpose.msra.mxu0 0.0
        %3271 = vmatprep.subr.mxu0 0.0
        %3272 = vmatpush1.xpose.msra.mxu0 0.0
        %3273 = vmatprep.subr.mxu0 0.0
        %3274 = vmatpush1.xpose.msra.mxu0 0.0
        %3275 = vmatprep.subr.mxu0 0.0
        %3276 = vmatpush1.xpose.msra.mxu0 0.0
        %3277 = vmatprep.subr.mxu0 0.0
        %3278 = vmatpush1.xpose.msra.mxu0 0.0
        %3279 = vmatprep.subr.mxu0 0.0
        %3280 = vmatpush1.xpose.msra.mxu0 0.0
        %3281 = vmatprep.subr.mxu0 0.0
        %3282 = vmatpush1.xpose.msra.mxu0 0.0
        %3283 = vmatprep.subr.mxu0 0.0
        %3284 = vmatpush1.xpose.msra.mxu0 0.0
        %3285 = vmatprep.subr.mxu0 0.0
        %3286 = vmatpush1.xpose.msra.mxu0 0.0
        %3287 = vmatprep.subr.mxu0 0.0
        %3288 = vmatpush1.xpose.msra.mxu0 0.0
        %3289 = vmatprep.subr.mxu0 0.0
        %3290 = vmatpush1.xpose.msra.mxu0 0.0
        %3291 = vmatprep.subr.mxu0 0.0
        %3292 = vmatpush1.xpose.msra.mxu0 0.0
        %3293 = vmatprep.subr.mxu0 0.0
        %3294 = vmatpush1.xpose.msra.mxu0 0.0
        %3295 = vmatprep.subr.mxu0 0.0
        %3296 = vmatpush1.xpose.msra.mxu0 0.0
        %3297 = vmatprep.subr.mxu0 0.0
        %3298 = vmatpush1.xpose.msra.mxu0 0.0
        %3299 = vmatprep.subr.mxu0 0.0
        %3300 = vmatpush1.xpose.msra.mxu0 0.0
        %3301 = vmatprep.subr.mxu0 0.0
        %3302 = vmatpush1.xpose.msra.mxu0 0.0
        %3303 = vmatprep.subr.mxu0 0.0
        %3304 = vmatpush1.xpose.msra.mxu0 0.0
        %3305 = vmatprep.subr.mxu0 0.0
        %3306 = vmatpush1.xpose.msra.mxu0 0.0
        %3307 = vmatprep.subr.mxu0 0.0
        %3308 = vmatpush1.xpose.msra.mxu0 0.0
        %3309 = vmatprep.subr.mxu0 0.0
        %3310 = vmatpush1.xpose.msra.mxu0 0.0
        %3311 = vmatprep.subr.mxu0 0.0
        %3312 = vmatpush1.xpose.msra.mxu0 0.0
        %3313 = vmatprep.subr.mxu0 0.0
        %3314 = vmatpush1.xpose.msra.mxu0 0.0
        %3315 = vmatprep.subr.mxu0 0.0
        %3316 = vmatpush1.xpose.msra.mxu0 0.0
        %3317 = vmatprep.subr.mxu0 0.0
        %3318 = vmatpush1.xpose.msra.mxu0 0.0
        %3319 = vmatprep.subr.mxu0 0.0
        %3320 = vmatpush1.xpose.msra.mxu0 0.0
        %3321 = vmatprep.subr.mxu0 0.0
        %3322 = vmatpush1.xpose.msra.mxu0 0.0
        %3323 = vmatprep.subr.mxu0 0.0
        %3324 = vmatpush1.xpose.msra.mxu0 0.0
        %3325 = vmatprep.subr.mxu0 0.0
        %3326 = vmatpush1.xpose.msra.mxu0 0.0
        %3327 = vmatprep.mubr.f32.mxu0 0.0
        %3328 = vmatmul.mubr.f32.gmra.mrb[0].mxu0 %v3258
        %v3329 = vpop.f32.mrb[0].mxu0
        %v3330 = vadd.f32 0.0, %v3329
        %v3331 = vpop.f32.mrb[0].mxu0
        %3332 = vdwg.mxu0
        %v3334 = vsel %vm1569, %v2726, 0
        %v3337 = vsel %vm1569, %v2956, 0
        %3339 = vmatprep.subr.mxu0 0.0
        %3340 = vmatpush1.xpose.msra.mxu0 %v3337
        %3341 = vmatprep.subr.mxu0 0.0
        %3342 = vmatpush1.xpose.msra.mxu0 0.0
        %3343 = vmatprep.subr.mxu0 0.0
        %3344 = vmatpush1.xpose.msra.mxu0 0.0
        %3345 = vmatprep.subr.mxu0 0.0
        %3346 = vmatpush1.xpose.msra.mxu0 0.0
        %3347 = vmatprep.subr.mxu0 0.0
        %3348 = vmatpush1.xpose.msra.mxu0 0.0
        %3349 = vmatprep.subr.mxu0 0.0
        %3350 = vmatpush1.xpose.msra.mxu0 0.0
        %3351 = vmatprep.subr.mxu0 0.0
        %3352 = vmatpush1.xpose.msra.mxu0 0.0
        %3353 = vmatprep.subr.mxu0 0.0
        %3354 = vmatpush1.xpose.msra.mxu0 0.0
        %3355 = vmatprep.subr.mxu0 0.0
        %3356 = vmatpush1.xpose.msra.mxu0 0.0
        %3357 = vmatprep.subr.mxu0 0.0
        %3358 = vmatpush1.xpose.msra.mxu0 0.0
        %3359 = vmatprep.subr.mxu0 0.0
        %3360 = vmatpush1.xpose.msra.mxu0 0.0
        %3361 = vmatprep.subr.mxu0 0.0
        %3362 = vmatpush1.xpose.msra.mxu0 0.0
        %3363 = vmatprep.subr.mxu0 0.0
        %3364 = vmatpush1.xpose.msra.mxu0 0.0
        %3365 = vmatprep.subr.mxu0 0.0
        %3366 = vmatpush1.xpose.msra.mxu0 0.0
        %3367 = vmatprep.subr.mxu0 0.0
        %3368 = vmatpush1.xpose.msra.mxu0 0.0
        %3369 = vmatprep.subr.mxu0 0.0
        %3370 = vmatpush1.xpose.msra.mxu0 0.0
        %3371 = vmatprep.subr.mxu0 0.0
        %3372 = vmatpush1.xpose.msra.mxu0 0.0
        %3373 = vmatprep.subr.mxu0 0.0
        %3374 = vmatpush1.xpose.msra.mxu0 0.0
        %3375 = vmatprep.subr.mxu0 0.0
        %3376 = vmatpush1.xpose.msra.mxu0 0.0
        %3377 = vmatprep.subr.mxu0 0.0
        %3378 = vmatpush1.xpose.msra.mxu0 0.0
        %3379 = vmatprep.subr.mxu0 0.0
        %3380 = vmatpush1.xpose.msra.mxu0 0.0
        %3381 = vmatprep.subr.mxu0 0.0
        %3382 = vmatpush1.xpose.msra.mxu0 0.0
        %3383 = vmatprep.subr.mxu0 0.0
        %3384 = vmatpush1.xpose.msra.mxu0 0.0
        %3385 = vmatprep.subr.mxu0 0.0
        %3386 = vmatpush1.xpose.msra.mxu0 0.0
        %3387 = vmatprep.subr.mxu0 0.0
        %3388 = vmatpush1.xpose.msra.mxu0 0.0
        %3389 = vmatprep.subr.mxu0 0.0
        %3390 = vmatpush1.xpose.msra.mxu0 0.0
        %3391 = vmatprep.subr.mxu0 0.0
        %3392 = vmatpush1.xpose.msra.mxu0 0.0
        %3393 = vmatprep.subr.mxu0 0.0
        %3394 = vmatpush1.xpose.msra.mxu0 0.0
        %3395 = vmatprep.subr.mxu0 0.0
        %3396 = vmatpush1.xpose.msra.mxu0 0.0
        %3397 = vmatprep.subr.mxu0 0.0
        %3398 = vmatpush1.xpose.msra.mxu0 0.0
        %3399 = vmatprep.subr.mxu0 0.0
        %3400 = vmatpush1.xpose.msra.mxu0 0.0
        %3401 = vmatprep.subr.mxu0 0.0
        %3402 = vmatpush1.xpose.msra.mxu0 0.0
        %3403 = vmatprep.mubr.f32.mxu0 0.0
        %3404 = vmatmul.mubr.f32.gmra.mrb[0].mxu0 %v3334
        %v3405 = vpop.f32.mrb[0].mxu0
        %v3406 = vadd.f32 0.0, %v3405
        %v3407 = vpop.f32.mrb[0].mxu0
        %3408 = vdwg.mxu0
        %v3409 = vld [vmem:[%s867] sm:$0x1]
        %vm3410 = vcmp.gt.f32.partialorder %v3409, 0.0
        %v3411 = vsel %vm3410, 1, 0
        %v3412 = vlaneseq
        %v3413 = vshrl.u32 %v3412, 7
        %v3414 = vsub.s32 0, %v3413
        %v3415 = vrot.slane %v3411, %v3414
        %vm3416 = vcmp.eq.s32.totalorder %v3415, 1
        %v3417 = vsel %vm3416, %v3178, -1e+09
        %v3418 = vsel %vm3416, %v3254, -1e+09
        %v3419 = vsel %vm3416, %v3330, -1e+09
        %v3420 = vsel %vm3416, %v3406, -1e+09
        %v3421 = vsel %vm1569, %v3417, -inf
        %3422 = vmax.xlane.f32.xlu0 %v3421
        %v3423 = vpop.xlane.xlu0 %3422
        %v3424 = vsel %vm1569, %v3418, -inf
        %3425 = vmax.xlane.f32.xlu0 %v3424
        %v3426 = vpop.xlane.xlu0 %3425
        %v3427 = vsel %vm1569, %v3419, -inf
        %3428 = vmax.xlane.f32.xlu0 %v3427
        %v3429 = vpop.xlane.xlu0 %3428
        %v3430 = vsel %vm1569, %v3420, -inf
        %3431 = vmax.xlane.f32.xlu0 %v3430
        %v3432 = vpop.xlane.xlu0 %3431
        %v3433 = vsub.f32 %v3417, %v3423
        %v3434 = vsub.f32 %v3418, %v3426
        %v3435 = vsub.f32 %v3419, %v3429
        %v3436 = vsub.f32 %v3420, %v3432
        %v3437 = vmul.f32 %v3433, 1.442695
        %v3438 = vpow.pop %v3437
        %v3439 = vmul.f32 %v3434, 1.442695
        %v3440 = vpow.pop %v3439
        %v3441 = vmul.f32 %v3435, 1.442695
        %v3442 = vpow.pop %v3441
        %v3443 = vmul.f32 %v3436, 1.442695
        %v3444 = vpow.pop %v3443
        %v3445 = vsel %vm1569, %v3438, 0.0
        %3446 = vadd.xlane.f32.xlu0 %v3445
        %v3447 = vpop.xlane.xlu0 %3446
        %v3448 = vsel %vm1569, %v3440, 0.0
        %3449 = vadd.xlane.f32.xlu0 %v3448
        %v3450 = vpop.xlane.xlu0 %3449
        %v3451 = vsel %vm1569, %v3442, 0.0
        %3452 = vadd.xlane.f32.xlu0 %v3451
        %v3453 = vpop.xlane.xlu0 %3452
        %v3454 = vsel %vm1569, %v3444, 0.0
        %3455 = vadd.xlane.f32.xlu0 %v3454
        %v3456 = vpop.xlane.xlu0 %3455
        %v3457 = vrcp.pop %v3447
        %v3458 = vrcp.pop %v3450
        %v3459 = vrcp.pop %v3453
        %v3460 = vrcp.pop %v3456
        %v3461 = vmul.f32 %v3438, %v3457
        %v3462 = vmul.f32 %v3440, %v3458
        %v3463 = vmul.f32 %v3442, %v3459
        %v3464 = vmul.f32 %v3444, %v3460
        %v3466 = vsel %vm1569, %v3461, 0
        %3468 = vmatprep.subr.mxu0 0.0
        %3469 = vmatpush1.msra.mxu0 %v3101
        %3470 = vmatprep.subr.mxu0 0.0
        %3471 = vmatpush1.msra.mxu0 0.0
        %3472 = vmatprep.subr.mxu0 0.0
        %3473 = vmatpush1.msra.mxu0 0.0
        %3474 = vmatprep.subr.mxu0 0.0
        %3475 = vmatpush1.msra.mxu0 0.0
        %3476 = vmatprep.subr.mxu0 0.0
        %3477 = vmatpush1.msra.mxu0 0.0
        %3478 = vmatprep.subr.mxu0 0.0
        %3479 = vmatpush1.msra.mxu0 0.0
        %3480 = vmatprep.subr.mxu0 0.0
        %3481 = vmatpush1.msra.mxu0 0.0
        %3482 = vmatprep.subr.mxu0 0.0
        %3483 = vmatpush1.msra.mxu0 0.0
        %3484 = vmatprep.subr.mxu0 0.0
        %3485 = vmatpush1.msra.mxu0 0.0
        %3486 = vmatprep.subr.mxu0 0.0
        %3487 = vmatpush1.msra.mxu0 0.0
        %3488 = vmatprep.subr.mxu0 0.0
        %3489 = vmatpush1.msra.mxu0 0.0
        %3490 = vmatprep.subr.mxu0 0.0
        %3491 = vmatpush1.msra.mxu0 0.0
        %3492 = vmatprep.subr.mxu0 0.0
        %3493 = vmatpush1.msra.mxu0 0.0
        %3494 = vmatprep.subr.mxu0 0.0
        %3495 = vmatpush1.msra.mxu0 0.0
        %3496 = vmatprep.subr.mxu0 0.0
        %3497 = vmatpush1.msra.mxu0 0.0
        %3498 = vmatprep.subr.mxu0 0.0
        %3499 = vmatpush1.msra.mxu0 0.0
        %3500 = vmatprep.subr.mxu0 0.0
        %3501 = vmatpush1.msra.mxu0 0.0
        %3502 = vmatprep.subr.mxu0 0.0
        %3503 = vmatpush1.msra.mxu0 0.0
        %3504 = vmatprep.subr.mxu0 0.0
        %3505 = vmatpush1.msra.mxu0 0.0
        %3506 = vmatprep.subr.mxu0 0.0
        %3507 = vmatpush1.msra.mxu0 0.0
        %3508 = vmatprep.subr.mxu0 0.0
        %3509 = vmatpush1.msra.mxu0 0.0
        %3510 = vmatprep.subr.mxu0 0.0
        %3511 = vmatpush1.msra.mxu0 0.0
        %3512 = vmatprep.subr.mxu0 0.0
        %3513 = vmatpush1.msra.mxu0 0.0
        %3514 = vmatprep.subr.mxu0 0.0
        %3515 = vmatpush1.msra.mxu0 0.0
        %3516 = vmatprep.subr.mxu0 0.0
        %3517 = vmatpush1.msra.mxu0 0.0
        %3518 = vmatprep.subr.mxu0 0.0
        %3519 = vmatpush1.msra.mxu0 0.0
        %3520 = vmatprep.subr.mxu0 0.0
        %3521 = vmatpush1.msra.mxu0 0.0
        %3522 = vmatprep.subr.mxu0 0.0
        %3523 = vmatpush1.msra.mxu0 0.0
        %3524 = vmatprep.subr.mxu0 0.0
        %3525 = vmatpush1.msra.mxu0 0.0
        %3526 = vmatprep.subr.mxu0 0.0
        %3527 = vmatpush1.msra.mxu0 0.0
        %3528 = vmatprep.subr.mxu0 0.0
        %3529 = vmatpush1.msra.mxu0 0.0
        %3530 = vmatprep.subr.mxu0 0.0
        %3531 = vmatpush1.msra.mxu0 0.0
        %3532 = vmatprep.mubr.f32.mxu0 0.0
        %3533 = vmatmul.mubr.f32.gmra.mrb[0].mxu0 %v3466
        %v3534 = vpop.f32.mrb[0].mxu0
        %v3535 = vadd.f32 0.0, %v3534
        %v3536 = vpop.f32.mrb[0].mxu0
        %3537 = vdwg.mxu0
        %v3539 = vsel %vm1569, %v3462, 0
        %3541 = vmatprep.subr.mxu0 0.0
        %3542 = vmatpush1.msra.mxu0 %v3102
        %3543 = vmatprep.subr.mxu0 0.0
        %3544 = vmatpush1.msra.mxu0 0.0
        %3545 = vmatprep.subr.mxu0 0.0
        %3546 = vmatpush1.msra.mxu0 0.0
        %3547 = vmatprep.subr.mxu0 0.0
        %3548 = vmatpush1.msra.mxu0 0.0
        %3549 = vmatprep.subr.mxu0 0.0
        %3550 = vmatpush1.msra.mxu0 0.0
        %3551 = vmatprep.subr.mxu0 0.0
        %3552 = vmatpush1.msra.mxu0 0.0
        %3553 = vmatprep.subr.mxu0 0.0
        %3554 = vmatpush1.msra.mxu0 0.0
        %3555 = vmatprep.subr.mxu0 0.0
        %3556 = vmatpush1.msra.mxu0 0.0
        %3557 = vmatprep.subr.mxu0 0.0
        %3558 = vmatpush1.msra.mxu0 0.0
        %3559 = vmatprep.subr.mxu0 0.0
        %3560 = vmatpush1.msra.mxu0 0.0
        %3561 = vmatprep.subr.mxu0 0.0
        %3562 = vmatpush1.msra.mxu0 0.0
        %3563 = vmatprep.subr.mxu0 0.0
        %3564 = vmatpush1.msra.mxu0 0.0
        %3565 = vmatprep.subr.mxu0 0.0
        %3566 = vmatpush1.msra.mxu0 0.0
        %3567 = vmatprep.subr.mxu0 0.0
        %3568 = vmatpush1.msra.mxu0 0.0
        %3569 = vmatprep.subr.mxu0 0.0
        %3570 = vmatpush1.msra.mxu0 0.0
        %3571 = vmatprep.subr.mxu0 0.0
        %3572 = vmatpush1.msra.mxu0 0.0
        %3573 = vmatprep.subr.mxu0 0.0
        %3574 = vmatpush1.msra.mxu0 0.0
        %3575 = vmatprep.subr.mxu0 0.0
        %3576 = vmatpush1.msra.mxu0 0.0
        %3577 = vmatprep.subr.mxu0 0.0
        %3578 = vmatpush1.msra.mxu0 0.0
        %3579 = vmatprep.subr.mxu0 0.0
        %3580 = vmatpush1.msra.mxu0 0.0
        %3581 = vmatprep.subr.mxu0 0.0
        %3582 = vmatpush1.msra.mxu0 0.0
        %3583 = vmatprep.subr.mxu0 0.0
        %3584 = vmatpush1.msra.mxu0 0.0
        %3585 = vmatprep.subr.mxu0 0.0
        %3586 = vmatpush1.msra.mxu0 0.0
        %3587 = vmatprep.subr.mxu0 0.0
        %3588 = vmatpush1.msra.mxu0 0.0
        %3589 = vmatprep.subr.mxu0 0.0
        %3590 = vmatpush1.msra.mxu0 0.0
        %3591 = vmatprep.subr.mxu0 0.0
        %3592 = vmatpush1.msra.mxu0 0.0
        %3593 = vmatprep.subr.mxu0 0.0
        %3594 = vmatpush1.msra.mxu0 0.0
        %3595 = vmatprep.subr.mxu0 0.0
        %3596 = vmatpush1.msra.mxu0 0.0
        %3597 = vmatprep.subr.mxu0 0.0
        %3598 = vmatpush1.msra.mxu0 0.0
        %3599 = vmatprep.subr.mxu0 0.0
        %3600 = vmatpush1.msra.mxu0 0.0
        %3601 = vmatprep.subr.mxu0 0.0
        %3602 = vmatpush1.msra.mxu0 0.0
        %3603 = vmatprep.subr.mxu0 0.0
        %3604 = vmatpush1.msra.mxu0 0.0
        %3605 = vmatprep.mubr.f32.mxu0 0.0
        %3606 = vmatmul.mubr.f32.gmra.mrb[0].mxu0 %v3539
        %v3607 = vpop.f32.mrb[0].mxu0
        %v3608 = vadd.f32 0.0, %v3607
        %v3609 = vpop.f32.mrb[0].mxu0
        %3610 = vdwg.mxu0
        %v3612 = vsel %vm1569, %v3463, 0
        %3614 = vmatprep.subr.mxu0 0.0
        %3615 = vmatpush1.msra.mxu0 %v3103
        %3616 = vmatprep.subr.mxu0 0.0
        %3617 = vmatpush1.msra.mxu0 0.0
        %3618 = vmatprep.subr.mxu0 0.0
        %3619 = vmatpush1.msra.mxu0 0.0
        %3620 = vmatprep.subr.mxu0 0.0
        %3621 = vmatpush1.msra.mxu0 0.0
        %3622 = vmatprep.subr.mxu0 0.0
        %3623 = vmatpush1.msra.mxu0 0.0
        %3624 = vmatprep.subr.mxu0 0.0
        %3625 = vmatpush1.msra.mxu0 0.0
        %3626 = vmatprep.subr.mxu0 0.0
        %3627 = vmatpush1.msra.mxu0 0.0
        %3628 = vmatprep.subr.mxu0 0.0
        %3629 = vmatpush1.msra.mxu0 0.0
        %3630 = vmatprep.subr.mxu0 0.0
        %3631 = vmatpush1.msra.mxu0 0.0
        %3632 = vmatprep.subr.mxu0 0.0
        %3633 = vmatpush1.msra.mxu0 0.0
        %3634 = vmatprep.subr.mxu0 0.0
        %3635 = vmatpush1.msra.mxu0 0.0
        %3636 = vmatprep.subr.mxu0 0.0
        %3637 = vmatpush1.msra.mxu0 0.0
        %3638 = vmatprep.subr.mxu0 0.0
        %3639 = vmatpush1.msra.mxu0 0.0
        %3640 = vmatprep.subr.mxu0 0.0
        %3641 = vmatpush1.msra.mxu0 0.0
        %3642 = vmatprep.subr.mxu0 0.0
        %3643 = vmatpush1.msra.mxu0 0.0
        %3644 = vmatprep.subr.mxu0 0.0
        %3645 = vmatpush1.msra.mxu0 0.0
        %3646 = vmatprep.subr.mxu0 0.0
        %3647 = vmatpush1.msra.mxu0 0.0
        %3648 = vmatprep.subr.mxu0 0.0
        %3649 = vmatpush1.msra.mxu0 0.0
        %3650 = vmatprep.subr.mxu0 0.0
        %3651 = vmatpush1.msra.mxu0 0.0
        %3652 = vmatprep.subr.mxu0 0.0
        %3653 = vmatpush1.msra.mxu0 0.0
        %3654 = vmatprep.subr.mxu0 0.0
        %3655 = vmatpush1.msra.mxu0 0.0
        %3656 = vmatprep.subr.mxu0 0.0
        %3657 = vmatpush1.msra.mxu0 0.0
        %3658 = vmatprep.subr.mxu0 0.0
        %3659 = vmatpush1.msra.mxu0 0.0
        %3660 = vmatprep.subr.mxu0 0.0
        %3661 = vmatpush1.msra.mxu0 0.0
        %3662 = vmatprep.subr.mxu0 0.0
        %3663 = vmatpush1.msra.mxu0 0.0
        %3664 = vmatprep.subr.mxu0 0.0
        %3665 = vmatpush1.msra.mxu0 0.0
        %3666 = vmatprep.subr.mxu0 0.0
        %3667 = vmatpush1.msra.mxu0 0.0
        %3668 = vmatprep.subr.mxu0 0.0
        %3669 = vmatpush1.msra.mxu0 0.0
        %3670 = vmatprep.subr.mxu0 0.0
        %3671 = vmatpush1.msra.mxu0 0.0
        %3672 = vmatprep.subr.mxu0 0.0
        %3673 = vmatpush1.msra.mxu0 0.0
        %3674 = vmatprep.subr.mxu0 0.0
        %3675 = vmatpush1.msra.mxu0 0.0
        %3676 = vmatprep.subr.mxu0 0.0
        %3677 = vmatpush1.msra.mxu0 0.0
        %3678 = vmatprep.mubr.f32.mxu0 0.0
        %3679 = vmatmul.mubr.f32.gmra.mrb[0].mxu0 %v3612
        %v3680 = vpop.f32.mrb[0].mxu0
        %v3681 = vadd.f32 0.0, %v3680
        %v3682 = vpop.f32.mrb[0].mxu0
        %3683 = vdwg.mxu0
        %v3685 = vsel %vm1569, %v3464, 0
        %3687 = vmatprep.subr.mxu0 0.0
        %3688 = vmatpush1.msra.mxu0 %v3104
        %3689 = vmatprep.subr.mxu0 0.0
        %3690 = vmatpush1.msra.mxu0 0.0
        %3691 = vmatprep.subr.mxu0 0.0
        %3692 = vmatpush1.msra.mxu0 0.0
        %3693 = vmatprep.subr.mxu0 0.0
        %3694 = vmatpush1.msra.mxu0 0.0
        %3695 = vmatprep.subr.mxu0 0.0
        %3696 = vmatpush1.msra.mxu0 0.0
        %3697 = vmatprep.subr.mxu0 0.0
        %3698 = vmatpush1.msra.mxu0 0.0
        %3699 = vmatprep.subr.mxu0 0.0
        %3700 = vmatpush1.msra.mxu0 0.0
        %3701 = vmatprep.subr.mxu0 0.0
        %3702 = vmatpush1.msra.mxu0 0.0
        %3703 = vmatprep.subr.mxu0 0.0
        %3704 = vmatpush1.msra.mxu0 0.0
        %3705 = vmatprep.subr.mxu0 0.0
        %3706 = vmatpush1.msra.mxu0 0.0
        %3707 = vmatprep.subr.mxu0 0.0
        %3708 = vmatpush1.msra.mxu0 0.0
        %3709 = vmatprep.subr.mxu0 0.0
        %3710 = vmatpush1.msra.mxu0 0.0
        %3711 = vmatprep.subr.mxu0 0.0
        %3712 = vmatpush1.msra.mxu0 0.0
        %3713 = vmatprep.subr.mxu0 0.0
        %3714 = vmatpush1.msra.mxu0 0.0
        %3715 = vmatprep.subr.mxu0 0.0
        %3716 = vmatpush1.msra.mxu0 0.0
        %3717 = vmatprep.subr.mxu0 0.0
        %3718 = vmatpush1.msra.mxu0 0.0
        %3719 = vmatprep.subr.mxu0 0.0
        %3720 = vmatpush1.msra.mxu0 0.0
        %3721 = vmatprep.subr.mxu0 0.0
        %3722 = vmatpush1.msra.mxu0 0.0
        %3723 = vmatprep.subr.mxu0 0.0
        %3724 = vmatpush1.msra.mxu0 0.0
        %3725 = vmatprep.subr.mxu0 0.0
        %3726 = vmatpush1.msra.mxu0 0.0
        %3727 = vmatprep.subr.mxu0 0.0
        %3728 = vmatpush1.msra.mxu0 0.0
        %3729 = vmatprep.subr.mxu0 0.0
        %3730 = vmatpush1.msra.mxu0 0.0
        %3731 = vmatprep.subr.mxu0 0.0
        %3732 = vmatpush1.msra.mxu0 0.0
        %3733 = vmatprep.subr.mxu0 0.0
        %3734 = vmatpush1.msra.mxu0 0.0
        %3735 = vmatprep.subr.mxu0 0.0
        %3736 = vmatpush1.msra.mxu0 0.0
        %3737 = vmatprep.subr.mxu0 0.0
        %3738 = vmatpush1.msra.mxu0 0.0
        %3739 = vmatprep.subr.mxu0 0.0
        %3740 = vmatpush1.msra.mxu0 0.0
        %3741 = vmatprep.subr.mxu0 0.0
        %3742 = vmatpush1.msra.mxu0 0.0
        %3743 = vmatprep.subr.mxu0 0.0
        %3744 = vmatpush1.msra.mxu0 0.0
        %3745 = vmatprep.subr.mxu0 0.0
        %3746 = vmatpush1.msra.mxu0 0.0
        %3747 = vmatprep.subr.mxu0 0.0
        %3748 = vmatpush1.msra.mxu0 0.0
        %3749 = vmatprep.subr.mxu0 0.0
        %3750 = vmatpush1.msra.mxu0 0.0
        %3751 = vmatprep.mubr.f32.mxu0 0.0
        %3752 = vmatmul.mubr.f32.gmra.mrb[0].mxu0 %v3685
        %v3753 = vpop.f32.mrb[0].mxu0
        %v3754 = vadd.f32 0.0, %v3753
        %v3755 = vpop.f32.mrb[0].mxu0
        %3756 = vdwg.mxu0
        %v3757 = vcombine.low %v3535, %v3681
        %v3758 = vcombine.high %v3535, %v3681
        %v3760 = vunpack.c.l.s4 1983009808
        %v3761 = vunpack.c.0.s8 %v3760
        %v3762 = vlaneseq
        %v3763 = vshrl.u32 %v3762, 7
        %v3764 = vsub.s32 %v3761, %v3763
        %v3765 = vrot.slane %v3757, %v3764
        %v3767 = vunpack.c.l.s4 1983009808
        %v3768 = vunpack.c.0.s8 %v3767
        %v3769 = vlaneseq
        %v3770 = vshrl.u32 %v3769, 7
        %v3771 = vsub.s32 %v3768, %v3770
        %v3772 = vrot.slane %v3758, %v3771
        %v3773 = vcombine.low %v3608, %v3754
        %v3774 = vcombine.high %v3608, %v3754
        %v3776 = vunpack.c.l.s4 1983009808
        %v3777 = vunpack.c.0.s8 %v3776
        %v3778 = vlaneseq
        %v3779 = vshrl.u32 %v3778, 7
        %v3780 = vsub.s32 %v3777, %v3779
        %v3781 = vrot.slane %v3773, %v3780
        %v3783 = vunpack.c.l.s4 1983009808
        %v3784 = vunpack.c.0.s8 %v3783
        %v3785 = vlaneseq
        %v3786 = vshrl.u32 %v3785, 7
        %v3787 = vsub.s32 %v3784, %v3786
        %v3788 = vrot.slane %v3774, %v3787
        %v3789 = vcombine.low %v3765, %v3781
        %v3790 = vcombine.high %v3765, %v3781
        %v3792 = vunpack.c.l.s4 1934713408
        %v3793 = vunpack.c.0.s8 %v3792
        %v3794 = vlaneseq
        %v3795 = vshrl.u32 %v3794, 7
        %v3796 = vsub.s32 %v3793, %v3795
        %v3797 = vrot.slane %v3789, %v3796
        %v3799 = vunpack.c.l.s4 1934713408
        %v3800 = vunpack.c.0.s8 %v3799
        %v3801 = vlaneseq
        %v3802 = vshrl.u32 %v3801, 7
        %v3803 = vsub.s32 %v3800, %v3802
        %v3804 = vrot.slane %v3790, %v3803
        %v3805 = vcombine.low %v3772, %v3788
        %v3806 = vcombine.high %v3772, %v3788
        %v3808 = vunpack.c.l.s4 1934713408
        %v3809 = vunpack.c.0.s8 %v3808
        %v3810 = vlaneseq
        %v3811 = vshrl.u32 %v3810, 7
        %v3812 = vsub.s32 %v3809, %v3811
        %v3813 = vrot.slane %v3805, %v3812
        %v3815 = vunpack.c.l.s4 1934713408
        %v3816 = vunpack.c.0.s8 %v3815
        %v3817 = vlaneseq
        %v3818 = vshrl.u32 %v3817, 7
        %v3819 = vsub.s32 %v3816, %v3818
        %v3820 = vrot.slane %v3806, %v3819
        %v3821 = vcombine.high %v3797, 0.0
        %v3822 = vcombine.high %v3804, 0.0
        %v3823 = vcombine.high %v3813, 0.0
        %v3824 = vcombine.high %v3820, 0.0
        %v3825 = vcombine.low %v3797, %v3804
        %v3827 = vunpack.c.l.s4 1983009808
        %v3828 = vunpack.c.0.s8 %v3827
        %v3829 = vlaneseq
        %v3830 = vshrl.u32 %v3829, 7
        %v3831 = vsub.s32 %v3828, %v3830
        %v3832 = vrot.slane %v3825, %v3831
        %v3833 = vcombine.low %v3821, %v3822
        %v3835 = vunpack.c.l.s4 1983009808
        %v3836 = vunpack.c.0.s8 %v3835
        %v3837 = vlaneseq
        %v3838 = vshrl.u32 %v3837, 7
        %v3839 = vsub.s32 %v3836, %v3838
        %v3840 = vrot.slane %v3833, %v3839
        %v3841 = vcombine.low %v3813, %v3820
        %v3843 = vunpack.c.l.s4 1983009808
        %v3844 = vunpack.c.0.s8 %v3843
        %v3845 = vlaneseq
        %v3846 = vshrl.u32 %v3845, 7
        %v3847 = vsub.s32 %v3844, %v3846
        %v3848 = vrot.slane %v3841, %v3847
        %v3849 = vcombine.low %v3823, %v3824
        %v3851 = vunpack.c.l.s4 1983009808
        %v3852 = vunpack.c.0.s8 %v3851
        %v3853 = vlaneseq
        %v3854 = vshrl.u32 %v3853, 7
        %v3855 = vsub.s32 %v3852, %v3854
        %v3856 = vrot.slane %v3849, %v3855
        %v3857 = vcombine.low %v3832, %v3840
        %v3858 = vcombine.high %v3832, %v3840
        %v3860 = vunpack.c.l.s4 1934713408
        %v3861 = vunpack.c.0.s8 %v3860
        %v3862 = vlaneseq
        %v3863 = vshrl.u32 %v3862, 7
        %v3864 = vsub.s32 %v3861, %v3863
        %v3865 = vrot.slane %v3857, %v3864
        %v3867 = vunpack.c.l.s4 1934713408
        %v3868 = vunpack.c.0.s8 %v3867
        %v3869 = vlaneseq
        %v3870 = vshrl.u32 %v3869, 7
        %v3871 = vsub.s32 %v3868, %v3870
        %v3872 = vrot.slane %v3858, %v3871
        %v3873 = vcombine.low %v3848, %v3856
        %v3874 = vcombine.high %v3848, %v3856
        %v3876 = vunpack.c.l.s4 1934713408
        %v3877 = vunpack.c.0.s8 %v3876
        %v3878 = vlaneseq
        %v3879 = vshrl.u32 %v3878, 7
        %v3880 = vsub.s32 %v3877, %v3879
        %v3881 = vrot.slane %v3873, %v3880
        %v3883 = vunpack.c.l.s4 1934713408
        %v3884 = vunpack.c.0.s8 %v3883
        %v3885 = vlaneseq
        %v3886 = vshrl.u32 %v3885, 7
        %v3887 = vsub.s32 %v3884, %v3886
        %v3888 = vrot.slane %v3874, %v3887
        %v3889 = vcombine.low %v3865, %v3881
        %v3890 = vcombine.high %v3865, %v3881
        %v3891 = vcombine.low %v3872, %v3888
        %v3892 = vcombine.high %v3872, %v3888
        %3894 = vrot.lane.b32.xlu0 %v3890, 8
        %v3895 = vpop.permute.xlu0 %3894
        %3898 = vrot.lane.b32.xlu0 %v3891, 16
        %v3899 = vpop.permute.xlu0 %3898
        %3902 = vrot.lane.b32.xlu0 %v3892, 24
        %v3903 = vpop.permute.xlu0 %3902
        %v3905 = vsel %vm1569, %v3889, %v3895
        %v3906 = vsel %vm2367, %v3905, %v3899
        %v3907 = vsel %vm2369, %v3906, %v3903
        %v3908 = vld [vmem:[#allocation22] sm:$0xff]
        %v3909 = vld [vmem:[#allocation22 + $0x8] sm:$0xff]
        %v3910 = vld [vmem:[#allocation22 + $0x10] sm:$0xff]
        %v3911 = vld [vmem:[#allocation22 + $0x18] sm:$0xff]
        %v3913 = vsel %vm1001, %v3907, 0
        %3915 = vmatprep.subr.mxu0 0.0
        %3916 = vmatpush1.msra.mxu0 %v3908
        %3917 = vmatprep.subr.mxu0 0.0
        %3918 = vmatpush1.msra.mxu0 %v3909
        %3919 = vmatprep.subr.mxu0 0.0
        %3920 = vmatpush1.msra.mxu0 %v3910
        %3921 = vmatprep.subr.mxu0 0.0
        %3922 = vmatpush1.msra.mxu0 %v3911
        %3923 = vmatprep.subr.mxu0 0.0
        %3924 = vmatpush1.msra.mxu0 0.0
        %3925 = vmatprep.subr.mxu0 0.0
        %3926 = vmatpush1.msra.mxu0 0.0
        %3927 = vmatprep.subr.mxu0 0.0
        %3928 = vmatpush1.msra.mxu0 0.0
        %3929 = vmatprep.subr.mxu0 0.0
        %3930 = vmatpush1.msra.mxu0 0.0
        %3931 = vmatprep.subr.mxu0 0.0
        %3932 = vmatpush1.msra.mxu0 0.0
        %3933 = vmatprep.subr.mxu0 0.0
        %3934 = vmatpush1.msra.mxu0 0.0
        %3935 = vmatprep.subr.mxu0 0.0
        %3936 = vmatpush1.msra.mxu0 0.0
        %3937 = vmatprep.subr.mxu0 0.0
        %3938 = vmatpush1.msra.mxu0 0.0
        %3939 = vmatprep.subr.mxu0 0.0
        %3940 = vmatpush1.msra.mxu0 0.0
        %3941 = vmatprep.subr.mxu0 0.0
        %3942 = vmatpush1.msra.mxu0 0.0
        %3943 = vmatprep.subr.mxu0 0.0
        %3944 = vmatpush1.msra.mxu0 0.0
        %3945 = vmatprep.subr.mxu0 0.0
        %3946 = vmatpush1.msra.mxu0 0.0
        %3947 = vmatprep.subr.mxu0 0.0
        %3948 = vmatpush1.msra.mxu0 0.0
        %3949 = vmatprep.subr.mxu0 0.0
        %3950 = vmatpush1.msra.mxu0 0.0
        %3951 = vmatprep.subr.mxu0 0.0
        %3952 = vmatpush1.msra.mxu0 0.0
        %3953 = vmatprep.subr.mxu0 0.0
        %3954 = vmatpush1.msra.mxu0 0.0
        %3955 = vmatprep.subr.mxu0 0.0
        %3956 = vmatpush1.msra.mxu0 0.0
        %3957 = vmatprep.subr.mxu0 0.0
        %3958 = vmatpush1.msra.mxu0 0.0
        %3959 = vmatprep.subr.mxu0 0.0
        %3960 = vmatpush1.msra.mxu0 0.0
        %3961 = vmatprep.subr.mxu0 0.0
        %3962 = vmatpush1.msra.mxu0 0.0
        %3963 = vmatprep.subr.mxu0 0.0
        %3964 = vmatpush1.msra.mxu0 0.0
        %3965 = vmatprep.subr.mxu0 0.0
        %3966 = vmatpush1.msra.mxu0 0.0
        %3967 = vmatprep.subr.mxu0 0.0
        %3968 = vmatpush1.msra.mxu0 0.0
        %3969 = vmatprep.subr.mxu0 0.0
        %3970 = vmatpush1.msra.mxu0 0.0
        %3971 = vmatprep.subr.mxu0 0.0
        %3972 = vmatpush1.msra.mxu0 0.0
        %3973 = vmatprep.subr.mxu0 0.0
        %3974 = vmatpush1.msra.mxu0 0.0
        %3975 = vmatprep.subr.mxu0 0.0
        %3976 = vmatpush1.msra.mxu0 0.0
        %3977 = vmatprep.subr.mxu0 0.0
        %3978 = vmatpush1.msra.mxu0 0.0
        %3979 = vmatprep.mubr.f32.mxu0 0.0
        %3980 = vmatmul.mubr.f32.gmra.mrb[0].mxu0 %v3913
        %v3981 = vpop.f32.mrb[0].mxu0
        %v3982 = vadd.f32 0.0, %v3981
        %v3983 = vpop.f32.mrb[0].mxu0
        %3984 = vdwg.mxu0
        %v3985 = vadd.f32 %v2456, %v3982
        %v3986 = vld [vmem:[#allocation23] sm:$0x1]
        %v3988 = vlaneseq
        %v3989 = vshrl.u32 %v3988, 7
        %v3990 = vsub.s32 0, %v3989
        %v3991 = vrot.slane %v3986, %v3990
        %v3993 = vadd.f32 %v3985, %v3991
        %v3994 = vsel %vm1001, %v3993, 0.0
        %3995 = vadd.xlane.f32.xlu0 %v3994
        %v3996 = vpop.xlane.xlu0 %3995
        %v3997 = vmul.f32 %v3996, %v1005
        %v3998 = vsub.f32 %v3993, %v3997
        %v3999 = vmul.f32 %v3998, %v3998
        %v4000 = vsel %vm1001, %v3999, 0.0
        %4001 = vadd.xlane.f32.xlu0 %v4000
        %v4002 = vpop.xlane.xlu0 %4001
        %v4003 = vmul.f32 %v4002, 0.032258064
        %v4004 = vrsqrt.pop %v4003
        %v4005 = vmul.f32 %v4003, %v4004
        %vm4006 = vcmp.eq.f32.partialorder %v4003, inf
        %v4007 = vsel %vm4006, %v4003, %v4005
        %vm4008 = vcmp.eq.f32.partialorder %v4003, 0.0
        %v4009 = vand.u32 %v4003, 2147483648
        %v4010 = vsel %vm4008, %v4009, %v4007
        %v4011 = vadd.f32 %v4010, 1e-06
        %v4012 = vrcp.pop %v4011
        %v4013 = vld [vmem:[%s18] sm:$0x1]
        %v4015 = vlaneseq
        %v4016 = vshrl.u32 %v4015, 7
        %v4017 = vsub.s32 0, %v4016
        %v4018 = vrot.slane %v4013, %v4017
        %v4020 = vmul.f32 %v4018, %v3998
        %v4021 = vmul.f32 %v4020, %v4012
        %v4022 = vld [vmem:[%s19] sm:$0x1]
        %v4024 = vlaneseq
        %v4025 = vshrl.u32 %v4024, 7
        %v4026 = vsub.s32 0, %v4025
        %v4027 = vrot.slane %v4022, %v4026
        %v4029 = vadd.f32 %v4021, %v4027
        %v4030 = vld [vmem:[#allocation25] sm:$0xff]
        %v4031 = vld [vmem:[#allocation25 + $0x8] sm:$0xff]
        %v4032 = vld [vmem:[#allocation25 + $0x10] sm:$0xff]
        %v4033 = vld [vmem:[#allocation25 + $0x18] sm:$0xff]
        %v4034 = vld [vmem:[%s21] sm:$0x1]
        %v4036 = vlaneseq
        %v4037 = vshrl.u32 %v4036, 7
        %v4038 = vsub.s32 0, %v4037
        %v4039 = vrot.slane %v4034, %v4038
        %v4042 = vsel %vm1001, %v4029, 0
        %4044 = vmatprep.subr.mxu0 0.0
        %4045 = vmatpush1.msra.mxu0 %v4030
        %4046 = vmatprep.subr.mxu0 0.0
        %4047 = vmatpush1.msra.mxu0 %v4031
        %4048 = vmatprep.subr.mxu0 0.0
        %4049 = vmatpush1.msra.mxu0 %v4032
        %4050 = vmatprep.subr.mxu0 0.0
        %4051 = vmatpush1.msra.mxu0 %v4033
        %4052 = vmatprep.subr.mxu0 0.0
        %4053 = vmatpush1.msra.mxu0 0.0
        %4054 = vmatprep.subr.mxu0 0.0
        %4055 = vmatpush1.msra.mxu0 0.0
        %4056 = vmatprep.subr.mxu0 0.0
        %4057 = vmatpush1.msra.mxu0 0.0
        %4058 = vmatprep.subr.mxu0 0.0
        %4059 = vmatpush1.msra.mxu0 0.0
        %4060 = vmatprep.subr.mxu0 0.0
        %4061 = vmatpush1.msra.mxu0 0.0
        %4062 = vmatprep.subr.mxu0 0.0
        %4063 = vmatpush1.msra.mxu0 0.0
        %4064 = vmatprep.subr.mxu0 0.0
        %4065 = vmatpush1.msra.mxu0 0.0
        %4066 = vmatprep.subr.mxu0 0.0
        %4067 = vmatpush1.msra.mxu0 0.0
        %4068 = vmatprep.subr.mxu0 0.0
        %4069 = vmatpush1.msra.mxu0 0.0
        %4070 = vmatprep.subr.mxu0 0.0
        %4071 = vmatpush1.msra.mxu0 0.0
        %4072 = vmatprep.subr.mxu0 0.0
        %4073 = vmatpush1.msra.mxu0 0.0
        %4074 = vmatprep.subr.mxu0 0.0
        %4075 = vmatpush1.msra.mxu0 0.0
        %4076 = vmatprep.subr.mxu0 0.0
        %4077 = vmatpush1.msra.mxu0 0.0
        %4078 = vmatprep.subr.mxu0 0.0
        %4079 = vmatpush1.msra.mxu0 0.0
        %4080 = vmatprep.subr.mxu0 0.0
        %4081 = vmatpush1.msra.mxu0 0.0
        %4082 = vmatprep.subr.mxu0 0.0
        %4083 = vmatpush1.msra.mxu0 0.0
        %4084 = vmatprep.subr.mxu0 0.0
        %4085 = vmatpush1.msra.mxu0 0.0
        %4086 = vmatprep.subr.mxu0 0.0
        %4087 = vmatpush1.msra.mxu0 0.0
        %4088 = vmatprep.subr.mxu0 0.0
        %4089 = vmatpush1.msra.mxu0 0.0
        %4090 = vmatprep.subr.mxu0 0.0
        %4091 = vmatpush1.msra.mxu0 0.0
        %4092 = vmatprep.subr.mxu0 0.0
        %4093 = vmatpush1.msra.mxu0 0.0
        %4094 = vmatprep.subr.mxu0 0.0
        %4095 = vmatpush1.msra.mxu0 0.0
        %4096 = vmatprep.subr.mxu0 0.0
        %4097 = vmatpush1.msra.mxu0 0.0
        %4098 = vmatprep.subr.mxu0 0.0
        %4099 = vmatpush1.msra.mxu0 0.0
        %4100 = vmatprep.subr.mxu0 0.0
        %4101 = vmatpush1.msra.mxu0 0.0
        %4102 = vmatprep.subr.mxu0 0.0
        %4103 = vmatpush1.msra.mxu0 0.0
        %4104 = vmatprep.subr.mxu0 0.0
        %4105 = vmatpush1.msra.mxu0 0.0
        %4106 = vmatprep.subr.mxu0 0.0
        %4107 = vmatpush1.msra.mxu0 0.0
        %4108 = vmatprep.mubr.f32.mxu0 0.0
        %4109 = vmatmul.mubr.f32.gmra.mrb[0].mxu0 %v4042
        %v4110 = vpop.f32.mrb[0].mxu0
        %v4111 = vadd.f32 %v4039, %v4110
        %v4112 = vpop.f32.mrb[0].mxu0
        %4113 = vdwg.mxu0
        %v4114 = vmax.f32 %v4111, 0.0
        %v4115 = vld [vmem:[%s22] sm:$0xff]
        %v4116 = vld [vmem:[%s22 + $0x8] sm:$0xff]
        %v4117 = vld [vmem:[%s22 + $0x10] sm:$0xff]
        %v4118 = vld [vmem:[%s22 + $0x18] sm:$0xff]
        %v4119 = vld [vmem:[%s22 + $0x20] sm:$0xff]
        %v4120 = vld [vmem:[%s22 + $0x28] sm:$0xff]
        %v4121 = vld [vmem:[%s22 + $0x30] sm:$0xff]
        %v4122 = vld [vmem:[%s22 + $0x38] sm:$0xff]
        %vm4123 = vcmask 523264
        %v4125 = vsel %vm4123, %v4114, 0
        %4127 = vmatprep.subr.mxu0 0.0
        %4128 = vmatpush1.msra.mxu0 %v4115
        %4129 = vmatprep.subr.mxu0 0.0
        %4130 = vmatpush1.msra.mxu0 %v4116
        %4131 = vmatprep.subr.mxu0 0.0
        %4132 = vmatpush1.msra.mxu0 %v4117
        %4133 = vmatprep.subr.mxu0 0.0
        %4134 = vmatpush1.msra.mxu0 %v4118
        %4135 = vmatprep.subr.mxu0 0.0
        %4136 = vmatpush1.msra.mxu0 %v4119
        %4137 = vmatprep.subr.mxu0 0.0
        %4138 = vmatpush1.msra.mxu0 %v4120
        %4139 = vmatprep.subr.mxu0 0.0
        %4140 = vmatpush1.msra.mxu0 %v4121
        %4141 = vmatprep.subr.mxu0 0.0
        %4142 = vmatpush1.msra.mxu0 %v4122
        %4143 = vmatprep.subr.mxu0 0.0
        %4144 = vmatpush1.msra.mxu0 0.0
        %4145 = vmatprep.subr.mxu0 0.0
        %4146 = vmatpush1.msra.mxu0 0.0
        %4147 = vmatprep.subr.mxu0 0.0
        %4148 = vmatpush1.msra.mxu0 0.0
        %4149 = vmatprep.subr.mxu0 0.0
        %4150 = vmatpush1.msra.mxu0 0.0
        %4151 = vmatprep.subr.mxu0 0.0
        %4152 = vmatpush1.msra.mxu0 0.0
        %4153 = vmatprep.subr.mxu0 0.0
        %4154 = vmatpush1.msra.mxu0 0.0
        %4155 = vmatprep.subr.mxu0 0.0
        %4156 = vmatpush1.msra.mxu0 0.0
        %4157 = vmatprep.subr.mxu0 0.0
        %4158 = vmatpush1.msra.mxu0 0.0
        %4159 = vmatprep.subr.mxu0 0.0
        %4160 = vmatpush1.msra.mxu0 0.0
        %4161 = vmatprep.subr.mxu0 0.0
        %4162 = vmatpush1.msra.mxu0 0.0
        %4163 = vmatprep.subr.mxu0 0.0
        %4164 = vmatpush1.msra.mxu0 0.0
        %4165 = vmatprep.subr.mxu0 0.0
        %4166 = vmatpush1.msra.mxu0 0.0
        %4167 = vmatprep.subr.mxu0 0.0
        %4168 = vmatpush1.msra.mxu0 0.0
        %4169 = vmatprep.subr.mxu0 0.0
        %4170 = vmatpush1.msra.mxu0 0.0
        %4171 = vmatprep.subr.mxu0 0.0
        %4172 = vmatpush1.msra.mxu0 0.0
        %4173 = vmatprep.subr.mxu0 0.0
        %4174 = vmatpush1.msra.mxu0 0.0
        %4175 = vmatprep.subr.mxu0 0.0
        %4176 = vmatpush1.msra.mxu0 0.0
        %4177 = vmatprep.subr.mxu0 0.0
        %4178 = vmatpush1.msra.mxu0 0.0
        %4179 = vmatprep.subr.mxu0 0.0
        %4180 = vmatpush1.msra.mxu0 0.0
        %4181 = vmatprep.subr.mxu0 0.0
        %4182 = vmatpush1.msra.mxu0 0.0
        %4183 = vmatprep.subr.mxu0 0.0
        %4184 = vmatpush1.msra.mxu0 0.0
        %4185 = vmatprep.subr.mxu0 0.0
        %4186 = vmatpush1.msra.mxu0 0.0
        %4187 = vmatprep.subr.mxu0 0.0
        %4188 = vmatpush1.msra.mxu0 0.0
        %4189 = vmatprep.subr.mxu0 0.0
        %4190 = vmatpush1.msra.mxu0 0.0
        %4191 = vmatprep.mubr.f32.mxu0 0.0
        %4192 = vmatmul.mubr.f32.gmra.mrb[0].mxu0 %v4125
        %v4193 = vpop.f32.mrb[0].mxu0
        %v4194 = vadd.f32 0.0, %v4193
        %v4195 = vpop.f32.mrb[0].mxu0
        %4196 = vdwg.mxu0
        %v4197 = vadd.f32 %v3993, %v4194
        %v4198 = vld [vmem:[%s23] sm:$0x1]
        %v4200 = vlaneseq
        %v4201 = vshrl.u32 %v4200, 7
        %v4202 = vsub.s32 0, %v4201
        %v4203 = vrot.slane %v4198, %v4202
        %v4205 = vadd.f32 %v4197, %v4203
        %4206 = vst.msk [vmem:[%s998] sm:$0xff] %vm1001, %v4205
        %s4207 = sand.u32 %s584, 1
        %s4208 = scalar_lea.sflag [#allocation4], %s4207
        %s4209 = sand.u32 %s584, 1
        %s4210 = smul.addr %s4209, 8
        %s4211 = scalar_lea.vmem [#allocation26], %s4210
        // Predicated region
        $region177: #{tpu_custom_call.1} parent=115 // pred_check
          %p4212 = pneg %p594
        $region178: #{tpu_custom_call.1} parent=115 // pred_check_branch
          %4214 = sbr.rel (%p4212) target = $region180
        $region179: #{tpu_custom_call.1} parent=115 // pred_region
          %s4216 = ssub.s32 128, 128
          %4217 = vsyncadd %s4208, %s4216
          %s4218 = smul.addr %s52, 128
          %s4219 = scalar_lea.hbm %s24, %s4218
          %s4221 = sshll.u32 %s4211, 4
          %s4222 = int_to_ptr.vmem [resolvable:$true] %s4221
          %4224 = dma.vmem_to_hbm [thread:$0]  %s4222, 128, %s4219, %s4208
        $region180: #{tpu_custom_call.1} parent=115 // pred_fallthru
          _
      $region116: #{tpu_custom_call.1} parent=5 // pred_fallthru
        _
      %p4225 = scmp.le.s32.totalorder 2, %s47
      // Predicated region
      $region181: #{tpu_custom_call.1} parent=5 // pred_check
        %p4226 = pneg %p4225
      $region182: #{tpu_custom_call.1} parent=5 // pred_check_branch
        %4228 = sbr.rel (%p4226) target = $region184
      $region183: #{tpu_custom_call.1} parent=5 // pred_region
        %s4229 = ssub.s32 %s47, 2
        // Predicated region
        $region185: #{tpu_custom_call.1} parent=183 // pred_check
          %p4230 = pneg %p600
        $region186: #{tpu_custom_call.1} parent=183 // pred_check_branch
          %4232 = sbr.rel (%p4230) target = $region188
        $region187: #{tpu_custom_call.1} parent=183 // pred_region
          %s4233 = sand.u32 %s585, 1
          %s4234 = scalar_lea.sflag [#allocation4], %s4233
          %s4235 = sand.u32 %s585, 1
          %s4236 = smul.addr %s4235, 8
          %s4237 = scalar_lea.vmem [#allocation26], %s4236
          %4238 = dma.done %s4234, 128
        $region188: #{tpu_custom_call.1} parent=183 // pred_fallthru
          _
      $region184: #{tpu_custom_call.1} parent=5 // pred_fallthru
        _
    $region6: #{tpu_custom_call.1} parent=1 // loop_footer
      %s51 = sadd.s32 1, %s47
    $region7: #{tpu_custom_call.1} parent=1 // loop_footer_branch
      %46 = sbr.rel target = $region3
    $region8: #{tpu_custom_call.1} parent=1 // loop_exit
      _
    %4239 = vsyncpa [#allocation3], 1
    %s4240 = scalar_lea.sflag [#allocation3], 1
    %4241 = vsyncpa %s4240, 1
    %4242 = vsyncpa [#allocation6], 1
    %s4243 = scalar_lea.sflag [#allocation6], 1
    %4244 = vsyncpa %s4243, 1
    %4245 = vsyncpa [#allocation9], 1
    %s4246 = scalar_lea.sflag [#allocation9], 1
    %4247 = vsyncpa %s4246, 1
    %4248 = vsyncpa [#allocation12], 1
    %4249 = vsyncpa [#allocation15], 1
    %4250 = vsyncpa [#allocation18], 1
    %4251 = vsyncpa [#allocation21], 1
    %4252 = vsyncpa [#allocation24], 1
    %4253 = vsyncpa [#allocation4], 1
    %s4254 = scalar_lea.sflag [#allocation4], 1
    %4255 = vsyncpa %s4254, 1

</llo_original>
